<compile_context>
chip_gen: v6e
topology: v6e:2x2x1
jax: 0.10.0
libtpu: 0.0.40
codegen_flags: <defaults>
</compile_context>

<pallas_src>
import jax
import jax.numpy as jnp
from jax.experimental import pallas as pl
from jax.experimental.pallas import tpu as pltpu

VTH = 0.3   # spike threshold
TAU = 0.3   # membrane decay

FC1_IN = 2312        # 2 * 34 * 34 (N-MNIST)
FC1_OUT = 512
NUM_CLASSES = 10
H2_PAD = 128         # fc2 output padded to one full lane group


def _round_up(x, m):
    return (x + m - 1) // m * m


# ----------------------------------------------------------------------------
# Fused kernel factory: per batch block, fc1 (all T at once) -> LIF1 ->
# fc2 (all T at once) -> LIF2 -> mean over T.
# ----------------------------------------------------------------------------
def _make_kernel(T, nb):
    def kernel(x_ref, w1_ref, b1_ref, w2_ref, b2_ref, o_ref, s1_ref):
        # x_ref : (T*nb, F)    bf16  t-major input slab for this batch block
        # w1_ref: (F, H1)      bf16  pre-transposed fc1 weight (resident)
        # b1_ref: (1, H1)      f32
        # w2_ref: (H1, H2P)    bf16  pre-transposed, lane-padded fc2 weight
        # b2_ref: (1, H2P)     f32
        # o_ref : (nb, H2P)    f32   time-averaged output spikes
        # s1_ref: (T*nb, H1)   f32   scratch holding layer-1 spike train
        H1 = w1_ref.shape[1]
        H2P = w2_ref.shape[1]

        # ---- fc1 for ALL timesteps in one MXU matmul -----------------------
        h1_all = jnp.dot(x_ref[...], w1_ref[...],
                         preferred_element_type=jnp.float32) + b1_ref[...]

        # ---- LIF layer 1 recurrence over T (cheap VPU ops, unrolled) -------
        keep1 = jnp.zeros((nb, H1), jnp.float32)     # u * (1 - o) of prev step
        for t in range(T):
            u1 = TAU * keep1 + h1_all[t * nb:(t + 1) * nb, :]
            spk1 = u1 > VTH
            s1_ref[t * nb:(t + 1) * nb, :] = jnp.where(spk1, 1.0, 0.0)
            keep1 = jnp.where(spk1, 0.0, u1)

        # ---- fc2 for ALL timesteps in one MXU matmul ------------------------
        h2_all = jnp.dot(s1_ref[...].astype(jnp.bfloat16), w2_ref[...],
                         preferred_element_type=jnp.float32) + b2_ref[...]

        # ---- LIF layer 2 recurrence + time average --------------------------
        keep2 = jnp.zeros((nb, H2P), jnp.float32)
        acc = jnp.zeros((nb, H2P), jnp.float32)
        for t in range(T):
            u2 = TAU * keep2 + h2_all[t * nb:(t + 1) * nb, :]
            spk2 = u2 > VTH
            acc = acc + jnp.where(spk2, 1.0, 0.0)
            keep2 = jnp.where(spk2, 0.0, u2)

        o_ref[...] = acc * (1.0 / T)

    return kernel


# ----------------------------------------------------------------------------
# Parameters: deterministic PyTorch-style init, stored pre-transposed / padded
# / bf16 once at init time (no per-forward transpose or pad of weights).
# ----------------------------------------------------------------------------
def init_params(key):
    ks = jax.random.split(key, 4)

    def u(k, shape, fan_in):
        bound = 1.0 / jnp.sqrt(float(fan_in))
        return jax.random.uniform(k, shape, jnp.float32, -bound, bound)

    w1 = u(ks[0], (FC1_IN, FC1_OUT), FC1_IN)            # (in, out)
    b1 = u(ks[1], (FC1_OUT,), FC1_IN)
    w2 = u(ks[2], (FC1_OUT, NUM_CLASSES), FC1_OUT)      # (in, out)
    b2 = u(ks[3], (NUM_CLASSES,), FC1_OUT)

    # Lane-pad fc2 to 128 outputs: padded units have zero weight & bias, so
    # their membrane stays at 0 < VTH and they never spike; sliced off later.
    w2p = jnp.pad(w2, ((0, 0), (0, H2_PAD - NUM_CLASSES)))
    b2p = jnp.pad(b2, (0, H2_PAD - NUM_CLASSES))

    return {
        "w1": w1.astype(jnp.bfloat16),
        "b1": b1.reshape(1, FC1_OUT).astype(jnp.float32),
        "w2": w2p.astype(jnp.bfloat16),
        "b2": b2p.reshape(1, H2_PAD).astype(jnp.float32),
    }


# ----------------------------------------------------------------------------
# Forward pass.
# ----------------------------------------------------------------------------
def nmnist_mlp2_forward(params, x_nchwt):
    """x_nchwt: (N, C, H, W, T) PyTorch layout with C*H*W == 2312 -> (N, 10)."""
    N, C, H, W, T = x_nchwt.shape
    F = C * H * W
    assert F == FC1_IN, "fc1 expects 2312 input features (2x34x34)"

    H1 = params["w1"].shape[1]
    H2P = params["w2"].shape[1]

    # Batch block size: at least one sublane group (8), grow until the fused
    # matmul slab has ~512 rows (M = T*nb) so bigger batches fill the MXU.
    nb = min(_round_up(N, 8), max(8, (512 // max(T, 1)) // 8 * 8))
    Np = _round_up(N, nb)
    nblk = Np // nb

    # PyTorch x.view(N, -1, T): flatten (C,H,W) row-major, T innermost.
    xt = x_nchwt.reshape(N, F, T).astype(jnp.bfloat16)
    if Np != N:
        # Padded batch rows only ever see bias activity; sliced away below.
        xt = jnp.pad(xt, ((0, Np - N), (0, 0), (0, 0)))
    # Rearrange to (nblk * T*nb, F): each batch block is one contiguous,
    # t-major slab -> a single clean (T*nb, F) matmul operand per grid step.
    x2 = jnp.transpose(xt.reshape(nblk, nb, F, T), (0, 3, 1, 2)).reshape(
        nblk * T * nb, F)

    flops = 2 * T * Np * (F * H1 + H1 * H2P)
    bytes_accessed = (x2.size * 2            # x (bf16)
                      + F * H1 * 2           # w1 (bf16)
                      + H1 * H2P * 2         # w2 (bf16)
                      + (H1 + H2P) * 4       # biases (f32)
                      + Np * H2P * 4)        # output (f32)

    out = pl.pallas_call(
        _make_kernel(T, nb),
        out_shape=jax.ShapeDtypeStruct((Np, H2P), jnp.float32),
        grid_spec=pltpu.PrefetchScalarGridSpec(
            num_scalar_prefetch=0,
            grid=(nblk,),
            in_specs=[
                pl.BlockSpec((T * nb, F), lambda i: (i, 0)),   # x slab
                pl.BlockSpec((F, H1), lambda i: (0, 0)),       # w1 (resident)
                pl.BlockSpec((1, H1), lambda i: (0, 0)),       # b1
                pl.BlockSpec((H1, H2P), lambda i: (0, 0)),     # w2 (resident)
                pl.BlockSpec((1, H2P), lambda i: (0, 0)),      # b2
            ],
            out_specs=pl.BlockSpec((nb, H2P), lambda i: (i, 0)),
            scratch_shapes=[pltpu.VMEM((T * nb, H1), jnp.float32)],
        ),
        compiler_params=pltpu.CompilerParams(
            dimension_semantics=("parallel",),   # batch blocks split across TCs
            vmem_limit_bytes=32 * 1024 * 1024,
        ),
        cost_estimate=pl.CostEstimate(
            flops=int(flops), transcendentals=0,
            bytes_accessed=int(bytes_accessed)),
    )(x2, params["w1"], params["b1"], params["w2"], params["b2"])

    return out[:N, :NUM_CLASSES]


if __name__ == "__main__":
    key = jax.random.PRNGKey(0)
    pkey, xkey = jax.random.split(key)
    params = init_params(pkey)

    # Shapes implied by the module: fc1 hardcodes 2312 = 2*34*34 (N-MNIST);
    # keep batch and time steps small.
    N, C, H, W, T = 2, 2, 34, 34, 8
    x = (jax.random.uniform(xkey, (N, C, H, W, T)) < 0.2).astype(jnp.float32)

    fwd = jax.jit(nmnist_mlp2_forward)
    out = jax.block_until_ready(fwd(params, x))
    assert out.shape == (N, NUM_CLASSES) and out.dtype == jnp.float32
    assert bool(jnp.all(jnp.isfinite(out)))
    print("KERNEL_OK")
</pallas_src>

<mosaic_0001>
module attributes {stable_mosaic.version = 11 : i64} {
  func.func @kernel(%arg0: i32, %arg1: memref<64x2312xbf16, #tpu.memory_space<vmem>>, %arg2: memref<2312x512xbf16, #tpu.memory_space<vmem>>, %arg3: memref<1x512xf32, #tpu.memory_space<vmem>>, %arg4: memref<512x128xbf16, #tpu.memory_space<vmem>>, %arg5: memref<1x128xf32, #tpu.memory_space<vmem>>, %arg6: memref<8x128xf32, #tpu.memory_space<vmem>>, %arg7: memref<64x512xf32, #tpu.memory_space<vmem>>) attributes {dimension_semantics = [#tpu.dimension_semantics<parallel>], iteration_bounds = array<i64: 1>, scalar_prefetch = 0 : i64, scratch_operands = 1 : i64, tpu.core_type = #tpu.core_type<tc>, window_params = [{transform_indices = @transform_0, window_bounds = array<i64: 64, 2312>}, {pipeline_mode = #tpu.pipeline_mode<synchronous>, transform_indices = @transform_1, window_bounds = array<i64: 2312, 512>}, {pipeline_mode = #tpu.pipeline_mode<synchronous>, transform_indices = @transform_2, window_bounds = array<i64: 1, 512>}, {pipeline_mode = #tpu.pipeline_mode<synchronous>, transform_indices = @transform_3, window_bounds = array<i64: 512, 128>}, {pipeline_mode = #tpu.pipeline_mode<synchronous>, transform_indices = @transform_4, window_bounds = array<i64: 1, 128>}, {transform_indices = @transform_5, window_bounds = array<i64: 8, 128>}]} {
    %c0 = arith.constant 0 : index
    %c0_0 = arith.constant 0 : index
    %0 = vector.load %arg1[%c0, %c0_0] : memref<64x2312xbf16, #tpu.memory_space<vmem>>, vector<64x2312xbf16>
    %c0_1 = arith.constant 0 : index
    %c0_2 = arith.constant 0 : index
    %1 = vector.load %arg2[%c0_1, %c0_2] : memref<2312x512xbf16, #tpu.memory_space<vmem>>, vector<2312x512xbf16>
    %cst = arith.constant dense<0.000000e+00> : vector<64x512xf32>
    %2 = tpu.matmul %0, %1, %cst {dimension_numbers = #tpu.dot_dimension_numbers<[1], [0], [0], [1], [0, 0, 1, 1], [], []>} : vector<64x2312xbf16>, vector<2312x512xbf16>, vector<64x512xf32> -> vector<64x512xf32>
    %c0_3 = arith.constant 0 : index
    %c0_4 = arith.constant 0 : index
    %3 = vector.load %arg3[%c0_3, %c0_4] : memref<1x512xf32, #tpu.memory_space<vmem>>, vector<1x512xf32>
    %4 = vector.broadcast %3 : vector<1x512xf32> to vector<64x512xf32>
    %5 = arith.addf %2, %4 : vector<64x512xf32>
    %cst_5 = arith.constant 0.000000e+00 : f32
    %6 = vector.broadcast %cst_5 : f32 to vector<8x512xf32>
    %cst_6 = arith.constant 3.000000e-01 : f32
    %7 = vector.broadcast %cst_6 : f32 to vector<8x512xf32>
    %8 = arith.mulf %7, %6 : vector<8x512xf32>
    %9 = vector.extract_strided_slice %5 {offsets = [0, 0], sizes = [8, 512], strides = [1, 1]} : vector<64x512xf32> to vector<8x512xf32>
    %10 = arith.addf %8, %9 : vector<8x512xf32>
    %cst_7 = arith.constant 3.000000e-01 : f32
    %11 = vector.broadcast %cst_7 : f32 to vector<8x512xf32>
    %12 = arith.cmpf ogt, %10, %11 : vector<8x512xf32>
    %cst_8 = arith.constant 1.000000e+00 : f32
    %cst_9 = arith.constant 0.000000e+00 : f32
    %13 = vector.broadcast %cst_8 : f32 to vector<8x512xf32>
    %14 = vector.broadcast %cst_9 : f32 to vector<8x512xf32>
    %15 = arith.select %12, %13, %14 : vector<8x512xi1>, vector<8x512xf32>
    %c0_10 = arith.constant 0 : index
    %c0_11 = arith.constant 0 : index
    %16 = vector.load %arg7[%c0_10, %c0_11] : memref<64x512xf32, #tpu.memory_space<vmem>>, vector<8x512xf32>
    tpu.vector_store %arg7[%c0_10, %c0_11], %15 {strides = array<i32>} : memref<64x512xf32, #tpu.memory_space<vmem>>, vector<8x512xf32>,
    %cst_12 = arith.constant 0.000000e+00 : f32
    %17 = vector.broadcast %cst_12 : f32 to vector<8x512xf32>
    %18 = arith.select %12, %17, %10 : vector<8x512xi1>, vector<8x512xf32>
    %cst_13 = arith.constant 3.000000e-01 : f32
    %19 = vector.broadcast %cst_13 : f32 to vector<8x512xf32>
    %20 = arith.mulf %19, %18 : vector<8x512xf32>
    %21 = vector.extract_strided_slice %5 {offsets = [8, 0], sizes = [8, 512], strides = [1, 1]} : vector<64x512xf32> to vector<8x512xf32>
    %22 = arith.addf %20, %21 : vector<8x512xf32>
    %cst_14 = arith.constant 3.000000e-01 : f32
    %23 = vector.broadcast %cst_14 : f32 to vector<8x512xf32>
    %24 = arith.cmpf ogt, %22, %23 : vector<8x512xf32>
    %cst_15 = arith.constant 1.000000e+00 : f32
    %cst_16 = arith.constant 0.000000e+00 : f32
    %25 = vector.broadcast %cst_15 : f32 to vector<8x512xf32>
    %26 = vector.broadcast %cst_16 : f32 to vector<8x512xf32>
    %27 = arith.select %24, %25, %26 : vector<8x512xi1>, vector<8x512xf32>
    %c8 = arith.constant 8 : index
    %c0_17 = arith.constant 0 : index
    %28 = vector.load %arg7[%c8, %c0_17] : memref<64x512xf32, #tpu.memory_space<vmem>>, vector<8x512xf32>
    tpu.vector_store %arg7[%c8, %c0_17], %27 {strides = array<i32>} : memref<64x512xf32, #tpu.memory_space<vmem>>, vector<8x512xf32>,
    %cst_18 = arith.constant 0.000000e+00 : f32
    %29 = vector.broadcast %cst_18 : f32 to vector<8x512xf32>
    %30 = arith.select %24, %29, %22 : vector<8x512xi1>, vector<8x512xf32>
    %cst_19 = arith.constant 3.000000e-01 : f32
    %31 = vector.broadcast %cst_19 : f32 to vector<8x512xf32>
    %32 = arith.mulf %31, %30 : vector<8x512xf32>
    %33 = vector.extract_strided_slice %5 {offsets = [16, 0], sizes = [8, 512], strides = [1, 1]} : vector<64x512xf32> to vector<8x512xf32>
    %34 = arith.addf %32, %33 : vector<8x512xf32>
    %cst_20 = arith.constant 3.000000e-01 : f32
    %35 = vector.broadcast %cst_20 : f32 to vector<8x512xf32>
    %36 = arith.cmpf ogt, %34, %35 : vector<8x512xf32>
    %cst_21 = arith.constant 1.000000e+00 : f32
    %cst_22 = arith.constant 0.000000e+00 : f32
    %37 = vector.broadcast %cst_21 : f32 to vector<8x512xf32>
    %38 = vector.broadcast %cst_22 : f32 to vector<8x512xf32>
    %39 = arith.select %36, %37, %38 : vector<8x512xi1>, vector<8x512xf32>
    %c16 = arith.constant 16 : index
    %c0_23 = arith.constant 0 : index
    %40 = vector.load %arg7[%c16, %c0_23] : memref<64x512xf32, #tpu.memory_space<vmem>>, vector<8x512xf32>
    tpu.vector_store %arg7[%c16, %c0_23], %39 {strides = array<i32>} : memref<64x512xf32, #tpu.memory_space<vmem>>, vector<8x512xf32>,
    %cst_24 = arith.constant 0.000000e+00 : f32
    %41 = vector.broadcast %cst_24 : f32 to vector<8x512xf32>
    %42 = arith.select %36, %41, %34 : vector<8x512xi1>, vector<8x512xf32>
    %cst_25 = arith.constant 3.000000e-01 : f32
    %43 = vector.broadcast %cst_25 : f32 to vector<8x512xf32>
    %44 = arith.mulf %43, %42 : vector<8x512xf32>
    %45 = vector.extract_strided_slice %5 {offsets = [24, 0], sizes = [8, 512], strides = [1, 1]} : vector<64x512xf32> to vector<8x512xf32>
    %46 = arith.addf %44, %45 : vector<8x512xf32>
    %cst_26 = arith.constant 3.000000e-01 : f32
    %47 = vector.broadcast %cst_26 : f32 to vector<8x512xf32>
    %48 = arith.cmpf ogt, %46, %47 : vector<8x512xf32>
    %cst_27 = arith.constant 1.000000e+00 : f32
    %cst_28 = arith.constant 0.000000e+00 : f32
    %49 = vector.broadcast %cst_27 : f32 to vector<8x512xf32>
    %50 = vector.broadcast %cst_28 : f32 to vector<8x512xf32>
    %51 = arith.select %48, %49, %50 : vector<8x512xi1>, vector<8x512xf32>
    %c24 = arith.constant 24 : index
    %c0_29 = arith.constant 0 : index
    %52 = vector.load %arg7[%c24, %c0_29] : memref<64x512xf32, #tpu.memory_space<vmem>>, vector<8x512xf32>
    tpu.vector_store %arg7[%c24, %c0_29], %51 {strides = array<i32>} : memref<64x512xf32, #tpu.memory_space<vmem>>, vector<8x512xf32>,
    %cst_30 = arith.constant 0.000000e+00 : f32
    %53 = vector.broadcast %cst_30 : f32 to vector<8x512xf32>
    %54 = arith.select %48, %53, %46 : vector<8x512xi1>, vector<8x512xf32>
    %cst_31 = arith.constant 3.000000e-01 : f32
    %55 = vector.broadcast %cst_31 : f32 to vector<8x512xf32>
    %56 = arith.mulf %55, %54 : vector<8x512xf32>
    %57 = vector.extract_strided_slice %5 {offsets = [32, 0], sizes = [8, 512], strides = [1, 1]} : vector<64x512xf32> to vector<8x512xf32>
    %58 = arith.addf %56, %57 : vector<8x512xf32>
    %cst_32 = arith.constant 3.000000e-01 : f32
    %59 = vector.broadcast %cst_32 : f32 to vector<8x512xf32>
    %60 = arith.cmpf ogt, %58, %59 : vector<8x512xf32>
    %cst_33 = arith.constant 1.000000e+00 : f32
    %cst_34 = arith.constant 0.000000e+00 : f32
    %61 = vector.broadcast %cst_33 : f32 to vector<8x512xf32>
    %62 = vector.broadcast %cst_34 : f32 to vector<8x512xf32>
    %63 = arith.select %60, %61, %62 : vector<8x512xi1>, vector<8x512xf32>
    %c32 = arith.constant 32 : index
    %c0_35 = arith.constant 0 : index
    %64 = vector.load %arg7[%c32, %c0_35] : memref<64x512xf32, #tpu.memory_space<vmem>>, vector<8x512xf32>
    tpu.vector_store %arg7[%c32, %c0_35], %63 {strides = array<i32>} : memref<64x512xf32, #tpu.memory_space<vmem>>, vector<8x512xf32>,
    %cst_36 = arith.constant 0.000000e+00 : f32
    %65 = vector.broadcast %cst_36 : f32 to vector<8x512xf32>
    %66 = arith.select %60, %65, %58 : vector<8x512xi1>, vector<8x512xf32>
    %cst_37 = arith.constant 3.000000e-01 : f32
    %67 = vector.broadcast %cst_37 : f32 to vector<8x512xf32>
    %68 = arith.mulf %67, %66 : vector<8x512xf32>
    %69 = vector.extract_strided_slice %5 {offsets = [40, 0], sizes = [8, 512], strides = [1, 1]} : vector<64x512xf32> to vector<8x512xf32>
    %70 = arith.addf %68, %69 : vector<8x512xf32>
    %cst_38 = arith.constant 3.000000e-01 : f32
    %71 = vector.broadcast %cst_38 : f32 to vector<8x512xf32>
    %72 = arith.cmpf ogt, %70, %71 : vector<8x512xf32>
    %cst_39 = arith.constant 1.000000e+00 : f32
    %cst_40 = arith.constant 0.000000e+00 : f32
    %73 = vector.broadcast %cst_39 : f32 to vector<8x512xf32>
    %74 = vector.broadcast %cst_40 : f32 to vector<8x512xf32>
    %75 = arith.select %72, %73, %74 : vector<8x512xi1>, vector<8x512xf32>
    %c40 = arith.constant 40 : index
    %c0_41 = arith.constant 0 : index
    %76 = vector.load %arg7[%c40, %c0_41] : memref<64x512xf32, #tpu.memory_space<vmem>>, vector<8x512xf32>
    tpu.vector_store %arg7[%c40, %c0_41], %75 {strides = array<i32>} : memref<64x512xf32, #tpu.memory_space<vmem>>, vector<8x512xf32>,
    %cst_42 = arith.constant 0.000000e+00 : f32
    %77 = vector.broadcast %cst_42 : f32 to vector<8x512xf32>
    %78 = arith.select %72, %77, %70 : vector<8x512xi1>, vector<8x512xf32>
    %cst_43 = arith.constant 3.000000e-01 : f32
    %79 = vector.broadcast %cst_43 : f32 to vector<8x512xf32>
    %80 = arith.mulf %79, %78 : vector<8x512xf32>
    %81 = vector.extract_strided_slice %5 {offsets = [48, 0], sizes = [8, 512], strides = [1, 1]} : vector<64x512xf32> to vector<8x512xf32>
    %82 = arith.addf %80, %81 : vector<8x512xf32>
    %cst_44 = arith.constant 3.000000e-01 : f32
    %83 = vector.broadcast %cst_44 : f32 to vector<8x512xf32>
    %84 = arith.cmpf ogt, %82, %83 : vector<8x512xf32>
    %cst_45 = arith.constant 1.000000e+00 : f32
    %cst_46 = arith.constant 0.000000e+00 : f32
    %85 = vector.broadcast %cst_45 : f32 to vector<8x512xf32>
    %86 = vector.broadcast %cst_46 : f32 to vector<8x512xf32>
    %87 = arith.select %84, %85, %86 : vector<8x512xi1>, vector<8x512xf32>
    %c48 = arith.constant 48 : index
    %c0_47 = arith.constant 0 : index
    %88 = vector.load %arg7[%c48, %c0_47] : memref<64x512xf32, #tpu.memory_space<vmem>>, vector<8x512xf32>
    tpu.vector_store %arg7[%c48, %c0_47], %87 {strides = array<i32>} : memref<64x512xf32, #tpu.memory_space<vmem>>, vector<8x512xf32>,
    %cst_48 = arith.constant 0.000000e+00 : f32
    %89 = vector.broadcast %cst_48 : f32 to vector<8x512xf32>
    %90 = arith.select %84, %89, %82 : vector<8x512xi1>, vector<8x512xf32>
    %cst_49 = arith.constant 3.000000e-01 : f32
    %91 = vector.broadcast %cst_49 : f32 to vector<8x512xf32>
    %92 = arith.mulf %91, %90 : vector<8x512xf32>
    %93 = vector.extract_strided_slice %5 {offsets = [56, 0], sizes = [8, 512], strides = [1, 1]} : vector<64x512xf32> to vector<8x512xf32>
    %94 = arith.addf %92, %93 : vector<8x512xf32>
    %cst_50 = arith.constant 3.000000e-01 : f32
    %95 = vector.broadcast %cst_50 : f32 to vector<8x512xf32>
    %96 = arith.cmpf ogt, %94, %95 : vector<8x512xf32>
    %cst_51 = arith.constant 1.000000e+00 : f32
    %cst_52 = arith.constant 0.000000e+00 : f32
    %97 = vector.broadcast %cst_51 : f32 to vector<8x512xf32>
    %98 = vector.broadcast %cst_52 : f32 to vector<8x512xf32>
    %99 = arith.select %96, %97, %98 : vector<8x512xi1>, vector<8x512xf32>
    %c56 = arith.constant 56 : index
    %c0_53 = arith.constant 0 : index
    %100 = vector.load %arg7[%c56, %c0_53] : memref<64x512xf32, #tpu.memory_space<vmem>>, vector<8x512xf32>
    tpu.vector_store %arg7[%c56, %c0_53], %99 {strides = array<i32>} : memref<64x512xf32, #tpu.memory_space<vmem>>, vector<8x512xf32>,
    %c0_54 = arith.constant 0 : index
    %c0_55 = arith.constant 0 : index
    %101 = vector.load %arg7[%c0_54, %c0_55] : memref<64x512xf32, #tpu.memory_space<vmem>>, vector<64x512xf32>
    %102 = arith.truncf %101 : vector<64x512xf32> to vector<64x512xbf16>
    %c0_56 = arith.constant 0 : index
    %c0_57 = arith.constant 0 : index
    %103 = vector.load %arg4[%c0_56, %c0_57] : memref<512x128xbf16, #tpu.memory_space<vmem>>, vector<512x128xbf16>
    %cst_58 = arith.constant dense<0.000000e+00> : vector<64x128xf32>
    %104 = tpu.matmul %102, %103, %cst_58 {dimension_numbers = #tpu.dot_dimension_numbers<[1], [0], [0], [1], [0, 0, 1, 1], [], []>} : vector<64x512xbf16>, vector<512x128xbf16>, vector<64x128xf32> -> vector<64x128xf32>
    %c0_59 = arith.constant 0 : index
    %c0_60 = arith.constant 0 : index
    %105 = vector.load %arg5[%c0_59, %c0_60] : memref<1x128xf32, #tpu.memory_space<vmem>>, vector<1x128xf32>
    %106 = vector.broadcast %105 : vector<1x128xf32> to vector<64x128xf32>
    %107 = arith.addf %104, %106 : vector<64x128xf32>
    %cst_61 = arith.constant 0.000000e+00 : f32
    %108 = vector.broadcast %cst_61 : f32 to vector<8x128xf32>
    %cst_62 = arith.constant 0.000000e+00 : f32
    %109 = vector.broadcast %cst_62 : f32 to vector<8x128xf32>
    %cst_63 = arith.constant 3.000000e-01 : f32
    %110 = vector.broadcast %cst_63 : f32 to vector<8x128xf32>
    %111 = arith.mulf %110, %108 : vector<8x128xf32>
    %112 = vector.extract_strided_slice %107 {offsets = [0, 0], sizes = [8, 128], strides = [1, 1]} : vector<64x128xf32> to vector<8x128xf32>
    %113 = arith.addf %111, %112 : vector<8x128xf32>
    %cst_64 = arith.constant 3.000000e-01 : f32
    %114 = vector.broadcast %cst_64 : f32 to vector<8x128xf32>
    %115 = arith.cmpf ogt, %113, %114 : vector<8x128xf32>
    %cst_65 = arith.constant 1.000000e+00 : f32
    %cst_66 = arith.constant 0.000000e+00 : f32
    %116 = vector.broadcast %cst_65 : f32 to vector<8x128xf32>
    %117 = vector.broadcast %cst_66 : f32 to vector<8x128xf32>
    %118 = arith.select %115, %116, %117 : vector<8x128xi1>, vector<8x128xf32>
    %119 = arith.addf %109, %118 : vector<8x128xf32>
    %cst_67 = arith.constant 0.000000e+00 : f32
    %120 = vector.broadcast %cst_67 : f32 to vector<8x128xf32>
    %121 = arith.select %115, %120, %113 : vector<8x128xi1>, vector<8x128xf32>
    %cst_68 = arith.constant 3.000000e-01 : f32
    %122 = vector.broadcast %cst_68 : f32 to vector<8x128xf32>
    %123 = arith.mulf %122, %121 : vector<8x128xf32>
    %124 = vector.extract_strided_slice %107 {offsets = [8, 0], sizes = [8, 128], strides = [1, 1]} : vector<64x128xf32> to vector<8x128xf32>
    %125 = arith.addf %123, %124 : vector<8x128xf32>
    %cst_69 = arith.constant 3.000000e-01 : f32
    %126 = vector.broadcast %cst_69 : f32 to vector<8x128xf32>
    %127 = arith.cmpf ogt, %125, %126 : vector<8x128xf32>
    %cst_70 = arith.constant 1.000000e+00 : f32
    %cst_71 = arith.constant 0.000000e+00 : f32
    %128 = vector.broadcast %cst_70 : f32 to vector<8x128xf32>
    %129 = vector.broadcast %cst_71 : f32 to vector<8x128xf32>
    %130 = arith.select %127, %128, %129 : vector<8x128xi1>, vector<8x128xf32>
    %131 = arith.addf %119, %130 : vector<8x128xf32>
    %cst_72 = arith.constant 0.000000e+00 : f32
    %132 = vector.broadcast %cst_72 : f32 to vector<8x128xf32>
    %133 = arith.select %127, %132, %125 : vector<8x128xi1>, vector<8x128xf32>
    %cst_73 = arith.constant 3.000000e-01 : f32
    %134 = vector.broadcast %cst_73 : f32 to vector<8x128xf32>
    %135 = arith.mulf %134, %133 : vector<8x128xf32>
    %136 = vector.extract_strided_slice %107 {offsets = [16, 0], sizes = [8, 128], strides = [1, 1]} : vector<64x128xf32> to vector<8x128xf32>
    %137 = arith.addf %135, %136 : vector<8x128xf32>
    %cst_74 = arith.constant 3.000000e-01 : f32
    %138 = vector.broadcast %cst_74 : f32 to vector<8x128xf32>
    %139 = arith.cmpf ogt, %137, %138 : vector<8x128xf32>
    %cst_75 = arith.constant 1.000000e+00 : f32
    %cst_76 = arith.constant 0.000000e+00 : f32
    %140 = vector.broadcast %cst_75 : f32 to vector<8x128xf32>
    %141 = vector.broadcast %cst_76 : f32 to vector<8x128xf32>
    %142 = arith.select %139, %140, %141 : vector<8x128xi1>, vector<8x128xf32>
    %143 = arith.addf %131, %142 : vector<8x128xf32>
    %cst_77 = arith.constant 0.000000e+00 : f32
    %144 = vector.broadcast %cst_77 : f32 to vector<8x128xf32>
    %145 = arith.select %139, %144, %137 : vector<8x128xi1>, vector<8x128xf32>
    %cst_78 = arith.constant 3.000000e-01 : f32
    %146 = vector.broadcast %cst_78 : f32 to vector<8x128xf32>
    %147 = arith.mulf %146, %145 : vector<8x128xf32>
    %148 = vector.extract_strided_slice %107 {offsets = [24, 0], sizes = [8, 128], strides = [1, 1]} : vector<64x128xf32> to vector<8x128xf32>
    %149 = arith.addf %147, %148 : vector<8x128xf32>
    %cst_79 = arith.constant 3.000000e-01 : f32
    %150 = vector.broadcast %cst_79 : f32 to vector<8x128xf32>
    %151 = arith.cmpf ogt, %149, %150 : vector<8x128xf32>
    %cst_80 = arith.constant 1.000000e+00 : f32
    %cst_81 = arith.constant 0.000000e+00 : f32
    %152 = vector.broadcast %cst_80 : f32 to vector<8x128xf32>
    %153 = vector.broadcast %cst_81 : f32 to vector<8x128xf32>
    %154 = arith.select %151, %152, %153 : vector<8x128xi1>, vector<8x128xf32>
    %155 = arith.addf %143, %154 : vector<8x128xf32>
    %cst_82 = arith.constant 0.000000e+00 : f32
    %156 = vector.broadcast %cst_82 : f32 to vector<8x128xf32>
    %157 = arith.select %151, %156, %149 : vector<8x128xi1>, vector<8x128xf32>
    %cst_83 = arith.constant 3.000000e-01 : f32
    %158 = vector.broadcast %cst_83 : f32 to vector<8x128xf32>
    %159 = arith.mulf %158, %157 : vector<8x128xf32>
    %160 = vector.extract_strided_slice %107 {offsets = [32, 0], sizes = [8, 128], strides = [1, 1]} : vector<64x128xf32> to vector<8x128xf32>
    %161 = arith.addf %159, %160 : vector<8x128xf32>
    %cst_84 = arith.constant 3.000000e-01 : f32
    %162 = vector.broadcast %cst_84 : f32 to vector<8x128xf32>
    %163 = arith.cmpf ogt, %161, %162 : vector<8x128xf32>
    %cst_85 = arith.constant 1.000000e+00 : f32
    %cst_86 = arith.constant 0.000000e+00 : f32
    %164 = vector.broadcast %cst_85 : f32 to vector<8x128xf32>
    %165 = vector.broadcast %cst_86 : f32 to vector<8x128xf32>
    %166 = arith.select %163, %164, %165 : vector<8x128xi1>, vector<8x128xf32>
    %167 = arith.addf %155, %166 : vector<8x128xf32>
    %cst_87 = arith.constant 0.000000e+00 : f32
    %168 = vector.broadcast %cst_87 : f32 to vector<8x128xf32>
    %169 = arith.select %163, %168, %161 : vector<8x128xi1>, vector<8x128xf32>
    %cst_88 = arith.constant 3.000000e-01 : f32
    %170 = vector.broadcast %cst_88 : f32 to vector<8x128xf32>
    %171 = arith.mulf %170, %169 : vector<8x128xf32>
    %172 = vector.extract_strided_slice %107 {offsets = [40, 0], sizes = [8, 128], strides = [1, 1]} : vector<64x128xf32> to vector<8x128xf32>
    %173 = arith.addf %171, %172 : vector<8x128xf32>
    %cst_89 = arith.constant 3.000000e-01 : f32
    %174 = vector.broadcast %cst_89 : f32 to vector<8x128xf32>
    %175 = arith.cmpf ogt, %173, %174 : vector<8x128xf32>
    %cst_90 = arith.constant 1.000000e+00 : f32
    %cst_91 = arith.constant 0.000000e+00 : f32
    %176 = vector.broadcast %cst_90 : f32 to vector<8x128xf32>
    %177 = vector.broadcast %cst_91 : f32 to vector<8x128xf32>
    %178 = arith.select %175, %176, %177 : vector<8x128xi1>, vector<8x128xf32>
    %179 = arith.addf %167, %178 : vector<8x128xf32>
    %cst_92 = arith.constant 0.000000e+00 : f32
    %180 = vector.broadcast %cst_92 : f32 to vector<8x128xf32>
    %181 = arith.select %175, %180, %173 : vector<8x128xi1>, vector<8x128xf32>
    %cst_93 = arith.constant 3.000000e-01 : f32
    %182 = vector.broadcast %cst_93 : f32 to vector<8x128xf32>
    %183 = arith.mulf %182, %181 : vector<8x128xf32>
    %184 = vector.extract_strided_slice %107 {offsets = [48, 0], sizes = [8, 128], strides = [1, 1]} : vector<64x128xf32> to vector<8x128xf32>
    %185 = arith.addf %183, %184 : vector<8x128xf32>
    %cst_94 = arith.constant 3.000000e-01 : f32
    %186 = vector.broadcast %cst_94 : f32 to vector<8x128xf32>
    %187 = arith.cmpf ogt, %185, %186 : vector<8x128xf32>
    %cst_95 = arith.constant 1.000000e+00 : f32
    %cst_96 = arith.constant 0.000000e+00 : f32
    %188 = vector.broadcast %cst_95 : f32 to vector<8x128xf32>
    %189 = vector.broadcast %cst_96 : f32 to vector<8x128xf32>
    %190 = arith.select %187, %188, %189 : vector<8x128xi1>, vector<8x128xf32>
    %191 = arith.addf %179, %190 : vector<8x128xf32>
    %cst_97 = arith.constant 0.000000e+00 : f32
    %192 = vector.broadcast %cst_97 : f32 to vector<8x128xf32>
    %193 = arith.select %187, %192, %185 : vector<8x128xi1>, vector<8x128xf32>
    %cst_98 = arith.constant 3.000000e-01 : f32
    %194 = vector.broadcast %cst_98 : f32 to vector<8x128xf32>
    %195 = arith.mulf %194, %193 : vector<8x128xf32>
    %196 = vector.extract_strided_slice %107 {offsets = [56, 0], sizes = [8, 128], strides = [1, 1]} : vector<64x128xf32> to vector<8x128xf32>
    %197 = arith.addf %195, %196 : vector<8x128xf32>
    %cst_99 = arith.constant 3.000000e-01 : f32
    %198 = vector.broadcast %cst_99 : f32 to vector<8x128xf32>
    %199 = arith.cmpf ogt, %197, %198 : vector<8x128xf32>
    %cst_100 = arith.constant 1.000000e+00 : f32
    %cst_101 = arith.constant 0.000000e+00 : f32
    %200 = vector.broadcast %cst_100 : f32 to vector<8x128xf32>
    %201 = vector.broadcast %cst_101 : f32 to vector<8x128xf32>
    %202 = arith.select %199, %200, %201 : vector<8x128xi1>, vector<8x128xf32>
    %203 = arith.addf %191, %202 : vector<8x128xf32>
    %cst_102 = arith.constant 1.250000e-01 : f32
    %204 = vector.broadcast %cst_102 : f32 to vector<8x128xf32>
    %205 = arith.mulf %203, %204 : vector<8x128xf32>
    %c0_103 = arith.constant 0 : index
    %c0_104 = arith.constant 0 : index
    %206 = vector.load %arg6[%c0_103, %c0_104] : memref<8x128xf32, #tpu.memory_space<vmem>>, vector<8x128xf32>
    tpu.vector_store %arg6[%c0_103, %c0_104], %205 {strides = array<i32>} : memref<8x128xf32, #tpu.memory_space<vmem>>, vector<8x128xf32>,
    return
  }
  func.func @transform_0(%arg0: i32) -> (i32, i32) {
    %c0_i32 = arith.constant 0 : i32
    %c0_i32_0 = arith.constant 0 : i32
    return %arg0, %c0_i32 : i32, i32
  }
  func.func @transform_1(%arg0: i32) -> (i32, i32) {
    %c0_i32 = arith.constant 0 : i32
    %c0_i32_0 = arith.constant 0 : i32
    %c0_i32_1 = arith.constant 0 : i32
    return %c0_i32, %c0_i32_0 : i32, i32
  }
  func.func @transform_2(%arg0: i32) -> (i32, i32) {
    %c0_i32 = arith.constant 0 : i32
    %c0_i32_0 = arith.constant 0 : i32
    %c0_i32_1 = arith.constant 0 : i32
    return %c0_i32, %c0_i32_0 : i32, i32
  }
  func.func @transform_3(%arg0: i32) -> (i32, i32) {
    %c0_i32 = arith.constant 0 : i32
    %c0_i32_0 = arith.constant 0 : i32
    %c0_i32_1 = arith.constant 0 : i32
    return %c0_i32, %c0_i32_0 : i32, i32
  }
  func.func @transform_4(%arg0: i32) -> (i32, i32) {
    %c0_i32 = arith.constant 0 : i32
    %c0_i32_0 = arith.constant 0 : i32
    %c0_i32_1 = arith.constant 0 : i32
    return %c0_i32, %c0_i32_0 : i32, i32
  }
  func.func @transform_5(%arg0: i32) -> (i32, i32) {
    %c0_i32 = arith.constant 0 : i32
    %c0_i32_0 = arith.constant 0 : i32
    return %arg0, %c0_i32 : i32, i32
  }
}

</mosaic_0001>

<llo_original>
// kernel: nmnist_mlp2_forward.1
$region0: #{nmnist_mlp2_forward.1}
  #allocation0 [shape = 'u32[]', space=smem, size = 0x4, offset = 0x4, fixed_abs, tag = 'smem constant byte address 0x4 - core index']
  #allocation1 [shape = 'u32[144,128]{1,0:T(1,128)}', space=vmem, size = 0x12000, scoped, tag = 'internal scratch']
  #allocation2 [shape = 'f32[64,512]{1,0:T(8,128)}', space=vmem, size = 0x20000, scoped, tag = 'scratch operand']
  %s0 = inlined_call_operand.vmem [shape: bf16[64,2312], index: 0, kind: input, shape index: {}]
  %s1 = inlined_call_operand.vmem [shape: bf16[2312,512], index: 1, kind: input, shape index: {}]
  %s2 = inlined_call_operand.vmem [shape: f32[1,512], index: 2, kind: input, shape index: {}]
  %s3 = inlined_call_operand.vmem [shape: bf16[512,128], index: 3, kind: input, shape index: {}]
  %s4 = inlined_call_operand.vmem [shape: f32[1,128], index: 4, kind: input, shape index: {}]
  %s5 = inlined_call_operand.vmem [shape: f32[8,128], index: 5, kind: output, shape index: {}]
  %s6 = sld [smem:[#allocation0]]
  $region30: #{nmnist_mlp2_forward.1} parent=0
    _
  %s8 = ssub.s32 1, %s6
  %s9 = scalar_select 0, %s8, %s6
  // Predicated region
  $region2: #{nmnist_mlp2_forward.1} parent=0 // pred_check
    _
  $region3: #{nmnist_mlp2_forward.1} parent=0 // pred_check_branch
    %11 = sbr.rel (0) target = $region5
  $region4: #{nmnist_mlp2_forward.1} parent=0 // pred_region
    _
  $region5: #{nmnist_mlp2_forward.1} parent=0 // pred_fallthru
    _
  // Predicated region
  $region6: #{nmnist_mlp2_forward.1} parent=0 // pred_check
    _
  $region7: #{nmnist_mlp2_forward.1} parent=0 // pred_check_branch
    %13 = sbr.rel (0) target = $region9
  $region8: #{nmnist_mlp2_forward.1} parent=0 // pred_region
    _
  $region9: #{nmnist_mlp2_forward.1} parent=0 // pred_fallthru
    _
  // Predicated region
  $region10: #{nmnist_mlp2_forward.1} parent=0 // pred_check
    _
  $region11: #{nmnist_mlp2_forward.1} parent=0 // pred_check_branch
    %15 = sbr.rel (0) target = $region13
  $region12: #{nmnist_mlp2_forward.1} parent=0 // pred_region
    _
  $region13: #{nmnist_mlp2_forward.1} parent=0 // pred_fallthru
    _
  // Predicated region
  $region14: #{nmnist_mlp2_forward.1} parent=0 // pred_check
    _
  $region15: #{nmnist_mlp2_forward.1} parent=0 // pred_check_branch
    %17 = sbr.rel (0) target = $region17
  $region16: #{nmnist_mlp2_forward.1} parent=0 // pred_region
    _
  $region17: #{nmnist_mlp2_forward.1} parent=0 // pred_fallthru
    _
  // Predicated region
  $region18: #{nmnist_mlp2_forward.1} parent=0 // pred_check
    _
  $region19: #{nmnist_mlp2_forward.1} parent=0 // pred_check_branch
    %19 = sbr.rel (0) target = $region21
  $region20: #{nmnist_mlp2_forward.1} parent=0 // pred_region
    _
  $region21: #{nmnist_mlp2_forward.1} parent=0 // pred_fallthru
    _
  %v21 = vld [vmem:[%s0] sm:$0xff]
  %v22 = vld [vmem:[%s0 + $0x8] sm:$0xff]
  %v23 = vld [vmem:[%s0 + $0x10] sm:$0xff]
  %v24 = vld [vmem:[%s0 + $0x18] sm:$0xff]
  %v25 = vld [vmem:[%s0 + $0x20] sm:$0xff]
  %v26 = vld [vmem:[%s0 + $0x28] sm:$0xff]
  %v27 = vld [vmem:[%s0 + $0x30] sm:$0xff]
  %v28 = vld [vmem:[%s0 + $0x38] sm:$0xff]
  %v29 = vld [vmem:[%s0 + $0x40] sm:$0xff]
  %v30 = vld [vmem:[%s0 + $0x48] sm:$0xf]
  %v31 = vld [vmem:[%s0 + $0x4c] sm:$0xff]
  %v32 = vld [vmem:[%s0 + $0x54] sm:$0xff]
  %v33 = vld [vmem:[%s0 + $0x5c] sm:$0xff]
  %v34 = vld [vmem:[%s0 + $0x64] sm:$0xff]
  %v35 = vld [vmem:[%s0 + $0x6c] sm:$0xff]
  %v36 = vld [vmem:[%s0 + $0x74] sm:$0xff]
  %v37 = vld [vmem:[%s0 + $0x7c] sm:$0xff]
  %v38 = vld [vmem:[%s0 + $0x84] sm:$0xff]
  %v39 = vld [vmem:[%s0 + $0x8c] sm:$0xff]
  %v40 = vld [vmem:[%s0 + $0x94] sm:$0xf]
  %v41 = vld [vmem:[%s0 + $0x98] sm:$0xff]
  %v42 = vld [vmem:[%s0 + $0xa0] sm:$0xff]
  %v43 = vld [vmem:[%s0 + $0xa8] sm:$0xff]
  %v44 = vld [vmem:[%s0 + $0xb0] sm:$0xff]
  %v45 = vld [vmem:[%s0 + $0xb8] sm:$0xff]
  %v46 = vld [vmem:[%s0 + $0xc0] sm:$0xff]
  %v47 = vld [vmem:[%s0 + $0xc8] sm:$0xff]
  %v48 = vld [vmem:[%s0 + $0xd0] sm:$0xff]
  %v49 = vld [vmem:[%s0 + $0xd8] sm:$0xff]
  %v50 = vld [vmem:[%s0 + $0xe0] sm:$0xf]
  %v51 = vld [vmem:[%s0 + $0xe4] sm:$0xff]
  %v52 = vld [vmem:[%s0 + $0xec] sm:$0xff]
  %v53 = vld [vmem:[%s0 + $0xf4] sm:$0xff]
  %v54 = vld [vmem:[%s0 + $0xfc] sm:$0xff]
  %v55 = vld [vmem:[%s0 + $0x104] sm:$0xff]
  %v56 = vld [vmem:[%s0 + $0x10c] sm:$0xff]
  %v57 = vld [vmem:[%s0 + $0x114] sm:$0xff]
  %v58 = vld [vmem:[%s0 + $0x11c] sm:$0xff]
  %v59 = vld [vmem:[%s0 + $0x124] sm:$0xff]
  %v60 = vld [vmem:[%s0 + $0x12c] sm:$0xf]
  %v61 = vld [vmem:[%s0 + $0x130] sm:$0xff]
  %v62 = vld [vmem:[%s0 + $0x138] sm:$0xff]
  %v63 = vld [vmem:[%s0 + $0x140] sm:$0xff]
  %v64 = vld [vmem:[%s0 + $0x148] sm:$0xff]
  %v65 = vld [vmem:[%s0 + $0x150] sm:$0xff]
  %v66 = vld [vmem:[%s0 + $0x158] sm:$0xff]
  %v67 = vld [vmem:[%s0 + $0x160] sm:$0xff]
  %v68 = vld [vmem:[%s0 + $0x168] sm:$0xff]
  %v69 = vld [vmem:[%s0 + $0x170] sm:$0xff]
  %v70 = vld [vmem:[%s0 + $0x178] sm:$0xf]
  %v71 = vld [vmem:[%s0 + $0x17c] sm:$0xff]
  %v72 = vld [vmem:[%s0 + $0x184] sm:$0xff]
  %v73 = vld [vmem:[%s0 + $0x18c] sm:$0xff]
  %v74 = vld [vmem:[%s0 + $0x194] sm:$0xff]
  %v75 = vld [vmem:[%s0 + $0x19c] sm:$0xff]
  %v76 = vld [vmem:[%s0 + $0x1a4] sm:$0xff]
  %v77 = vld [vmem:[%s0 + $0x1ac] sm:$0xff]
  %v78 = vld [vmem:[%s0 + $0x1b4] sm:$0xff]
  %v79 = vld [vmem:[%s0 + $0x1bc] sm:$0xff]
  %v80 = vld [vmem:[%s0 + $0x1c4] sm:$0xf]
  %v81 = vld [vmem:[%s0 + $0x1c8] sm:$0xff]
  %v82 = vld [vmem:[%s0 + $0x1d0] sm:$0xff]
  %v83 = vld [vmem:[%s0 + $0x1d8] sm:$0xff]
  %v84 = vld [vmem:[%s0 + $0x1e0] sm:$0xff]
  %v85 = vld [vmem:[%s0 + $0x1e8] sm:$0xff]
  %v86 = vld [vmem:[%s0 + $0x1f0] sm:$0xff]
  %v87 = vld [vmem:[%s0 + $0x1f8] sm:$0xff]
  %v88 = vld [vmem:[%s0 + $0x200] sm:$0xff]
  %v89 = vld [vmem:[%s0 + $0x208] sm:$0xff]
  %v90 = vld [vmem:[%s0 + $0x210] sm:$0xf]
  %v91 = vld [vmem:[%s0 + $0x214] sm:$0xff]
  %v92 = vld [vmem:[%s0 + $0x21c] sm:$0xff]
  %v93 = vld [vmem:[%s0 + $0x224] sm:$0xff]
  %v94 = vld [vmem:[%s0 + $0x22c] sm:$0xff]
  %v95 = vld [vmem:[%s0 + $0x234] sm:$0xff]
  %v96 = vld [vmem:[%s0 + $0x23c] sm:$0xff]
  %v97 = vld [vmem:[%s0 + $0x244] sm:$0xff]
  %v98 = vld [vmem:[%s0 + $0x24c] sm:$0xff]
  %v99 = vld [vmem:[%s0 + $0x254] sm:$0xff]
  %v100 = vld [vmem:[%s0 + $0x25c] sm:$0xf]
  %v101 = vld [vmem:[%s1] sm:$0xff]
  %v102 = vld [vmem:[%s1 + $0x8] sm:$0xff]
  %v103 = vld [vmem:[%s1 + $0x10] sm:$0xff]
  %v104 = vld [vmem:[%s1 + $0x18] sm:$0xff]
  %v105 = vld [vmem:[%s1 + $0x20] sm:$0xff]
  %v106 = vld [vmem:[%s1 + $0x28] sm:$0xff]
  %v107 = vld [vmem:[%s1 + $0x30] sm:$0xff]
  %v108 = vld [vmem:[%s1 + $0x38] sm:$0xff]
  %v109 = vld [vmem:[%s1 + $0x40] sm:$0xff]
  %v110 = vld [vmem:[%s1 + $0x48] sm:$0xff]
  %v111 = vld [vmem:[%s1 + $0x50] sm:$0xff]
  %v112 = vld [vmem:[%s1 + $0x58] sm:$0xff]
  %v113 = vld [vmem:[%s1 + $0x60] sm:$0xff]
  %v114 = vld [vmem:[%s1 + $0x68] sm:$0xff]
  %v115 = vld [vmem:[%s1 + $0x70] sm:$0xff]
  %v116 = vld [vmem:[%s1 + $0x78] sm:$0xff]
  %v117 = vld [vmem:[%s1 + $0x80] sm:$0xff]
  %v118 = vld [vmem:[%s1 + $0x88] sm:$0xff]
  %v119 = vld [vmem:[%s1 + $0x90] sm:$0xff]
  %v120 = vld [vmem:[%s1 + $0x98] sm:$0xff]
  %v121 = vld [vmem:[%s1 + $0xa0] sm:$0xff]
  %v122 = vld [vmem:[%s1 + $0xa8] sm:$0xff]
  %v123 = vld [vmem:[%s1 + $0xb0] sm:$0xff]
  %v124 = vld [vmem:[%s1 + $0xb8] sm:$0xff]
  %v125 = vld [vmem:[%s1 + $0xc0] sm:$0xff]
  %v126 = vld [vmem:[%s1 + $0xc8] sm:$0xff]
  %v127 = vld [vmem:[%s1 + $0xd0] sm:$0xff]
  %v128 = vld [vmem:[%s1 + $0xd8] sm:$0xff]
  %v129 = vld [vmem:[%s1 + $0xe0] sm:$0xff]
  %v130 = vld [vmem:[%s1 + $0xe8] sm:$0xff]
  %v131 = vld [vmem:[%s1 + $0xf0] sm:$0xff]
  %v132 = vld [vmem:[%s1 + $0xf8] sm:$0xff]
  %v133 = vld [vmem:[%s1 + $0x100] sm:$0xff]
  %v134 = vld [vmem:[%s1 + $0x108] sm:$0xff]
  %v135 = vld [vmem:[%s1 + $0x110] sm:$0xff]
  %v136 = vld [vmem:[%s1 + $0x118] sm:$0xff]
  %v137 = vld [vmem:[%s1 + $0x120] sm:$0xff]
  %v138 = vld [vmem:[%s1 + $0x128] sm:$0xff]
  %v139 = vld [vmem:[%s1 + $0x130] sm:$0xff]
  %v140 = vld [vmem:[%s1 + $0x138] sm:$0xff]
  %v141 = vld [vmem:[%s1 + $0x140] sm:$0xff]
  %v142 = vld [vmem:[%s1 + $0x148] sm:$0xff]
  %v143 = vld [vmem:[%s1 + $0x150] sm:$0xff]
  %v144 = vld [vmem:[%s1 + $0x158] sm:$0xff]
  %v145 = vld [vmem:[%s1 + $0x160] sm:$0xff]
  %v146 = vld [vmem:[%s1 + $0x168] sm:$0xff]
  %v147 = vld [vmem:[%s1 + $0x170] sm:$0xff]
  %v148 = vld [vmem:[%s1 + $0x178] sm:$0xff]
  %v149 = vld [vmem:[%s1 + $0x180] sm:$0xff]
  %v150 = vld [vmem:[%s1 + $0x188] sm:$0xff]
  %v151 = vld [vmem:[%s1 + $0x190] sm:$0xff]
  %v152 = vld [vmem:[%s1 + $0x198] sm:$0xff]
  %v153 = vld [vmem:[%s1 + $0x1a0] sm:$0xff]
  %v154 = vld [vmem:[%s1 + $0x1a8] sm:$0xff]
  %v155 = vld [vmem:[%s1 + $0x1b0] sm:$0xff]
  %v156 = vld [vmem:[%s1 + $0x1b8] sm:$0xff]
  %v157 = vld [vmem:[%s1 + $0x1c0] sm:$0xff]
  %v158 = vld [vmem:[%s1 + $0x1c8] sm:$0xff]
  %v159 = vld [vmem:[%s1 + $0x1d0] sm:$0xff]
  %v160 = vld [vmem:[%s1 + $0x1d8] sm:$0xff]
  %v161 = vld [vmem:[%s1 + $0x1e0] sm:$0xff]
  %v162 = vld [vmem:[%s1 + $0x1e8] sm:$0xff]
  %v163 = vld [vmem:[%s1 + $0x1f0] sm:$0xff]
  %v164 = vld [vmem:[%s1 + $0x1f8] sm:$0xff]
  %v165 = vld [vmem:[%s1 + $0x200] sm:$0xff]
  %v166 = vld [vmem:[%s1 + $0x208] sm:$0xff]
  %v167 = vld [vmem:[%s1 + $0x210] sm:$0xff]
  %v168 = vld [vmem:[%s1 + $0x218] sm:$0xff]
  %v169 = vld [vmem:[%s1 + $0x220] sm:$0xff]
  %v170 = vld [vmem:[%s1 + $0x228] sm:$0xff]
  %v171 = vld [vmem:[%s1 + $0x230] sm:$0xff]
  %v172 = vld [vmem:[%s1 + $0x238] sm:$0xff]
  %v173 = vld [vmem:[%s1 + $0x240] sm:$0xff]
  %v174 = vld [vmem:[%s1 + $0x248] sm:$0xff]
  %v175 = vld [vmem:[%s1 + $0x250] sm:$0xff]
  %v176 = vld [vmem:[%s1 + $0x258] sm:$0xff]
  %v177 = vld [vmem:[%s1 + $0x260] sm:$0xff]
  %v178 = vld [vmem:[%s1 + $0x268] sm:$0xff]
  %v179 = vld [vmem:[%s1 + $0x270] sm:$0xff]
  %v180 = vld [vmem:[%s1 + $0x278] sm:$0xff]
  %v181 = vld [vmem:[%s1 + $0x280] sm:$0xff]
  %v182 = vld [vmem:[%s1 + $0x288] sm:$0xff]
  %v183 = vld [vmem:[%s1 + $0x290] sm:$0xff]
  %v184 = vld [vmem:[%s1 + $0x298] sm:$0xff]
  %v185 = vld [vmem:[%s1 + $0x2a0] sm:$0xff]
  %v186 = vld [vmem:[%s1 + $0x2a8] sm:$0xff]
  %v187 = vld [vmem:[%s1 + $0x2b0] sm:$0xff]
  %v188 = vld [vmem:[%s1 + $0x2b8] sm:$0xff]
  %v189 = vld [vmem:[%s1 + $0x2c0] sm:$0xff]
  %v190 = vld [vmem:[%s1 + $0x2c8] sm:$0xff]
  %v191 = vld [vmem:[%s1 + $0x2d0] sm:$0xff]
  %v192 = vld [vmem:[%s1 + $0x2d8] sm:$0xff]
  %v193 = vld [vmem:[%s1 + $0x2e0] sm:$0xff]
  %v194 = vld [vmem:[%s1 + $0x2e8] sm:$0xff]
  %v195 = vld [vmem:[%s1 + $0x2f0] sm:$0xff]
  %v196 = vld [vmem:[%s1 + $0x2f8] sm:$0xff]
  %v197 = vld [vmem:[%s1 + $0x300] sm:$0xff]
  %v198 = vld [vmem:[%s1 + $0x308] sm:$0xff]
  %v199 = vld [vmem:[%s1 + $0x310] sm:$0xff]
  %v200 = vld [vmem:[%s1 + $0x318] sm:$0xff]
  %v201 = vld [vmem:[%s1 + $0x320] sm:$0xff]
  %v202 = vld [vmem:[%s1 + $0x328] sm:$0xff]
  %v203 = vld [vmem:[%s1 + $0x330] sm:$0xff]
  %v204 = vld [vmem:[%s1 + $0x338] sm:$0xff]
  %v205 = vld [vmem:[%s1 + $0x340] sm:$0xff]
  %v206 = vld [vmem:[%s1 + $0x348] sm:$0xff]
  %v207 = vld [vmem:[%s1 + $0x350] sm:$0xff]
  %v208 = vld [vmem:[%s1 + $0x358] sm:$0xff]
  %v209 = vld [vmem:[%s1 + $0x360] sm:$0xff]
  %v210 = vld [vmem:[%s1 + $0x368] sm:$0xff]
  %v211 = vld [vmem:[%s1 + $0x370] sm:$0xff]
  %v212 = vld [vmem:[%s1 + $0x378] sm:$0xff]
  %v213 = vld [vmem:[%s1 + $0x380] sm:$0xff]
  %v214 = vld [vmem:[%s1 + $0x388] sm:$0xff]
  %v215 = vld [vmem:[%s1 + $0x390] sm:$0xff]
  %v216 = vld [vmem:[%s1 + $0x398] sm:$0xff]
  %v217 = vld [vmem:[%s1 + $0x3a0] sm:$0xff]
  %v218 = vld [vmem:[%s1 + $0x3a8] sm:$0xff]
  %v219 = vld [vmem:[%s1 + $0x3b0] sm:$0xff]
  %v220 = vld [vmem:[%s1 + $0x3b8] sm:$0xff]
  %v221 = vld [vmem:[%s1 + $0x3c0] sm:$0xff]
  %v222 = vld [vmem:[%s1 + $0x3c8] sm:$0xff]
  %v223 = vld [vmem:[%s1 + $0x3d0] sm:$0xff]
  %v224 = vld [vmem:[%s1 + $0x3d8] sm:$0xff]
  %v225 = vld [vmem:[%s1 + $0x3e0] sm:$0xff]
  %v226 = vld [vmem:[%s1 + $0x3e8] sm:$0xff]
  %v227 = vld [vmem:[%s1 + $0x3f0] sm:$0xff]
  %v228 = vld [vmem:[%s1 + $0x3f8] sm:$0xff]
  %v229 = vld [vmem:[%s1 + $0x400] sm:$0xff]
  %v230 = vld [vmem:[%s1 + $0x408] sm:$0xff]
  %v231 = vld [vmem:[%s1 + $0x410] sm:$0xff]
  %v232 = vld [vmem:[%s1 + $0x418] sm:$0xff]
  %v233 = vld [vmem:[%s1 + $0x420] sm:$0xff]
  %v234 = vld [vmem:[%s1 + $0x428] sm:$0xff]
  %v235 = vld [vmem:[%s1 + $0x430] sm:$0xff]
  %v236 = vld [vmem:[%s1 + $0x438] sm:$0xff]
  %v237 = vld [vmem:[%s1 + $0x440] sm:$0xff]
  %v238 = vld [vmem:[%s1 + $0x448] sm:$0xff]
  %v239 = vld [vmem:[%s1 + $0x450] sm:$0xff]
  %v240 = vld [vmem:[%s1 + $0x458] sm:$0xff]
  %v241 = vld [vmem:[%s1 + $0x460] sm:$0xff]
  %v242 = vld [vmem:[%s1 + $0x468] sm:$0xff]
  %v243 = vld [vmem:[%s1 + $0x470] sm:$0xff]
  %v244 = vld [vmem:[%s1 + $0x478] sm:$0xff]
  %v245 = vld [vmem:[%s1 + $0x480] sm:$0xff]
  %v246 = vld [vmem:[%s1 + $0x488] sm:$0xff]
  %v247 = vld [vmem:[%s1 + $0x490] sm:$0xff]
  %v248 = vld [vmem:[%s1 + $0x498] sm:$0xff]
  %v249 = vld [vmem:[%s1 + $0x4a0] sm:$0xff]
  %v250 = vld [vmem:[%s1 + $0x4a8] sm:$0xff]
  %v251 = vld [vmem:[%s1 + $0x4b0] sm:$0xff]
  %v252 = vld [vmem:[%s1 + $0x4b8] sm:$0xff]
  %v253 = vld [vmem:[%s1 + $0x4c0] sm:$0xff]
  %v254 = vld [vmem:[%s1 + $0x4c8] sm:$0xff]
  %v255 = vld [vmem:[%s1 + $0x4d0] sm:$0xff]
  %v256 = vld [vmem:[%s1 + $0x4d8] sm:$0xff]
  %v257 = vld [vmem:[%s1 + $0x4e0] sm:$0xff]
  %v258 = vld [vmem:[%s1 + $0x4e8] sm:$0xff]
  %v259 = vld [vmem:[%s1 + $0x4f0] sm:$0xff]
  %v260 = vld [vmem:[%s1 + $0x4f8] sm:$0xff]
  %v261 = vld [vmem:[%s1 + $0x500] sm:$0xff]
  %v262 = vld [vmem:[%s1 + $0x508] sm:$0xff]
  %v263 = vld [vmem:[%s1 + $0x510] sm:$0xff]
  %v264 = vld [vmem:[%s1 + $0x518] sm:$0xff]
  %v265 = vld [vmem:[%s1 + $0x520] sm:$0xff]
  %v266 = vld [vmem:[%s1 + $0x528] sm:$0xff]
  %v267 = vld [vmem:[%s1 + $0x530] sm:$0xff]
  %v268 = vld [vmem:[%s1 + $0x538] sm:$0xff]
  %v269 = vld [vmem:[%s1 + $0x540] sm:$0xff]
  %v270 = vld [vmem:[%s1 + $0x548] sm:$0xff]
  %v271 = vld [vmem:[%s1 + $0x550] sm:$0xff]
  %v272 = vld [vmem:[%s1 + $0x558] sm:$0xff]
  %v273 = vld [vmem:[%s1 + $0x560] sm:$0xff]
  %v274 = vld [vmem:[%s1 + $0x568] sm:$0xff]
  %v275 = vld [vmem:[%s1 + $0x570] sm:$0xff]
  %v276 = vld [vmem:[%s1 + $0x578] sm:$0xff]
  %v277 = vld [vmem:[%s1 + $0x580] sm:$0xff]
  %v278 = vld [vmem:[%s1 + $0x588] sm:$0xff]
  %v279 = vld [vmem:[%s1 + $0x590] sm:$0xff]
  %v280 = vld [vmem:[%s1 + $0x598] sm:$0xff]
  %v281 = vld [vmem:[%s1 + $0x5a0] sm:$0xff]
  %v282 = vld [vmem:[%s1 + $0x5a8] sm:$0xff]
  %v283 = vld [vmem:[%s1 + $0x5b0] sm:$0xff]
  %v284 = vld [vmem:[%s1 + $0x5b8] sm:$0xff]
  %v285 = vld [vmem:[%s1 + $0x5c0] sm:$0xff]
  %v286 = vld [vmem:[%s1 + $0x5c8] sm:$0xff]
  %v287 = vld [vmem:[%s1 + $0x5d0] sm:$0xff]
  %v288 = vld [vmem:[%s1 + $0x5d8] sm:$0xff]
  %v289 = vld [vmem:[%s1 + $0x5e0] sm:$0xff]
  %v290 = vld [vmem:[%s1 + $0x5e8] sm:$0xff]
  %v291 = vld [vmem:[%s1 + $0x5f0] sm:$0xff]
  %v292 = vld [vmem:[%s1 + $0x5f8] sm:$0xff]
  %v293 = vld [vmem:[%s1 + $0x600] sm:$0xff]
  %v294 = vld [vmem:[%s1 + $0x608] sm:$0xff]
  %v295 = vld [vmem:[%s1 + $0x610] sm:$0xff]
  %v296 = vld [vmem:[%s1 + $0x618] sm:$0xff]
  %v297 = vld [vmem:[%s1 + $0x620] sm:$0xff]
  %v298 = vld [vmem:[%s1 + $0x628] sm:$0xff]
  %v299 = vld [vmem:[%s1 + $0x630] sm:$0xff]
  %v300 = vld [vmem:[%s1 + $0x638] sm:$0xff]
  %v301 = vld [vmem:[%s1 + $0x640] sm:$0xff]
  %v302 = vld [vmem:[%s1 + $0x648] sm:$0xff]
  %v303 = vld [vmem:[%s1 + $0x650] sm:$0xff]
  %v304 = vld [vmem:[%s1 + $0x658] sm:$0xff]
  %v305 = vld [vmem:[%s1 + $0x660] sm:$0xff]
  %v306 = vld [vmem:[%s1 + $0x668] sm:$0xff]
  %v307 = vld [vmem:[%s1 + $0x670] sm:$0xff]
  %v308 = vld [vmem:[%s1 + $0x678] sm:$0xff]
  %v309 = vld [vmem:[%s1 + $0x680] sm:$0xff]
  %v310 = vld [vmem:[%s1 + $0x688] sm:$0xff]
  %v311 = vld [vmem:[%s1 + $0x690] sm:$0xff]
  %v312 = vld [vmem:[%s1 + $0x698] sm:$0xff]
  %v313 = vld [vmem:[%s1 + $0x6a0] sm:$0xff]
  %v314 = vld [vmem:[%s1 + $0x6a8] sm:$0xff]
  %v315 = vld [vmem:[%s1 + $0x6b0] sm:$0xff]
  %v316 = vld [vmem:[%s1 + $0x6b8] sm:$0xff]
  %v317 = vld [vmem:[%s1 + $0x6c0] sm:$0xff]
  %v318 = vld [vmem:[%s1 + $0x6c8] sm:$0xff]
  %v319 = vld [vmem:[%s1 + $0x6d0] sm:$0xff]
  %v320 = vld [vmem:[%s1 + $0x6d8] sm:$0xff]
  %v321 = vld [vmem:[%s1 + $0x6e0] sm:$0xff]
  %v322 = vld [vmem:[%s1 + $0x6e8] sm:$0xff]
  %v323 = vld [vmem:[%s1 + $0x6f0] sm:$0xff]
  %v324 = vld [vmem:[%s1 + $0x6f8] sm:$0xff]
  %v325 = vld [vmem:[%s1 + $0x700] sm:$0xff]
  %v326 = vld [vmem:[%s1 + $0x708] sm:$0xff]
  %v327 = vld [vmem:[%s1 + $0x710] sm:$0xff]
  %v328 = vld [vmem:[%s1 + $0x718] sm:$0xff]
  %v329 = vld [vmem:[%s1 + $0x720] sm:$0xff]
  %v330 = vld [vmem:[%s1 + $0x728] sm:$0xff]
  %v331 = vld [vmem:[%s1 + $0x730] sm:$0xff]
  %v332 = vld [vmem:[%s1 + $0x738] sm:$0xff]
  %v333 = vld [vmem:[%s1 + $0x740] sm:$0xff]
  %v334 = vld [vmem:[%s1 + $0x748] sm:$0xff]
  %v335 = vld [vmem:[%s1 + $0x750] sm:$0xff]
  %v336 = vld [vmem:[%s1 + $0x758] sm:$0xff]
  %v337 = vld [vmem:[%s1 + $0x760] sm:$0xff]
  %v338 = vld [vmem:[%s1 + $0x768] sm:$0xff]
  %v339 = vld [vmem:[%s1 + $0x770] sm:$0xff]
  %v340 = vld [vmem:[%s1 + $0x778] sm:$0xff]
  %v341 = vld [vmem:[%s1 + $0x780] sm:$0xff]
  %v342 = vld [vmem:[%s1 + $0x788] sm:$0xff]
  %v343 = vld [vmem:[%s1 + $0x790] sm:$0xff]
  %v344 = vld [vmem:[%s1 + $0x798] sm:$0xff]
  %v345 = vld [vmem:[%s1 + $0x7a0] sm:$0xff]
  %v346 = vld [vmem:[%s1 + $0x7a8] sm:$0xff]
  %v347 = vld [vmem:[%s1 + $0x7b0] sm:$0xff]
  %v348 = vld [vmem:[%s1 + $0x7b8] sm:$0xff]
  %v349 = vld [vmem:[%s1 + $0x7c0] sm:$0xff]
  %v350 = vld [vmem:[%s1 + $0x7c8] sm:$0xff]
  %v351 = vld [vmem:[%s1 + $0x7d0] sm:$0xff]
  %v352 = vld [vmem:[%s1 + $0x7d8] sm:$0xff]
  %v353 = vld [vmem:[%s1 + $0x7e0] sm:$0xff]
  %v354 = vld [vmem:[%s1 + $0x7e8] sm:$0xff]
  %v355 = vld [vmem:[%s1 + $0x7f0] sm:$0xff]
  %v356 = vld [vmem:[%s1 + $0x7f8] sm:$0xff]
  %v357 = vld [vmem:[%s1 + $0x800] sm:$0xff]
  %v358 = vld [vmem:[%s1 + $0x808] sm:$0xff]
  %v359 = vld [vmem:[%s1 + $0x810] sm:$0xff]
  %v360 = vld [vmem:[%s1 + $0x818] sm:$0xff]
  %v361 = vld [vmem:[%s1 + $0x820] sm:$0xff]
  %v362 = vld [vmem:[%s1 + $0x828] sm:$0xff]
  %v363 = vld [vmem:[%s1 + $0x830] sm:$0xff]
  %v364 = vld [vmem:[%s1 + $0x838] sm:$0xff]
  %v365 = vld [vmem:[%s1 + $0x840] sm:$0xff]
  %v366 = vld [vmem:[%s1 + $0x848] sm:$0xff]
  %v367 = vld [vmem:[%s1 + $0x850] sm:$0xff]
  %v368 = vld [vmem:[%s1 + $0x858] sm:$0xff]
  %v369 = vld [vmem:[%s1 + $0x860] sm:$0xff]
  %v370 = vld [vmem:[%s1 + $0x868] sm:$0xff]
  %v371 = vld [vmem:[%s1 + $0x870] sm:$0xff]
  %v372 = vld [vmem:[%s1 + $0x878] sm:$0xff]
  %v373 = vld [vmem:[%s1 + $0x880] sm:$0xff]
  %v374 = vld [vmem:[%s1 + $0x888] sm:$0xff]
  %v375 = vld [vmem:[%s1 + $0x890] sm:$0xff]
  %v376 = vld [vmem:[%s1 + $0x898] sm:$0xff]
  %v377 = vld [vmem:[%s1 + $0x8a0] sm:$0xff]
  %v378 = vld [vmem:[%s1 + $0x8a8] sm:$0xff]
  %v379 = vld [vmem:[%s1 + $0x8b0] sm:$0xff]
  %v380 = vld [vmem:[%s1 + $0x8b8] sm:$0xff]
  %v381 = vld [vmem:[%s1 + $0x8c0] sm:$0xff]
  %v382 = vld [vmem:[%s1 + $0x8c8] sm:$0xff]
  %v383 = vld [vmem:[%s1 + $0x8d0] sm:$0xff]
  %v384 = vld [vmem:[%s1 + $0x8d8] sm:$0xff]
  %v385 = vld [vmem:[%s1 + $0x8e0] sm:$0xff]
  %v386 = vld [vmem:[%s1 + $0x8e8] sm:$0xff]
  %v387 = vld [vmem:[%s1 + $0x8f0] sm:$0xff]
  %v388 = vld [vmem:[%s1 + $0x8f8] sm:$0xff]
  %v389 = vld [vmem:[%s1 + $0x900] sm:$0xff]
  %v390 = vld [vmem:[%s1 + $0x908] sm:$0xff]
  %v391 = vld [vmem:[%s1 + $0x910] sm:$0xff]
  %v392 = vld [vmem:[%s1 + $0x918] sm:$0xff]
  %v393 = vld [vmem:[%s1 + $0x920] sm:$0xff]
  %v394 = vld [vmem:[%s1 + $0x928] sm:$0xff]
  %v395 = vld [vmem:[%s1 + $0x930] sm:$0xff]
  %v396 = vld [vmem:[%s1 + $0x938] sm:$0xff]
  %v397 = vld [vmem:[%s1 + $0x940] sm:$0xff]
  %v398 = vld [vmem:[%s1 + $0x948] sm:$0xff]
  %v399 = vld [vmem:[%s1 + $0x950] sm:$0xff]
  %v400 = vld [vmem:[%s1 + $0x958] sm:$0xff]
  %v401 = vld [vmem:[%s1 + $0x960] sm:$0xff]
  %v402 = vld [vmem:[%s1 + $0x968] sm:$0xff]
  %v403 = vld [vmem:[%s1 + $0x970] sm:$0xff]
  %v404 = vld [vmem:[%s1 + $0x978] sm:$0xff]
  %v405 = vld [vmem:[%s1 + $0x980] sm:$0xff]
  %v406 = vld [vmem:[%s1 + $0x988] sm:$0xff]
  %v407 = vld [vmem:[%s1 + $0x990] sm:$0xff]
  %v408 = vld [vmem:[%s1 + $0x998] sm:$0xff]
  %v409 = vld [vmem:[%s1 + $0x9a0] sm:$0xff]
  %v410 = vld [vmem:[%s1 + $0x9a8] sm:$0xff]
  %v411 = vld [vmem:[%s1 + $0x9b0] sm:$0xff]
  %v412 = vld [vmem:[%s1 + $0x9b8] sm:$0xff]
  %v413 = vld [vmem:[%s1 + $0x9c0] sm:$0xff]
  %v414 = vld [vmem:[%s1 + $0x9c8] sm:$0xff]
  %v415 = vld [vmem:[%s1 + $0x9d0] sm:$0xff]
  %v416 = vld [vmem:[%s1 + $0x9d8] sm:$0xff]
  %v417 = vld [vmem:[%s1 + $0x9e0] sm:$0xff]
  %v418 = vld [vmem:[%s1 + $0x9e8] sm:$0xff]
  %v419 = vld [vmem:[%s1 + $0x9f0] sm:$0xff]
  %v420 = vld [vmem:[%s1 + $0x9f8] sm:$0xff]
  %v421 = vld [vmem:[%s1 + $0xa00] sm:$0xff]
  %v422 = vld [vmem:[%s1 + $0xa08] sm:$0xff]
  %v423 = vld [vmem:[%s1 + $0xa10] sm:$0xff]
  %v424 = vld [vmem:[%s1 + $0xa18] sm:$0xff]
  %v425 = vld [vmem:[%s1 + $0xa20] sm:$0xff]
  %v426 = vld [vmem:[%s1 + $0xa28] sm:$0xff]
  %v427 = vld [vmem:[%s1 + $0xa30] sm:$0xff]
  %v428 = vld [vmem:[%s1 + $0xa38] sm:$0xff]
  %v429 = vld [vmem:[%s1 + $0xa40] sm:$0xff]
  %v430 = vld [vmem:[%s1 + $0xa48] sm:$0xff]
  %v431 = vld [vmem:[%s1 + $0xa50] sm:$0xff]
  %v432 = vld [vmem:[%s1 + $0xa58] sm:$0xff]
  %v433 = vld [vmem:[%s1 + $0xa60] sm:$0xff]
  %v434 = vld [vmem:[%s1 + $0xa68] sm:$0xff]
  %v435 = vld [vmem:[%s1 + $0xa70] sm:$0xff]
  %v436 = vld [vmem:[%s1 + $0xa78] sm:$0xff]
  %v437 = vld [vmem:[%s1 + $0xa80] sm:$0xff]
  %v438 = vld [vmem:[%s1 + $0xa88] sm:$0xff]
  %v439 = vld [vmem:[%s1 + $0xa90] sm:$0xff]
  %v440 = vld [vmem:[%s1 + $0xa98] sm:$0xff]
  %v441 = vld [vmem:[%s1 + $0xaa0] sm:$0xff]
  %v442 = vld [vmem:[%s1 + $0xaa8] sm:$0xff]
  %v443 = vld [vmem:[%s1 + $0xab0] sm:$0xff]
  %v444 = vld [vmem:[%s1 + $0xab8] sm:$0xff]
  %v445 = vld [vmem:[%s1 + $0xac0] sm:$0xff]
  %v446 = vld [vmem:[%s1 + $0xac8] sm:$0xff]
  %v447 = vld [vmem:[%s1 + $0xad0] sm:$0xff]
  %v448 = vld [vmem:[%s1 + $0xad8] sm:$0xff]
  %v449 = vld [vmem:[%s1 + $0xae0] sm:$0xff]
  %v450 = vld [vmem:[%s1 + $0xae8] sm:$0xff]
  %v451 = vld [vmem:[%s1 + $0xaf0] sm:$0xff]
  %v452 = vld [vmem:[%s1 + $0xaf8] sm:$0xff]
  %v453 = vld [vmem:[%s1 + $0xb00] sm:$0xff]
  %v454 = vld [vmem:[%s1 + $0xb08] sm:$0xff]
  %v455 = vld [vmem:[%s1 + $0xb10] sm:$0xff]
  %v456 = vld [vmem:[%s1 + $0xb18] sm:$0xff]
  %v457 = vld [vmem:[%s1 + $0xb20] sm:$0xff]
  %v458 = vld [vmem:[%s1 + $0xb28] sm:$0xff]
  %v459 = vld [vmem:[%s1 + $0xb30] sm:$0xff]
  %v460 = vld [vmem:[%s1 + $0xb38] sm:$0xff]
  %v461 = vld [vmem:[%s1 + $0xb40] sm:$0xff]
  %v462 = vld [vmem:[%s1 + $0xb48] sm:$0xff]
  %v463 = vld [vmem:[%s1 + $0xb50] sm:$0xff]
  %v464 = vld [vmem:[%s1 + $0xb58] sm:$0xff]
  %v465 = vld [vmem:[%s1 + $0xb60] sm:$0xff]
  %v466 = vld [vmem:[%s1 + $0xb68] sm:$0xff]
  %v467 = vld [vmem:[%s1 + $0xb70] sm:$0xff]
  %v468 = vld [vmem:[%s1 + $0xb78] sm:$0xff]
  %v469 = vld [vmem:[%s1 + $0xb80] sm:$0xff]
  %v470 = vld [vmem:[%s1 + $0xb88] sm:$0xff]
  %v471 = vld [vmem:[%s1 + $0xb90] sm:$0xff]
  %v472 = vld [vmem:[%s1 + $0xb98] sm:$0xff]
  %v473 = vld [vmem:[%s1 + $0xba0] sm:$0xff]
  %v474 = vld [vmem:[%s1 + $0xba8] sm:$0xff]
  %v475 = vld [vmem:[%s1 + $0xbb0] sm:$0xff]
  %v476 = vld [vmem:[%s1 + $0xbb8] sm:$0xff]
  %v477 = vld [vmem:[%s1 + $0xbc0] sm:$0xff]
  %v478 = vld [vmem:[%s1 + $0xbc8] sm:$0xff]
  %v479 = vld [vmem:[%s1 + $0xbd0] sm:$0xff]
  %v480 = vld [vmem:[%s1 + $0xbd8] sm:$0xff]
  %v481 = vld [vmem:[%s1 + $0xbe0] sm:$0xff]
  %v482 = vld [vmem:[%s1 + $0xbe8] sm:$0xff]
  %v483 = vld [vmem:[%s1 + $0xbf0] sm:$0xff]
  %v484 = vld [vmem:[%s1 + $0xbf8] sm:$0xff]
  %v485 = vld [vmem:[%s1 + $0xc00] sm:$0xff]
  %v486 = vld [vmem:[%s1 + $0xc08] sm:$0xff]
  %v487 = vld [vmem:[%s1 + $0xc10] sm:$0xff]
  %v488 = vld [vmem:[%s1 + $0xc18] sm:$0xff]
  %v489 = vld [vmem:[%s1 + $0xc20] sm:$0xff]
  %v490 = vld [vmem:[%s1 + $0xc28] sm:$0xff]
  %v491 = vld [vmem:[%s1 + $0xc30] sm:$0xff]
  %v492 = vld [vmem:[%s1 + $0xc38] sm:$0xff]
  %v493 = vld [vmem:[%s1 + $0xc40] sm:$0xff]
  %v494 = vld [vmem:[%s1 + $0xc48] sm:$0xff]
  %v495 = vld [vmem:[%s1 + $0xc50] sm:$0xff]
  %v496 = vld [vmem:[%s1 + $0xc58] sm:$0xff]
  %v497 = vld [vmem:[%s1 + $0xc60] sm:$0xff]
  %v498 = vld [vmem:[%s1 + $0xc68] sm:$0xff]
  %v499 = vld [vmem:[%s1 + $0xc70] sm:$0xff]
  %v500 = vld [vmem:[%s1 + $0xc78] sm:$0xff]
  %v501 = vld [vmem:[%s1 + $0xc80] sm:$0xff]
  %v502 = vld [vmem:[%s1 + $0xc88] sm:$0xff]
  %v503 = vld [vmem:[%s1 + $0xc90] sm:$0xff]
  %v504 = vld [vmem:[%s1 + $0xc98] sm:$0xff]
  %v505 = vld [vmem:[%s1 + $0xca0] sm:$0xff]
  %v506 = vld [vmem:[%s1 + $0xca8] sm:$0xff]
  %v507 = vld [vmem:[%s1 + $0xcb0] sm:$0xff]
  %v508 = vld [vmem:[%s1 + $0xcb8] sm:$0xff]
  %v509 = vld [vmem:[%s1 + $0xcc0] sm:$0xff]
  %v510 = vld [vmem:[%s1 + $0xcc8] sm:$0xff]
  %v511 = vld [vmem:[%s1 + $0xcd0] sm:$0xff]
  %v512 = vld [vmem:[%s1 + $0xcd8] sm:$0xff]
  %v513 = vld [vmem:[%s1 + $0xce0] sm:$0xff]
  %v514 = vld [vmem:[%s1 + $0xce8] sm:$0xff]
  %v515 = vld [vmem:[%s1 + $0xcf0] sm:$0xff]
  %v516 = vld [vmem:[%s1 + $0xcf8] sm:$0xff]
  %v517 = vld [vmem:[%s1 + $0xd00] sm:$0xff]
  %v518 = vld [vmem:[%s1 + $0xd08] sm:$0xff]
  %v519 = vld [vmem:[%s1 + $0xd10] sm:$0xff]
  %v520 = vld [vmem:[%s1 + $0xd18] sm:$0xff]
  %v521 = vld [vmem:[%s1 + $0xd20] sm:$0xff]
  %v522 = vld [vmem:[%s1 + $0xd28] sm:$0xff]
  %v523 = vld [vmem:[%s1 + $0xd30] sm:$0xff]
  %v524 = vld [vmem:[%s1 + $0xd38] sm:$0xff]
  %v525 = vld [vmem:[%s1 + $0xd40] sm:$0xff]
  %v526 = vld [vmem:[%s1 + $0xd48] sm:$0xff]
  %v527 = vld [vmem:[%s1 + $0xd50] sm:$0xff]
  %v528 = vld [vmem:[%s1 + $0xd58] sm:$0xff]
  %v529 = vld [vmem:[%s1 + $0xd60] sm:$0xff]
  %v530 = vld [vmem:[%s1 + $0xd68] sm:$0xff]
  %v531 = vld [vmem:[%s1 + $0xd70] sm:$0xff]
  %v532 = vld [vmem:[%s1 + $0xd78] sm:$0xff]
  %v533 = vld [vmem:[%s1 + $0xd80] sm:$0xff]
  %v534 = vld [vmem:[%s1 + $0xd88] sm:$0xff]
  %v535 = vld [vmem:[%s1 + $0xd90] sm:$0xff]
  %v536 = vld [vmem:[%s1 + $0xd98] sm:$0xff]
  %v537 = vld [vmem:[%s1 + $0xda0] sm:$0xff]
  %v538 = vld [vmem:[%s1 + $0xda8] sm:$0xff]
  %v539 = vld [vmem:[%s1 + $0xdb0] sm:$0xff]
  %v540 = vld [vmem:[%s1 + $0xdb8] sm:$0xff]
  %v541 = vld [vmem:[%s1 + $0xdc0] sm:$0xff]
  %v542 = vld [vmem:[%s1 + $0xdc8] sm:$0xff]
  %v543 = vld [vmem:[%s1 + $0xdd0] sm:$0xff]
  %v544 = vld [vmem:[%s1 + $0xdd8] sm:$0xff]
  %v545 = vld [vmem:[%s1 + $0xde0] sm:$0xff]
  %v546 = vld [vmem:[%s1 + $0xde8] sm:$0xff]
  %v547 = vld [vmem:[%s1 + $0xdf0] sm:$0xff]
  %v548 = vld [vmem:[%s1 + $0xdf8] sm:$0xff]
  %v549 = vld [vmem:[%s1 + $0xe00] sm:$0xff]
  %v550 = vld [vmem:[%s1 + $0xe08] sm:$0xff]
  %v551 = vld [vmem:[%s1 + $0xe10] sm:$0xff]
  %v552 = vld [vmem:[%s1 + $0xe18] sm:$0xff]
  %v553 = vld [vmem:[%s1 + $0xe20] sm:$0xff]
  %v554 = vld [vmem:[%s1 + $0xe28] sm:$0xff]
  %v555 = vld [vmem:[%s1 + $0xe30] sm:$0xff]
  %v556 = vld [vmem:[%s1 + $0xe38] sm:$0xff]
  %v557 = vld [vmem:[%s1 + $0xe40] sm:$0xff]
  %v558 = vld [vmem:[%s1 + $0xe48] sm:$0xff]
  %v559 = vld [vmem:[%s1 + $0xe50] sm:$0xff]
  %v560 = vld [vmem:[%s1 + $0xe58] sm:$0xff]
  %v561 = vld [vmem:[%s1 + $0xe60] sm:$0xff]
  %v562 = vld [vmem:[%s1 + $0xe68] sm:$0xff]
  %v563 = vld [vmem:[%s1 + $0xe70] sm:$0xff]
  %v564 = vld [vmem:[%s1 + $0xe78] sm:$0xff]
  %v565 = vld [vmem:[%s1 + $0xe80] sm:$0xff]
  %v566 = vld [vmem:[%s1 + $0xe88] sm:$0xff]
  %v567 = vld [vmem:[%s1 + $0xe90] sm:$0xff]
  %v568 = vld [vmem:[%s1 + $0xe98] sm:$0xff]
  %v569 = vld [vmem:[%s1 + $0xea0] sm:$0xff]
  %v570 = vld [vmem:[%s1 + $0xea8] sm:$0xff]
  %v571 = vld [vmem:[%s1 + $0xeb0] sm:$0xff]
  %v572 = vld [vmem:[%s1 + $0xeb8] sm:$0xff]
  %v573 = vld [vmem:[%s1 + $0xec0] sm:$0xff]
  %v574 = vld [vmem:[%s1 + $0xec8] sm:$0xff]
  %v575 = vld [vmem:[%s1 + $0xed0] sm:$0xff]
  %v576 = vld [vmem:[%s1 + $0xed8] sm:$0xff]
  %v577 = vld [vmem:[%s1 + $0xee0] sm:$0xff]
  %v578 = vld [vmem:[%s1 + $0xee8] sm:$0xff]
  %v579 = vld [vmem:[%s1 + $0xef0] sm:$0xff]
  %v580 = vld [vmem:[%s1 + $0xef8] sm:$0xff]
  %v581 = vld [vmem:[%s1 + $0xf00] sm:$0xff]
  %v582 = vld [vmem:[%s1 + $0xf08] sm:$0xff]
  %v583 = vld [vmem:[%s1 + $0xf10] sm:$0xff]
  %v584 = vld [vmem:[%s1 + $0xf18] sm:$0xff]
  %v585 = vld [vmem:[%s1 + $0xf20] sm:$0xff]
  %v586 = vld [vmem:[%s1 + $0xf28] sm:$0xff]
  %v587 = vld [vmem:[%s1 + $0xf30] sm:$0xff]
  %v588 = vld [vmem:[%s1 + $0xf38] sm:$0xff]
  %v589 = vld [vmem:[%s1 + $0xf40] sm:$0xff]
  %v590 = vld [vmem:[%s1 + $0xf48] sm:$0xff]
  %v591 = vld [vmem:[%s1 + $0xf50] sm:$0xff]
  %v592 = vld [vmem:[%s1 + $0xf58] sm:$0xff]
  %v593 = vld [vmem:[%s1 + $0xf60] sm:$0xff]
  %v594 = vld [vmem:[%s1 + $0xf68] sm:$0xff]
  %v595 = vld [vmem:[%s1 + $0xf70] sm:$0xff]
  %v596 = vld [vmem:[%s1 + $0xf78] sm:$0xff]
  %v597 = vld [vmem:[%s1 + $0xf80] sm:$0xff]
  %v598 = vld [vmem:[%s1 + $0xf88] sm:$0xff]
  %v599 = vld [vmem:[%s1 + $0xf90] sm:$0xff]
  %v600 = vld [vmem:[%s1 + $0xf98] sm:$0xff]
  %v601 = vld [vmem:[%s1 + $0xfa0] sm:$0xff]
  %v602 = vld [vmem:[%s1 + $0xfa8] sm:$0xff]
  %v603 = vld [vmem:[%s1 + $0xfb0] sm:$0xff]
  %v604 = vld [vmem:[%s1 + $0xfb8] sm:$0xff]
  %v605 = vld [vmem:[%s1 + $0xfc0] sm:$0xff]
  %v606 = vld [vmem:[%s1 + $0xfc8] sm:$0xff]
  %v607 = vld [vmem:[%s1 + $0xfd0] sm:$0xff]
  %v608 = vld [vmem:[%s1 + $0xfd8] sm:$0xff]
  %v609 = vld [vmem:[%s1 + $0xfe0] sm:$0xff]
  %v610 = vld [vmem:[%s1 + $0xfe8] sm:$0xff]
  %v611 = vld [vmem:[%s1 + $0xff0] sm:$0xff]
  %v612 = vld [vmem:[%s1 + $0xff8] sm:$0xff]
  %v613 = vld [vmem:[%s1 + $0x1000] sm:$0xff]
  %v614 = vld [vmem:[%s1 + $0x1008] sm:$0xff]
  %v615 = vld [vmem:[%s1 + $0x1010] sm:$0xff]
  %v616 = vld [vmem:[%s1 + $0x1018] sm:$0xff]
  %v617 = vld [vmem:[%s1 + $0x1020] sm:$0xff]
  %v618 = vld [vmem:[%s1 + $0x1028] sm:$0xff]
  %v619 = vld [vmem:[%s1 + $0x1030] sm:$0xff]
  %v620 = vld [vmem:[%s1 + $0x1038] sm:$0xff]
  %v621 = vld [vmem:[%s1 + $0x1040] sm:$0xff]
  %v622 = vld [vmem:[%s1 + $0x1048] sm:$0xff]
  %v623 = vld [vmem:[%s1 + $0x1050] sm:$0xff]
  %v624 = vld [vmem:[%s1 + $0x1058] sm:$0xff]
  %v625 = vld [vmem:[%s1 + $0x1060] sm:$0xff]
  %v626 = vld [vmem:[%s1 + $0x1068] sm:$0xff]
  %v627 = vld [vmem:[%s1 + $0x1070] sm:$0xff]
  %v628 = vld [vmem:[%s1 + $0x1078] sm:$0xff]
  %v629 = vld [vmem:[%s1 + $0x1080] sm:$0xff]
  %v630 = vld [vmem:[%s1 + $0x1088] sm:$0xff]
  %v631 = vld [vmem:[%s1 + $0x1090] sm:$0xff]
  %v632 = vld [vmem:[%s1 + $0x1098] sm:$0xff]
  %v633 = vld [vmem:[%s1 + $0x10a0] sm:$0xff]
  %v634 = vld [vmem:[%s1 + $0x10a8] sm:$0xff]
  %v635 = vld [vmem:[%s1 + $0x10b0] sm:$0xff]
  %v636 = vld [vmem:[%s1 + $0x10b8] sm:$0xff]
  %v637 = vld [vmem:[%s1 + $0x10c0] sm:$0xff]
  %v638 = vld [vmem:[%s1 + $0x10c8] sm:$0xff]
  %v639 = vld [vmem:[%s1 + $0x10d0] sm:$0xff]
  %v640 = vld [vmem:[%s1 + $0x10d8] sm:$0xff]
  %v641 = vld [vmem:[%s1 + $0x10e0] sm:$0xff]
  %v642 = vld [vmem:[%s1 + $0x10e8] sm:$0xff]
  %v643 = vld [vmem:[%s1 + $0x10f0] sm:$0xff]
  %v644 = vld [vmem:[%s1 + $0x10f8] sm:$0xff]
  %v645 = vld [vmem:[%s1 + $0x1100] sm:$0xff]
  %v646 = vld [vmem:[%s1 + $0x1108] sm:$0xff]
  %v647 = vld [vmem:[%s1 + $0x1110] sm:$0xff]
  %v648 = vld [vmem:[%s1 + $0x1118] sm:$0xff]
  %v649 = vld [vmem:[%s1 + $0x1120] sm:$0xff]
  %v650 = vld [vmem:[%s1 + $0x1128] sm:$0xff]
  %v651 = vld [vmem:[%s1 + $0x1130] sm:$0xff]
  %v652 = vld [vmem:[%s1 + $0x1138] sm:$0xff]
  %v653 = vld [vmem:[%s1 + $0x1140] sm:$0xff]
  %v654 = vld [vmem:[%s1 + $0x1148] sm:$0xff]
  %v655 = vld [vmem:[%s1 + $0x1150] sm:$0xff]
  %v656 = vld [vmem:[%s1 + $0x1158] sm:$0xff]
  %v657 = vld [vmem:[%s1 + $0x1160] sm:$0xff]
  %v658 = vld [vmem:[%s1 + $0x1168] sm:$0xff]
  %v659 = vld [vmem:[%s1 + $0x1170] sm:$0xff]
  %v660 = vld [vmem:[%s1 + $0x1178] sm:$0xff]
  %v661 = vld [vmem:[%s1 + $0x1180] sm:$0xff]
  %v662 = vld [vmem:[%s1 + $0x1188] sm:$0xff]
  %v663 = vld [vmem:[%s1 + $0x1190] sm:$0xff]
  %v664 = vld [vmem:[%s1 + $0x1198] sm:$0xff]
  %v665 = vld [vmem:[%s1 + $0x11a0] sm:$0xff]
  %v666 = vld [vmem:[%s1 + $0x11a8] sm:$0xff]
  %v667 = vld [vmem:[%s1 + $0x11b0] sm:$0xff]
  %v668 = vld [vmem:[%s1 + $0x11b8] sm:$0xff]
  %v669 = vld [vmem:[%s1 + $0x11c0] sm:$0xff]
  %v670 = vld [vmem:[%s1 + $0x11c8] sm:$0xff]
  %v671 = vld [vmem:[%s1 + $0x11d0] sm:$0xff]
  %v672 = vld [vmem:[%s1 + $0x11d8] sm:$0xff]
  %v673 = vld [vmem:[%s1 + $0x11e0] sm:$0xff]
  %v674 = vld [vmem:[%s1 + $0x11e8] sm:$0xff]
  %v675 = vld [vmem:[%s1 + $0x11f0] sm:$0xff]
  %v676 = vld [vmem:[%s1 + $0x11f8] sm:$0xff]
  %v677 = vld [vmem:[%s1 + $0x1200] sm:$0xff]
  %v678 = vld [vmem:[%s1 + $0x1208] sm:$0xff]
  %v679 = vld [vmem:[%s2] sm:$0xf]
  %v681 = vlaneseq
  %v682 = vshrl.u32 %v681, 7
  %v683 = vsub.s32 0, %v682
  %v684 = vrot.slane %v679, %v683
  %v685 = vlaneseq
  %v686 = vshrl.u32 %v685, 7
  %v687 = vsub.s32 1, %v686
  %v688 = vrot.slane %v679, %v687
  %v689 = vlaneseq
  %v690 = vshrl.u32 %v689, 7
  %v691 = vsub.s32 2, %v690
  %v692 = vrot.slane %v679, %v691
  %v693 = vlaneseq
  %v694 = vshrl.u32 %v693, 7
  %v695 = vsub.s32 3, %v694
  %v696 = vrot.slane %v679, %v695
  %v781 = vunpack.c.l.b16 %v21
  %v782 = vunpack.c.h.b16 %v21
  %v783 = vunpack.c.l.b16 %v22
  %v784 = vunpack.c.h.b16 %v22
  %v785 = vunpack.c.l.b16 %v23
  %v786 = vunpack.c.h.b16 %v23
  %v787 = vunpack.c.l.b16 %v24
  %v788 = vunpack.c.h.b16 %v24
  %v789 = vunpack.c.l.b16 %v25
  %v790 = vunpack.c.h.b16 %v25
  %v791 = vunpack.c.l.b16 %v26
  %v792 = vunpack.c.h.b16 %v26
  %v793 = vunpack.c.l.b16 %v27
  %v794 = vunpack.c.h.b16 %v27
  %v795 = vunpack.c.l.b16 %v28
  %v796 = vunpack.c.h.b16 %v28
  %v797 = vunpack.c.l.b16 %v29
  %v798 = vunpack.c.h.b16 %v29
  %v799 = vunpack.c.l.b16 %v30
  %v800 = vunpack.c.l.b16 %v31
  %v801 = vunpack.c.h.b16 %v31
  %v802 = vunpack.c.l.b16 %v32
  %v803 = vunpack.c.h.b16 %v32
  %v804 = vunpack.c.l.b16 %v33
  %v805 = vunpack.c.h.b16 %v33
  %v806 = vunpack.c.l.b16 %v34
  %v807 = vunpack.c.h.b16 %v34
  %v808 = vunpack.c.l.b16 %v35
  %v809 = vunpack.c.h.b16 %v35
  %v810 = vunpack.c.l.b16 %v36
  %v811 = vunpack.c.h.b16 %v36
  %v812 = vunpack.c.l.b16 %v37
  %v813 = vunpack.c.h.b16 %v37
  %v814 = vunpack.c.l.b16 %v38
  %v815 = vunpack.c.h.b16 %v38
  %v816 = vunpack.c.l.b16 %v39
  %v817 = vunpack.c.h.b16 %v39
  %v818 = vunpack.c.l.b16 %v40
  %v819 = vunpack.c.l.b16 %v41
  %v820 = vunpack.c.h.b16 %v41
  %v821 = vunpack.c.l.b16 %v42
  %v822 = vunpack.c.h.b16 %v42
  %v823 = vunpack.c.l.b16 %v43
  %v824 = vunpack.c.h.b16 %v43
  %v825 = vunpack.c.l.b16 %v44
  %v826 = vunpack.c.h.b16 %v44
  %v827 = vunpack.c.l.b16 %v45
  %v828 = vunpack.c.h.b16 %v45
  %v829 = vunpack.c.l.b16 %v46
  %v830 = vunpack.c.h.b16 %v46
  %v831 = vunpack.c.l.b16 %v47
  %v832 = vunpack.c.h.b16 %v47
  %v833 = vunpack.c.l.b16 %v48
  %v834 = vunpack.c.h.b16 %v48
  %v835 = vunpack.c.l.b16 %v49
  %v836 = vunpack.c.h.b16 %v49
  %v837 = vunpack.c.l.b16 %v50
  %v838 = vunpack.c.l.b16 %v51
  %v839 = vunpack.c.h.b16 %v51
  %v840 = vunpack.c.l.b16 %v52
  %v841 = vunpack.c.h.b16 %v52
  %v842 = vunpack.c.l.b16 %v53
  %v843 = vunpack.c.h.b16 %v53
  %v844 = vunpack.c.l.b16 %v54
  %v845 = vunpack.c.h.b16 %v54
  %v846 = vunpack.c.l.b16 %v55
  %v847 = vunpack.c.h.b16 %v55
  %v848 = vunpack.c.l.b16 %v56
  %v849 = vunpack.c.h.b16 %v56
  %v850 = vunpack.c.l.b16 %v57
  %v851 = vunpack.c.h.b16 %v57
  %v852 = vunpack.c.l.b16 %v58
  %v853 = vunpack.c.h.b16 %v58
  %v854 = vunpack.c.l.b16 %v59
  %v855 = vunpack.c.h.b16 %v59
  %v856 = vunpack.c.l.b16 %v60
  %v857 = vunpack.c.l.b16 %v61
  %v858 = vunpack.c.h.b16 %v61
  %v859 = vunpack.c.l.b16 %v62
  %v860 = vunpack.c.h.b16 %v62
  %v861 = vunpack.c.l.b16 %v63
  %v862 = vunpack.c.h.b16 %v63
  %v863 = vunpack.c.l.b16 %v64
  %v864 = vunpack.c.h.b16 %v64
  %v865 = vunpack.c.l.b16 %v65
  %v866 = vunpack.c.h.b16 %v65
  %v867 = vunpack.c.l.b16 %v66
  %v868 = vunpack.c.h.b16 %v66
  %v869 = vunpack.c.l.b16 %v67
  %v870 = vunpack.c.h.b16 %v67
  %v871 = vunpack.c.l.b16 %v68
  %v872 = vunpack.c.h.b16 %v68
  %v873 = vunpack.c.l.b16 %v69
  %v874 = vunpack.c.h.b16 %v69
  %v875 = vunpack.c.l.b16 %v70
  %v876 = vunpack.c.l.b16 %v71
  %v877 = vunpack.c.h.b16 %v71
  %v878 = vunpack.c.l.b16 %v72
  %v879 = vunpack.c.h.b16 %v72
  %v880 = vunpack.c.l.b16 %v73
  %v881 = vunpack.c.h.b16 %v73
  %v882 = vunpack.c.l.b16 %v74
  %v883 = vunpack.c.h.b16 %v74
  %v884 = vunpack.c.l.b16 %v75
  %v885 = vunpack.c.h.b16 %v75
  %v886 = vunpack.c.l.b16 %v76
  %v887 = vunpack.c.h.b16 %v76
  %v888 = vunpack.c.l.b16 %v77
  %v889 = vunpack.c.h.b16 %v77
  %v890 = vunpack.c.l.b16 %v78
  %v891 = vunpack.c.h.b16 %v78
  %v892 = vunpack.c.l.b16 %v79
  %v893 = vunpack.c.h.b16 %v79
  %v894 = vunpack.c.l.b16 %v80
  %v895 = vunpack.c.l.b16 %v81
  %v896 = vunpack.c.h.b16 %v81
  %v897 = vunpack.c.l.b16 %v82
  %v898 = vunpack.c.h.b16 %v82
  %v899 = vunpack.c.l.b16 %v83
  %v900 = vunpack.c.h.b16 %v83
  %v901 = vunpack.c.l.b16 %v84
  %v902 = vunpack.c.h.b16 %v84
  %v903 = vunpack.c.l.b16 %v85
  %v904 = vunpack.c.h.b16 %v85
  %v905 = vunpack.c.l.b16 %v86
  %v906 = vunpack.c.h.b16 %v86
  %v907 = vunpack.c.l.b16 %v87
  %v908 = vunpack.c.h.b16 %v87
  %v909 = vunpack.c.l.b16 %v88
  %v910 = vunpack.c.h.b16 %v88
  %v911 = vunpack.c.l.b16 %v89
  %v912 = vunpack.c.h.b16 %v89
  %v913 = vunpack.c.l.b16 %v90
  %v914 = vunpack.c.l.b16 %v91
  %v915 = vunpack.c.h.b16 %v91
  %v916 = vunpack.c.l.b16 %v92
  %v917 = vunpack.c.h.b16 %v92
  %v918 = vunpack.c.l.b16 %v93
  %v919 = vunpack.c.h.b16 %v93
  %v920 = vunpack.c.l.b16 %v94
  %v921 = vunpack.c.h.b16 %v94
  %v922 = vunpack.c.l.b16 %v95
  %v923 = vunpack.c.h.b16 %v95
  %v924 = vunpack.c.l.b16 %v96
  %v925 = vunpack.c.h.b16 %v96
  %v926 = vunpack.c.l.b16 %v97
  %v927 = vunpack.c.h.b16 %v97
  %v928 = vunpack.c.l.b16 %v98
  %v929 = vunpack.c.h.b16 %v98
  %v930 = vunpack.c.l.b16 %v99
  %v931 = vunpack.c.h.b16 %v99
  %v932 = vunpack.c.l.b16 %v100
  %v933 = vpack.c.b16 %v800, %v781
  %v934 = vpack.c.b16 %v801, %v782
  %v935 = vpack.c.b16 %v802, %v783
  %v936 = vpack.c.b16 %v803, %v784
  %v937 = vpack.c.b16 %v804, %v785
  %v938 = vpack.c.b16 %v805, %v786
  %v939 = vpack.c.b16 %v806, %v787
  %v940 = vpack.c.b16 %v807, %v788
  %v941 = vpack.c.b16 %v808, %v789
  %v942 = vpack.c.b16 %v809, %v790
  %v943 = vpack.c.b16 %v810, %v791
  %v944 = vpack.c.b16 %v811, %v792
  %v945 = vpack.c.b16 %v812, %v793
  %v946 = vpack.c.b16 %v813, %v794
  %v947 = vpack.c.b16 %v814, %v795
  %v948 = vpack.c.b16 %v815, %v796
  %v949 = vpack.c.b16 %v816, %v797
  %v950 = vpack.c.b16 %v817, %v798
  %v951 = vpack.c.b16 %v818, %v799
  %v952 = vpack.c.b16 %v838, %v819
  %v953 = vpack.c.b16 %v839, %v820
  %v954 = vpack.c.b16 %v840, %v821
  %v955 = vpack.c.b16 %v841, %v822
  %v956 = vpack.c.b16 %v842, %v823
  %v957 = vpack.c.b16 %v843, %v824
  %v958 = vpack.c.b16 %v844, %v825
  %v959 = vpack.c.b16 %v845, %v826
  %v960 = vpack.c.b16 %v846, %v827
  %v961 = vpack.c.b16 %v847, %v828
  %v962 = vpack.c.b16 %v848, %v829
  %v963 = vpack.c.b16 %v849, %v830
  %v964 = vpack.c.b16 %v850, %v831
  %v965 = vpack.c.b16 %v851, %v832
  %v966 = vpack.c.b16 %v852, %v833
  %v967 = vpack.c.b16 %v853, %v834
  %v968 = vpack.c.b16 %v854, %v835
  %v969 = vpack.c.b16 %v855, %v836
  %v970 = vpack.c.b16 %v856, %v837
  %v971 = vpack.c.b16 %v876, %v857
  %v972 = vpack.c.b16 %v877, %v858
  %v973 = vpack.c.b16 %v878, %v859
  %v974 = vpack.c.b16 %v879, %v860
  %v975 = vpack.c.b16 %v880, %v861
  %v976 = vpack.c.b16 %v881, %v862
  %v977 = vpack.c.b16 %v882, %v863
  %v978 = vpack.c.b16 %v883, %v864
  %v979 = vpack.c.b16 %v884, %v865
  %v980 = vpack.c.b16 %v885, %v866
  %v981 = vpack.c.b16 %v886, %v867
  %v982 = vpack.c.b16 %v887, %v868
  %v983 = vpack.c.b16 %v888, %v869
  %v984 = vpack.c.b16 %v889, %v870
  %v985 = vpack.c.b16 %v890, %v871
  %v986 = vpack.c.b16 %v891, %v872
  %v987 = vpack.c.b16 %v892, %v873
  %v988 = vpack.c.b16 %v893, %v874
  %v989 = vpack.c.b16 %v894, %v875
  %v990 = vpack.c.b16 %v914, %v895
  %v991 = vpack.c.b16 %v915, %v896
  %v992 = vpack.c.b16 %v916, %v897
  %v993 = vpack.c.b16 %v917, %v898
  %v994 = vpack.c.b16 %v918, %v899
  %v995 = vpack.c.b16 %v919, %v900
  %v996 = vpack.c.b16 %v920, %v901
  %v997 = vpack.c.b16 %v921, %v902
  %v998 = vpack.c.b16 %v922, %v903
  %v999 = vpack.c.b16 %v923, %v904
  %v1000 = vpack.c.b16 %v924, %v905
  %v1001 = vpack.c.b16 %v925, %v906
  %v1002 = vpack.c.b16 %v926, %v907
  %v1003 = vpack.c.b16 %v927, %v908
  %v1004 = vpack.c.b16 %v928, %v909
  %v1005 = vpack.c.b16 %v929, %v910
  %v1006 = vpack.c.b16 %v930, %v911
  %v1007 = vpack.c.b16 %v931, %v912
  %v1008 = vpack.c.b16 %v932, %v913
  %v1659 = vunpack.c.l.b16 %v101
  %v1660 = vunpack.c.h.b16 %v101
  %v1661 = vunpack.c.l.b16 %v102
  %v1662 = vunpack.c.h.b16 %v102
  %v1663 = vunpack.c.l.b16 %v103
  %v1664 = vunpack.c.h.b16 %v103
  %v1665 = vunpack.c.l.b16 %v104
  %v1666 = vunpack.c.h.b16 %v104
  %v1667 = vunpack.c.l.b16 %v105
  %v1668 = vunpack.c.h.b16 %v105
  %v1669 = vunpack.c.l.b16 %v106
  %v1670 = vunpack.c.h.b16 %v106
  %v1671 = vunpack.c.l.b16 %v107
  %v1672 = vunpack.c.h.b16 %v107
  %v1673 = vunpack.c.l.b16 %v108
  %v1674 = vunpack.c.h.b16 %v108
  %v1675 = vunpack.c.l.b16 %v109
  %v1676 = vunpack.c.h.b16 %v109
  %v1677 = vunpack.c.l.b16 %v110
  %v1678 = vunpack.c.h.b16 %v110
  %v1679 = vunpack.c.l.b16 %v111
  %v1680 = vunpack.c.h.b16 %v111
  %v1681 = vunpack.c.l.b16 %v112
  %v1682 = vunpack.c.h.b16 %v112
  %v1683 = vunpack.c.l.b16 %v113
  %v1684 = vunpack.c.h.b16 %v113
  %v1685 = vunpack.c.l.b16 %v114
  %v1686 = vunpack.c.h.b16 %v114
  %v1687 = vunpack.c.l.b16 %v115
  %v1688 = vunpack.c.h.b16 %v115
  %v1689 = vunpack.c.l.b16 %v116
  %v1690 = vunpack.c.h.b16 %v116
  %v1691 = vunpack.c.l.b16 %v117
  %v1692 = vunpack.c.h.b16 %v117
  %v1693 = vunpack.c.l.b16 %v118
  %v1694 = vunpack.c.h.b16 %v118
  %v1695 = vunpack.c.l.b16 %v119
  %v1696 = vunpack.c.h.b16 %v119
  %v1697 = vunpack.c.l.b16 %v120
  %v1698 = vunpack.c.h.b16 %v120
  %v1699 = vunpack.c.l.b16 %v121
  %v1700 = vunpack.c.h.b16 %v121
  %v1701 = vunpack.c.l.b16 %v122
  %v1702 = vunpack.c.h.b16 %v122
  %v1703 = vunpack.c.l.b16 %v123
  %v1704 = vunpack.c.h.b16 %v123
  %v1705 = vunpack.c.l.b16 %v124
  %v1706 = vunpack.c.h.b16 %v124
  %v1707 = vunpack.c.l.b16 %v125
  %v1708 = vunpack.c.h.b16 %v125
  %v1709 = vunpack.c.l.b16 %v126
  %v1710 = vunpack.c.h.b16 %v126
  %v1711 = vunpack.c.l.b16 %v127
  %v1712 = vunpack.c.h.b16 %v127
  %v1713 = vunpack.c.l.b16 %v128
  %v1714 = vunpack.c.h.b16 %v128
  %v1715 = vunpack.c.l.b16 %v129
  %v1716 = vunpack.c.h.b16 %v129
  %v1717 = vunpack.c.l.b16 %v130
  %v1718 = vunpack.c.h.b16 %v130
  %v1719 = vunpack.c.l.b16 %v131
  %v1720 = vunpack.c.h.b16 %v131
  %v1721 = vunpack.c.l.b16 %v132
  %v1722 = vunpack.c.h.b16 %v132
  %v1723 = vunpack.c.l.b16 %v133
  %v1724 = vunpack.c.h.b16 %v133
  %v1725 = vunpack.c.l.b16 %v134
  %v1726 = vunpack.c.h.b16 %v134
  %v1727 = vunpack.c.l.b16 %v135
  %v1728 = vunpack.c.h.b16 %v135
  %v1729 = vunpack.c.l.b16 %v136
  %v1730 = vunpack.c.h.b16 %v136
  %v1731 = vunpack.c.l.b16 %v137
  %v1732 = vunpack.c.h.b16 %v137
  %v1733 = vunpack.c.l.b16 %v138
  %v1734 = vunpack.c.h.b16 %v138
  %v1735 = vunpack.c.l.b16 %v139
  %v1736 = vunpack.c.h.b16 %v139
  %v1737 = vunpack.c.l.b16 %v140
  %v1738 = vunpack.c.h.b16 %v140
  %v1739 = vunpack.c.l.b16 %v141
  %v1740 = vunpack.c.h.b16 %v141
  %v1741 = vunpack.c.l.b16 %v142
  %v1742 = vunpack.c.h.b16 %v142
  %v1743 = vunpack.c.l.b16 %v143
  %v1744 = vunpack.c.h.b16 %v143
  %v1745 = vunpack.c.l.b16 %v144
  %v1746 = vunpack.c.h.b16 %v144
  %v1747 = vunpack.c.l.b16 %v145
  %v1748 = vunpack.c.h.b16 %v145
  %v1749 = vunpack.c.l.b16 %v146
  %v1750 = vunpack.c.h.b16 %v146
  %v1751 = vunpack.c.l.b16 %v147
  %v1752 = vunpack.c.h.b16 %v147
  %v1753 = vunpack.c.l.b16 %v148
  %v1754 = vunpack.c.h.b16 %v148
  %v1755 = vunpack.c.l.b16 %v149
  %v1756 = vunpack.c.h.b16 %v149
  %v1757 = vunpack.c.l.b16 %v150
  %v1758 = vunpack.c.h.b16 %v150
  %v1759 = vunpack.c.l.b16 %v151
  %v1760 = vunpack.c.h.b16 %v151
  %v1761 = vunpack.c.l.b16 %v152
  %v1762 = vunpack.c.h.b16 %v152
  %v1763 = vunpack.c.l.b16 %v153
  %v1764 = vunpack.c.h.b16 %v153
  %v1765 = vunpack.c.l.b16 %v154
  %v1766 = vunpack.c.h.b16 %v154
  %v1767 = vunpack.c.l.b16 %v155
  %v1768 = vunpack.c.h.b16 %v155
  %v1769 = vunpack.c.l.b16 %v156
  %v1770 = vunpack.c.h.b16 %v156
  %v1771 = vunpack.c.l.b16 %v157
  %v1772 = vunpack.c.h.b16 %v157
  %v1773 = vunpack.c.l.b16 %v158
  %v1774 = vunpack.c.h.b16 %v158
  %v1775 = vunpack.c.l.b16 %v159
  %v1776 = vunpack.c.h.b16 %v159
  %v1777 = vunpack.c.l.b16 %v160
  %v1778 = vunpack.c.h.b16 %v160
  %v1779 = vunpack.c.l.b16 %v161
  %v1780 = vunpack.c.h.b16 %v161
  %v1781 = vunpack.c.l.b16 %v162
  %v1782 = vunpack.c.h.b16 %v162
  %v1783 = vunpack.c.l.b16 %v163
  %v1784 = vunpack.c.h.b16 %v163
  %v1785 = vunpack.c.l.b16 %v164
  %v1786 = vunpack.c.h.b16 %v164
  %v1787 = vunpack.c.l.b16 %v165
  %v1788 = vunpack.c.h.b16 %v165
  %v1789 = vunpack.c.l.b16 %v166
  %v1790 = vunpack.c.h.b16 %v166
  %v1791 = vunpack.c.l.b16 %v167
  %v1792 = vunpack.c.h.b16 %v167
  %v1793 = vunpack.c.l.b16 %v168
  %v1794 = vunpack.c.h.b16 %v168
  %v1795 = vunpack.c.l.b16 %v169
  %v1796 = vunpack.c.h.b16 %v169
  %v1797 = vunpack.c.l.b16 %v170
  %v1798 = vunpack.c.h.b16 %v170
  %v1799 = vunpack.c.l.b16 %v171
  %v1800 = vunpack.c.h.b16 %v171
  %v1801 = vunpack.c.l.b16 %v172
  %v1802 = vunpack.c.h.b16 %v172
  %v1803 = vunpack.c.l.b16 %v173
  %v1804 = vunpack.c.h.b16 %v173
  %v1805 = vunpack.c.l.b16 %v174
  %v1806 = vunpack.c.h.b16 %v174
  %v1807 = vunpack.c.l.b16 %v175
  %v1808 = vunpack.c.h.b16 %v175
  %v1809 = vunpack.c.l.b16 %v176
  %v1810 = vunpack.c.h.b16 %v176
  %v1811 = vunpack.c.l.b16 %v177
  %v1812 = vunpack.c.h.b16 %v177
  %v1813 = vunpack.c.l.b16 %v178
  %v1814 = vunpack.c.h.b16 %v178
  %v1815 = vunpack.c.l.b16 %v179
  %v1816 = vunpack.c.h.b16 %v179
  %v1817 = vunpack.c.l.b16 %v180
  %v1818 = vunpack.c.h.b16 %v180
  %v1819 = vunpack.c.l.b16 %v181
  %v1820 = vunpack.c.h.b16 %v181
  %v1821 = vunpack.c.l.b16 %v182
  %v1822 = vunpack.c.h.b16 %v182
  %v1823 = vunpack.c.l.b16 %v183
  %v1824 = vunpack.c.h.b16 %v183
  %v1825 = vunpack.c.l.b16 %v184
  %v1826 = vunpack.c.h.b16 %v184
  %v1827 = vunpack.c.l.b16 %v185
  %v1828 = vunpack.c.h.b16 %v185
  %v1829 = vunpack.c.l.b16 %v186
  %v1830 = vunpack.c.h.b16 %v186
  %v1831 = vunpack.c.l.b16 %v187
  %v1832 = vunpack.c.h.b16 %v187
  %v1833 = vunpack.c.l.b16 %v188
  %v1834 = vunpack.c.h.b16 %v188
  %v1835 = vunpack.c.l.b16 %v189
  %v1836 = vunpack.c.h.b16 %v189
  %v1837 = vunpack.c.l.b16 %v190
  %v1838 = vunpack.c.h.b16 %v190
  %v1839 = vunpack.c.l.b16 %v191
  %v1840 = vunpack.c.h.b16 %v191
  %v1841 = vunpack.c.l.b16 %v192
  %v1842 = vunpack.c.h.b16 %v192
  %v1843 = vunpack.c.l.b16 %v193
  %v1844 = vunpack.c.h.b16 %v193
  %v1845 = vunpack.c.l.b16 %v194
  %v1846 = vunpack.c.h.b16 %v194
  %v1847 = vunpack.c.l.b16 %v195
  %v1848 = vunpack.c.h.b16 %v195
  %v1849 = vunpack.c.l.b16 %v196
  %v1850 = vunpack.c.h.b16 %v196
  %v1851 = vunpack.c.l.b16 %v197
  %v1852 = vunpack.c.h.b16 %v197
  %v1853 = vunpack.c.l.b16 %v198
  %v1854 = vunpack.c.h.b16 %v198
  %v1855 = vunpack.c.l.b16 %v199
  %v1856 = vunpack.c.h.b16 %v199
  %v1857 = vunpack.c.l.b16 %v200
  %v1858 = vunpack.c.h.b16 %v200
  %v1859 = vunpack.c.l.b16 %v201
  %v1860 = vunpack.c.h.b16 %v201
  %v1861 = vunpack.c.l.b16 %v202
  %v1862 = vunpack.c.h.b16 %v202
  %v1863 = vunpack.c.l.b16 %v203
  %v1864 = vunpack.c.h.b16 %v203
  %v1865 = vunpack.c.l.b16 %v204
  %v1866 = vunpack.c.h.b16 %v204
  %v1867 = vunpack.c.l.b16 %v205
  %v1868 = vunpack.c.h.b16 %v205
  %v1869 = vunpack.c.l.b16 %v206
  %v1870 = vunpack.c.h.b16 %v206
  %v1871 = vunpack.c.l.b16 %v207
  %v1872 = vunpack.c.h.b16 %v207
  %v1873 = vunpack.c.l.b16 %v208
  %v1874 = vunpack.c.h.b16 %v208
  %v1875 = vunpack.c.l.b16 %v209
  %v1876 = vunpack.c.h.b16 %v209
  %v1877 = vunpack.c.l.b16 %v210
  %v1878 = vunpack.c.h.b16 %v210
  %v1879 = vunpack.c.l.b16 %v211
  %v1880 = vunpack.c.h.b16 %v211
  %v1881 = vunpack.c.l.b16 %v212
  %v1882 = vunpack.c.h.b16 %v212
  %v1883 = vunpack.c.l.b16 %v213
  %v1884 = vunpack.c.h.b16 %v213
  %v1885 = vunpack.c.l.b16 %v214
  %v1886 = vunpack.c.h.b16 %v214
  %v1887 = vunpack.c.l.b16 %v215
  %v1888 = vunpack.c.h.b16 %v215
  %v1889 = vunpack.c.l.b16 %v216
  %v1890 = vunpack.c.h.b16 %v216
  %v1891 = vunpack.c.l.b16 %v217
  %v1892 = vunpack.c.h.b16 %v217
  %v1893 = vunpack.c.l.b16 %v218
  %v1894 = vunpack.c.h.b16 %v218
  %v1895 = vunpack.c.l.b16 %v219
  %v1896 = vunpack.c.h.b16 %v219
  %v1897 = vunpack.c.l.b16 %v220
  %v1898 = vunpack.c.h.b16 %v220
  %v1899 = vunpack.c.l.b16 %v221
  %v1900 = vunpack.c.h.b16 %v221
  %v1901 = vunpack.c.l.b16 %v222
  %v1902 = vunpack.c.h.b16 %v222
  %v1903 = vunpack.c.l.b16 %v223
  %v1904 = vunpack.c.h.b16 %v223
  %v1905 = vunpack.c.l.b16 %v224
  %v1906 = vunpack.c.h.b16 %v224
  %v1907 = vunpack.c.l.b16 %v225
  %v1908 = vunpack.c.h.b16 %v225
  %v1909 = vunpack.c.l.b16 %v226
  %v1910 = vunpack.c.h.b16 %v226
  %v1911 = vunpack.c.l.b16 %v227
  %v1912 = vunpack.c.h.b16 %v227
  %v1913 = vunpack.c.l.b16 %v228
  %v1914 = vunpack.c.h.b16 %v228
  %v1915 = vunpack.c.l.b16 %v229
  %v1916 = vunpack.c.h.b16 %v229
  %v1917 = vunpack.c.l.b16 %v230
  %v1918 = vunpack.c.h.b16 %v230
  %v1919 = vunpack.c.l.b16 %v231
  %v1920 = vunpack.c.h.b16 %v231
  %v1921 = vunpack.c.l.b16 %v232
  %v1922 = vunpack.c.h.b16 %v232
  %v1923 = vunpack.c.l.b16 %v233
  %v1924 = vunpack.c.h.b16 %v233
  %v1925 = vunpack.c.l.b16 %v234
  %v1926 = vunpack.c.h.b16 %v234
  %v1927 = vunpack.c.l.b16 %v235
  %v1928 = vunpack.c.h.b16 %v235
  %v1929 = vunpack.c.l.b16 %v236
  %v1930 = vunpack.c.h.b16 %v236
  %v1931 = vunpack.c.l.b16 %v237
  %v1932 = vunpack.c.h.b16 %v237
  %v1933 = vunpack.c.l.b16 %v238
  %v1934 = vunpack.c.h.b16 %v238
  %v1935 = vunpack.c.l.b16 %v239
  %v1936 = vunpack.c.h.b16 %v239
  %v1937 = vunpack.c.l.b16 %v240
  %v1938 = vunpack.c.h.b16 %v240
  %v1939 = vunpack.c.l.b16 %v241
  %v1940 = vunpack.c.h.b16 %v241
  %v1941 = vunpack.c.l.b16 %v242
  %v1942 = vunpack.c.h.b16 %v242
  %v1943 = vunpack.c.l.b16 %v243
  %v1944 = vunpack.c.h.b16 %v243
  %v1945 = vunpack.c.l.b16 %v244
  %v1946 = vunpack.c.h.b16 %v244
  %v1947 = vunpack.c.l.b16 %v245
  %v1948 = vunpack.c.h.b16 %v245
  %v1949 = vunpack.c.l.b16 %v246
  %v1950 = vunpack.c.h.b16 %v246
  %v1951 = vunpack.c.l.b16 %v247
  %v1952 = vunpack.c.h.b16 %v247
  %v1953 = vunpack.c.l.b16 %v248
  %v1954 = vunpack.c.h.b16 %v248
  %v1955 = vunpack.c.l.b16 %v249
  %v1956 = vunpack.c.h.b16 %v249
  %v1957 = vunpack.c.l.b16 %v250
  %v1958 = vunpack.c.h.b16 %v250
  %v1959 = vunpack.c.l.b16 %v251
  %v1960 = vunpack.c.h.b16 %v251
  %v1961 = vunpack.c.l.b16 %v252
  %v1962 = vunpack.c.h.b16 %v252
  %v1963 = vunpack.c.l.b16 %v253
  %v1964 = vunpack.c.h.b16 %v253
  %v1965 = vunpack.c.l.b16 %v254
  %v1966 = vunpack.c.h.b16 %v254
  %v1967 = vunpack.c.l.b16 %v255
  %v1968 = vunpack.c.h.b16 %v255
  %v1969 = vunpack.c.l.b16 %v256
  %v1970 = vunpack.c.h.b16 %v256
  %v1971 = vunpack.c.l.b16 %v257
  %v1972 = vunpack.c.h.b16 %v257
  %v1973 = vunpack.c.l.b16 %v258
  %v1974 = vunpack.c.h.b16 %v258
  %v1975 = vunpack.c.l.b16 %v259
  %v1976 = vunpack.c.h.b16 %v259
  %v1977 = vunpack.c.l.b16 %v260
  %v1978 = vunpack.c.h.b16 %v260
  %v1979 = vunpack.c.l.b16 %v261
  %v1980 = vunpack.c.h.b16 %v261
  %v1981 = vunpack.c.l.b16 %v262
  %v1982 = vunpack.c.h.b16 %v262
  %v1983 = vunpack.c.l.b16 %v263
  %v1984 = vunpack.c.h.b16 %v263
  %v1985 = vunpack.c.l.b16 %v264
  %v1986 = vunpack.c.h.b16 %v264
  %v1987 = vunpack.c.l.b16 %v265
  %v1988 = vunpack.c.h.b16 %v265
  %v1989 = vunpack.c.l.b16 %v266
  %v1990 = vunpack.c.h.b16 %v266
  %v1991 = vunpack.c.l.b16 %v267
  %v1992 = vunpack.c.h.b16 %v267
  %v1993 = vunpack.c.l.b16 %v268
  %v1994 = vunpack.c.h.b16 %v268
  %v1995 = vunpack.c.l.b16 %v269
  %v1996 = vunpack.c.h.b16 %v269
  %v1997 = vunpack.c.l.b16 %v270
  %v1998 = vunpack.c.h.b16 %v270
  %v1999 = vunpack.c.l.b16 %v271
  %v2000 = vunpack.c.h.b16 %v271
  %v2001 = vunpack.c.l.b16 %v272
  %v2002 = vunpack.c.h.b16 %v272
  %v2003 = vunpack.c.l.b16 %v273
  %v2004 = vunpack.c.h.b16 %v273
  %v2005 = vunpack.c.l.b16 %v274
  %v2006 = vunpack.c.h.b16 %v274
  %v2007 = vunpack.c.l.b16 %v275
  %v2008 = vunpack.c.h.b16 %v275
  %v2009 = vunpack.c.l.b16 %v276
  %v2010 = vunpack.c.h.b16 %v276
  %v2011 = vunpack.c.l.b16 %v277
  %v2012 = vunpack.c.h.b16 %v277
  %v2013 = vunpack.c.l.b16 %v278
  %v2014 = vunpack.c.h.b16 %v278
  %v2015 = vunpack.c.l.b16 %v279
  %v2016 = vunpack.c.h.b16 %v279
  %v2017 = vunpack.c.l.b16 %v280
  %v2018 = vunpack.c.h.b16 %v280
  %v2019 = vunpack.c.l.b16 %v281
  %v2020 = vunpack.c.h.b16 %v281
  %v2021 = vunpack.c.l.b16 %v282
  %v2022 = vunpack.c.h.b16 %v282
  %v2023 = vunpack.c.l.b16 %v283
  %v2024 = vunpack.c.h.b16 %v283
  %v2025 = vunpack.c.l.b16 %v284
  %v2026 = vunpack.c.h.b16 %v284
  %v2027 = vunpack.c.l.b16 %v285
  %v2028 = vunpack.c.h.b16 %v285
  %v2029 = vunpack.c.l.b16 %v286
  %v2030 = vunpack.c.h.b16 %v286
  %v2031 = vunpack.c.l.b16 %v287
  %v2032 = vunpack.c.h.b16 %v287
  %v2033 = vunpack.c.l.b16 %v288
  %v2034 = vunpack.c.h.b16 %v288
  %v2035 = vunpack.c.l.b16 %v289
  %v2036 = vunpack.c.h.b16 %v289
  %v2037 = vunpack.c.l.b16 %v290
  %v2038 = vunpack.c.h.b16 %v290
  %v2039 = vunpack.c.l.b16 %v291
  %v2040 = vunpack.c.h.b16 %v291
  %v2041 = vunpack.c.l.b16 %v292
  %v2042 = vunpack.c.h.b16 %v292
  %v2043 = vunpack.c.l.b16 %v293
  %v2044 = vunpack.c.h.b16 %v293
  %v2045 = vunpack.c.l.b16 %v294
  %v2046 = vunpack.c.h.b16 %v294
  %v2047 = vunpack.c.l.b16 %v295
  %v2048 = vunpack.c.h.b16 %v295
  %v2049 = vunpack.c.l.b16 %v296
  %v2050 = vunpack.c.h.b16 %v296
  %v2051 = vunpack.c.l.b16 %v297
  %v2052 = vunpack.c.h.b16 %v297
  %v2053 = vunpack.c.l.b16 %v298
  %v2054 = vunpack.c.h.b16 %v298
  %v2055 = vunpack.c.l.b16 %v299
  %v2056 = vunpack.c.h.b16 %v299
  %v2057 = vunpack.c.l.b16 %v300
  %v2058 = vunpack.c.h.b16 %v300
  %v2059 = vunpack.c.l.b16 %v301
  %v2060 = vunpack.c.h.b16 %v301
  %v2061 = vunpack.c.l.b16 %v302
  %v2062 = vunpack.c.h.b16 %v302
  %v2063 = vunpack.c.l.b16 %v303
  %v2064 = vunpack.c.h.b16 %v303
  %v2065 = vunpack.c.l.b16 %v304
  %v2066 = vunpack.c.h.b16 %v304
  %v2067 = vunpack.c.l.b16 %v305
  %v2068 = vunpack.c.h.b16 %v305
  %v2069 = vunpack.c.l.b16 %v306
  %v2070 = vunpack.c.h.b16 %v306
  %v2071 = vunpack.c.l.b16 %v307
  %v2072 = vunpack.c.h.b16 %v307
  %v2073 = vunpack.c.l.b16 %v308
  %v2074 = vunpack.c.h.b16 %v308
  %v2075 = vunpack.c.l.b16 %v309
  %v2076 = vunpack.c.h.b16 %v309
  %v2077 = vunpack.c.l.b16 %v310
  %v2078 = vunpack.c.h.b16 %v310
  %v2079 = vunpack.c.l.b16 %v311
  %v2080 = vunpack.c.h.b16 %v311
  %v2081 = vunpack.c.l.b16 %v312
  %v2082 = vunpack.c.h.b16 %v312
  %v2083 = vunpack.c.l.b16 %v313
  %v2084 = vunpack.c.h.b16 %v313
  %v2085 = vunpack.c.l.b16 %v314
  %v2086 = vunpack.c.h.b16 %v314
  %v2087 = vunpack.c.l.b16 %v315
  %v2088 = vunpack.c.h.b16 %v315
  %v2089 = vunpack.c.l.b16 %v316
  %v2090 = vunpack.c.h.b16 %v316
  %v2091 = vunpack.c.l.b16 %v317
  %v2092 = vunpack.c.h.b16 %v317
  %v2093 = vunpack.c.l.b16 %v318
  %v2094 = vunpack.c.h.b16 %v318
  %v2095 = vunpack.c.l.b16 %v319
  %v2096 = vunpack.c.h.b16 %v319
  %v2097 = vunpack.c.l.b16 %v320
  %v2098 = vunpack.c.h.b16 %v320
  %v2099 = vunpack.c.l.b16 %v321
  %v2100 = vunpack.c.h.b16 %v321
  %v2101 = vunpack.c.l.b16 %v322
  %v2102 = vunpack.c.h.b16 %v322
  %v2103 = vunpack.c.l.b16 %v323
  %v2104 = vunpack.c.h.b16 %v323
  %v2105 = vunpack.c.l.b16 %v324
  %v2106 = vunpack.c.h.b16 %v324
  %v2107 = vunpack.c.l.b16 %v325
  %v2108 = vunpack.c.h.b16 %v325
  %v2109 = vunpack.c.l.b16 %v326
  %v2110 = vunpack.c.h.b16 %v326
  %v2111 = vunpack.c.l.b16 %v327
  %v2112 = vunpack.c.h.b16 %v327
  %v2113 = vunpack.c.l.b16 %v328
  %v2114 = vunpack.c.h.b16 %v328
  %v2115 = vunpack.c.l.b16 %v329
  %v2116 = vunpack.c.h.b16 %v329
  %v2117 = vunpack.c.l.b16 %v330
  %v2118 = vunpack.c.h.b16 %v330
  %v2119 = vunpack.c.l.b16 %v331
  %v2120 = vunpack.c.h.b16 %v331
  %v2121 = vunpack.c.l.b16 %v332
  %v2122 = vunpack.c.h.b16 %v332
  %v2123 = vunpack.c.l.b16 %v333
  %v2124 = vunpack.c.h.b16 %v333
  %v2125 = vunpack.c.l.b16 %v334
  %v2126 = vunpack.c.h.b16 %v334
  %v2127 = vunpack.c.l.b16 %v335
  %v2128 = vunpack.c.h.b16 %v335
  %v2129 = vunpack.c.l.b16 %v336
  %v2130 = vunpack.c.h.b16 %v336
  %v2131 = vunpack.c.l.b16 %v337
  %v2132 = vunpack.c.h.b16 %v337
  %v2133 = vunpack.c.l.b16 %v338
  %v2134 = vunpack.c.h.b16 %v338
  %v2135 = vunpack.c.l.b16 %v339
  %v2136 = vunpack.c.h.b16 %v339
  %v2137 = vunpack.c.l.b16 %v340
  %v2138 = vunpack.c.h.b16 %v340
  %v2139 = vunpack.c.l.b16 %v341
  %v2140 = vunpack.c.h.b16 %v341
  %v2141 = vunpack.c.l.b16 %v342
  %v2142 = vunpack.c.h.b16 %v342
  %v2143 = vunpack.c.l.b16 %v343
  %v2144 = vunpack.c.h.b16 %v343
  %v2145 = vunpack.c.l.b16 %v344
  %v2146 = vunpack.c.h.b16 %v344
  %v2147 = vunpack.c.l.b16 %v345
  %v2148 = vunpack.c.h.b16 %v345
  %v2149 = vunpack.c.l.b16 %v346
  %v2150 = vunpack.c.h.b16 %v346
  %v2151 = vunpack.c.l.b16 %v347
  %v2152 = vunpack.c.h.b16 %v347
  %v2153 = vunpack.c.l.b16 %v348
  %v2154 = vunpack.c.h.b16 %v348
  %v2155 = vunpack.c.l.b16 %v349
  %v2156 = vunpack.c.h.b16 %v349
  %v2157 = vunpack.c.l.b16 %v350
  %v2158 = vunpack.c.h.b16 %v350
  %v2159 = vunpack.c.l.b16 %v351
  %v2160 = vunpack.c.h.b16 %v351
  %v2161 = vunpack.c.l.b16 %v352
  %v2162 = vunpack.c.h.b16 %v352
  %v2163 = vunpack.c.l.b16 %v353
  %v2164 = vunpack.c.h.b16 %v353
  %v2165 = vunpack.c.l.b16 %v354
  %v2166 = vunpack.c.h.b16 %v354
  %v2167 = vunpack.c.l.b16 %v355
  %v2168 = vunpack.c.h.b16 %v355
  %v2169 = vunpack.c.l.b16 %v356
  %v2170 = vunpack.c.h.b16 %v356
  %v2171 = vunpack.c.l.b16 %v357
  %v2172 = vunpack.c.h.b16 %v357
  %v2173 = vunpack.c.l.b16 %v358
  %v2174 = vunpack.c.h.b16 %v358
  %v2175 = vunpack.c.l.b16 %v359
  %v2176 = vunpack.c.h.b16 %v359
  %v2177 = vunpack.c.l.b16 %v360
  %v2178 = vunpack.c.h.b16 %v360
  %v2179 = vunpack.c.l.b16 %v361
  %v2180 = vunpack.c.h.b16 %v361
  %v2181 = vunpack.c.l.b16 %v362
  %v2182 = vunpack.c.h.b16 %v362
  %v2183 = vunpack.c.l.b16 %v363
  %v2184 = vunpack.c.h.b16 %v363
  %v2185 = vunpack.c.l.b16 %v364
  %v2186 = vunpack.c.h.b16 %v364
  %v2187 = vunpack.c.l.b16 %v365
  %v2188 = vunpack.c.h.b16 %v365
  %v2189 = vunpack.c.l.b16 %v366
  %v2190 = vunpack.c.h.b16 %v366
  %v2191 = vunpack.c.l.b16 %v367
  %v2192 = vunpack.c.h.b16 %v367
  %v2193 = vunpack.c.l.b16 %v368
  %v2194 = vunpack.c.h.b16 %v368
  %v2195 = vunpack.c.l.b16 %v369
  %v2196 = vunpack.c.h.b16 %v369
  %v2197 = vunpack.c.l.b16 %v370
  %v2198 = vunpack.c.h.b16 %v370
  %v2199 = vunpack.c.l.b16 %v371
  %v2200 = vunpack.c.h.b16 %v371
  %v2201 = vunpack.c.l.b16 %v372
  %v2202 = vunpack.c.h.b16 %v372
  %v2203 = vunpack.c.l.b16 %v373
  %v2204 = vunpack.c.h.b16 %v373
  %v2205 = vunpack.c.l.b16 %v374
  %v2206 = vunpack.c.h.b16 %v374
  %v2207 = vunpack.c.l.b16 %v375
  %v2208 = vunpack.c.h.b16 %v375
  %v2209 = vunpack.c.l.b16 %v376
  %v2210 = vunpack.c.h.b16 %v376
  %v2211 = vunpack.c.l.b16 %v377
  %v2212 = vunpack.c.h.b16 %v377
  %v2213 = vunpack.c.l.b16 %v378
  %v2214 = vunpack.c.h.b16 %v378
  %v2215 = vunpack.c.l.b16 %v379
  %v2216 = vunpack.c.h.b16 %v379
  %v2217 = vunpack.c.l.b16 %v380
  %v2218 = vunpack.c.h.b16 %v380
  %v2219 = vunpack.c.l.b16 %v381
  %v2220 = vunpack.c.h.b16 %v381
  %v2221 = vunpack.c.l.b16 %v382
  %v2222 = vunpack.c.h.b16 %v382
  %v2223 = vunpack.c.l.b16 %v383
  %v2224 = vunpack.c.h.b16 %v383
  %v2225 = vunpack.c.l.b16 %v384
  %v2226 = vunpack.c.h.b16 %v384
  %v2227 = vunpack.c.l.b16 %v385
  %v2228 = vunpack.c.h.b16 %v385
  %v2229 = vunpack.c.l.b16 %v386
  %v2230 = vunpack.c.h.b16 %v386
  %v2231 = vunpack.c.l.b16 %v387
  %v2232 = vunpack.c.h.b16 %v387
  %v2233 = vunpack.c.l.b16 %v388
  %v2234 = vunpack.c.h.b16 %v388
  %v2235 = vunpack.c.l.b16 %v389
  %v2236 = vunpack.c.h.b16 %v389
  %v2237 = vunpack.c.l.b16 %v390
  %v2238 = vunpack.c.h.b16 %v390
  %v2239 = vunpack.c.l.b16 %v391
  %v2240 = vunpack.c.h.b16 %v391
  %v2241 = vunpack.c.l.b16 %v392
  %v2242 = vunpack.c.h.b16 %v392
  %v2243 = vunpack.c.l.b16 %v393
  %v2244 = vunpack.c.h.b16 %v393
  %v2245 = vunpack.c.l.b16 %v394
  %v2246 = vunpack.c.h.b16 %v394
  %v2247 = vunpack.c.l.b16 %v395
  %v2248 = vunpack.c.h.b16 %v395
  %v2249 = vunpack.c.l.b16 %v396
  %v2250 = vunpack.c.h.b16 %v396
  %v2251 = vunpack.c.l.b16 %v397
  %v2252 = vunpack.c.h.b16 %v397
  %v2253 = vunpack.c.l.b16 %v398
  %v2254 = vunpack.c.h.b16 %v398
  %v2255 = vunpack.c.l.b16 %v399
  %v2256 = vunpack.c.h.b16 %v399
  %v2257 = vunpack.c.l.b16 %v400
  %v2258 = vunpack.c.h.b16 %v400
  %v2259 = vunpack.c.l.b16 %v401
  %v2260 = vunpack.c.h.b16 %v401
  %v2261 = vunpack.c.l.b16 %v402
  %v2262 = vunpack.c.h.b16 %v402
  %v2263 = vunpack.c.l.b16 %v403
  %v2264 = vunpack.c.h.b16 %v403
  %v2265 = vunpack.c.l.b16 %v404
  %v2266 = vunpack.c.h.b16 %v404
  %v2267 = vunpack.c.l.b16 %v405
  %v2268 = vunpack.c.h.b16 %v405
  %v2269 = vunpack.c.l.b16 %v406
  %v2270 = vunpack.c.h.b16 %v406
  %v2271 = vunpack.c.l.b16 %v407
  %v2272 = vunpack.c.h.b16 %v407
  %v2273 = vunpack.c.l.b16 %v408
  %v2274 = vunpack.c.h.b16 %v408
  %v2275 = vunpack.c.l.b16 %v409
  %v2276 = vunpack.c.h.b16 %v409
  %v2277 = vunpack.c.l.b16 %v410
  %v2278 = vunpack.c.h.b16 %v410
  %v2279 = vunpack.c.l.b16 %v411
  %v2280 = vunpack.c.h.b16 %v411
  %v2281 = vunpack.c.l.b16 %v412
  %v2282 = vunpack.c.h.b16 %v412
  %v2283 = vunpack.c.l.b16 %v413
  %v2284 = vunpack.c.h.b16 %v413
  %v2285 = vunpack.c.l.b16 %v414
  %v2286 = vunpack.c.h.b16 %v414
  %v2287 = vunpack.c.l.b16 %v415
  %v2288 = vunpack.c.h.b16 %v415
  %v2289 = vunpack.c.l.b16 %v416
  %v2290 = vunpack.c.h.b16 %v416
  %v2291 = vunpack.c.l.b16 %v417
  %v2292 = vunpack.c.h.b16 %v417
  %v2293 = vunpack.c.l.b16 %v418
  %v2294 = vunpack.c.h.b16 %v418
  %v2295 = vunpack.c.l.b16 %v419
  %v2296 = vunpack.c.h.b16 %v419
  %v2297 = vunpack.c.l.b16 %v420
  %v2298 = vunpack.c.h.b16 %v420
  %v2299 = vunpack.c.l.b16 %v421
  %v2300 = vunpack.c.h.b16 %v421
  %v2301 = vunpack.c.l.b16 %v422
  %v2302 = vunpack.c.h.b16 %v422
  %v2303 = vunpack.c.l.b16 %v423
  %v2304 = vunpack.c.h.b16 %v423
  %v2305 = vunpack.c.l.b16 %v424
  %v2306 = vunpack.c.h.b16 %v424
  %v2307 = vunpack.c.l.b16 %v425
  %v2308 = vunpack.c.h.b16 %v425
  %v2309 = vunpack.c.l.b16 %v426
  %v2310 = vunpack.c.h.b16 %v426
  %v2311 = vunpack.c.l.b16 %v427
  %v2312 = vunpack.c.h.b16 %v427
  %v2313 = vunpack.c.l.b16 %v428
  %v2314 = vunpack.c.h.b16 %v428
  %v2315 = vunpack.c.l.b16 %v429
  %v2316 = vunpack.c.h.b16 %v429
  %v2317 = vunpack.c.l.b16 %v430
  %v2318 = vunpack.c.h.b16 %v430
  %v2319 = vunpack.c.l.b16 %v431
  %v2320 = vunpack.c.h.b16 %v431
  %v2321 = vunpack.c.l.b16 %v432
  %v2322 = vunpack.c.h.b16 %v432
  %v2323 = vunpack.c.l.b16 %v433
  %v2324 = vunpack.c.h.b16 %v433
  %v2325 = vunpack.c.l.b16 %v434
  %v2326 = vunpack.c.h.b16 %v434
  %v2327 = vunpack.c.l.b16 %v435
  %v2328 = vunpack.c.h.b16 %v435
  %v2329 = vunpack.c.l.b16 %v436
  %v2330 = vunpack.c.h.b16 %v436
  %v2331 = vunpack.c.l.b16 %v437
  %v2332 = vunpack.c.h.b16 %v437
  %v2333 = vunpack.c.l.b16 %v438
  %v2334 = vunpack.c.h.b16 %v438
  %v2335 = vunpack.c.l.b16 %v439
  %v2336 = vunpack.c.h.b16 %v439
  %v2337 = vunpack.c.l.b16 %v440
  %v2338 = vunpack.c.h.b16 %v440
  %v2339 = vunpack.c.l.b16 %v441
  %v2340 = vunpack.c.h.b16 %v441
  %v2341 = vunpack.c.l.b16 %v442
  %v2342 = vunpack.c.h.b16 %v442
  %v2343 = vunpack.c.l.b16 %v443
  %v2344 = vunpack.c.h.b16 %v443
  %v2345 = vunpack.c.l.b16 %v444
  %v2346 = vunpack.c.h.b16 %v444
  %v2347 = vunpack.c.l.b16 %v445
  %v2348 = vunpack.c.h.b16 %v445
  %v2349 = vunpack.c.l.b16 %v446
  %v2350 = vunpack.c.h.b16 %v446
  %v2351 = vunpack.c.l.b16 %v447
  %v2352 = vunpack.c.h.b16 %v447
  %v2353 = vunpack.c.l.b16 %v448
  %v2354 = vunpack.c.h.b16 %v448
  %v2355 = vunpack.c.l.b16 %v449
  %v2356 = vunpack.c.h.b16 %v449
  %v2357 = vunpack.c.l.b16 %v450
  %v2358 = vunpack.c.h.b16 %v450
  %v2359 = vunpack.c.l.b16 %v451
  %v2360 = vunpack.c.h.b16 %v451
  %v2361 = vunpack.c.l.b16 %v452
  %v2362 = vunpack.c.h.b16 %v452
  %v2363 = vunpack.c.l.b16 %v453
  %v2364 = vunpack.c.h.b16 %v453
  %v2365 = vunpack.c.l.b16 %v454
  %v2366 = vunpack.c.h.b16 %v454
  %v2367 = vunpack.c.l.b16 %v455
  %v2368 = vunpack.c.h.b16 %v455
  %v2369 = vunpack.c.l.b16 %v456
  %v2370 = vunpack.c.h.b16 %v456
  %v2371 = vunpack.c.l.b16 %v457
  %v2372 = vunpack.c.h.b16 %v457
  %v2373 = vunpack.c.l.b16 %v458
  %v2374 = vunpack.c.h.b16 %v458
  %v2375 = vunpack.c.l.b16 %v459
  %v2376 = vunpack.c.h.b16 %v459
  %v2377 = vunpack.c.l.b16 %v460
  %v2378 = vunpack.c.h.b16 %v460
  %v2379 = vunpack.c.l.b16 %v461
  %v2380 = vunpack.c.h.b16 %v461
  %v2381 = vunpack.c.l.b16 %v462
  %v2382 = vunpack.c.h.b16 %v462
  %v2383 = vunpack.c.l.b16 %v463
  %v2384 = vunpack.c.h.b16 %v463
  %v2385 = vunpack.c.l.b16 %v464
  %v2386 = vunpack.c.h.b16 %v464
  %v2387 = vunpack.c.l.b16 %v465
  %v2388 = vunpack.c.h.b16 %v465
  %v2389 = vunpack.c.l.b16 %v466
  %v2390 = vunpack.c.h.b16 %v466
  %v2391 = vunpack.c.l.b16 %v467
  %v2392 = vunpack.c.h.b16 %v467
  %v2393 = vunpack.c.l.b16 %v468
  %v2394 = vunpack.c.h.b16 %v468
  %v2395 = vunpack.c.l.b16 %v469
  %v2396 = vunpack.c.h.b16 %v469
  %v2397 = vunpack.c.l.b16 %v470
  %v2398 = vunpack.c.h.b16 %v470
  %v2399 = vunpack.c.l.b16 %v471
  %v2400 = vunpack.c.h.b16 %v471
  %v2401 = vunpack.c.l.b16 %v472
  %v2402 = vunpack.c.h.b16 %v472
  %v2403 = vunpack.c.l.b16 %v473
  %v2404 = vunpack.c.h.b16 %v473
  %v2405 = vunpack.c.l.b16 %v474
  %v2406 = vunpack.c.h.b16 %v474
  %v2407 = vunpack.c.l.b16 %v475
  %v2408 = vunpack.c.h.b16 %v475
  %v2409 = vunpack.c.l.b16 %v476
  %v2410 = vunpack.c.h.b16 %v476
  %v2411 = vunpack.c.l.b16 %v477
  %v2412 = vunpack.c.h.b16 %v477
  %v2413 = vunpack.c.l.b16 %v478
  %v2414 = vunpack.c.h.b16 %v478
  %v2415 = vunpack.c.l.b16 %v479
  %v2416 = vunpack.c.h.b16 %v479
  %v2417 = vunpack.c.l.b16 %v480
  %v2418 = vunpack.c.h.b16 %v480
  %v2419 = vunpack.c.l.b16 %v481
  %v2420 = vunpack.c.h.b16 %v481
  %v2421 = vunpack.c.l.b16 %v482
  %v2422 = vunpack.c.h.b16 %v482
  %v2423 = vunpack.c.l.b16 %v483
  %v2424 = vunpack.c.h.b16 %v483
  %v2425 = vunpack.c.l.b16 %v484
  %v2426 = vunpack.c.h.b16 %v484
  %v2427 = vunpack.c.l.b16 %v485
  %v2428 = vunpack.c.h.b16 %v485
  %v2429 = vunpack.c.l.b16 %v486
  %v2430 = vunpack.c.h.b16 %v486
  %v2431 = vunpack.c.l.b16 %v487
  %v2432 = vunpack.c.h.b16 %v487
  %v2433 = vunpack.c.l.b16 %v488
  %v2434 = vunpack.c.h.b16 %v488
  %v2435 = vunpack.c.l.b16 %v489
  %v2436 = vunpack.c.h.b16 %v489
  %v2437 = vunpack.c.l.b16 %v490
  %v2438 = vunpack.c.h.b16 %v490
  %v2439 = vunpack.c.l.b16 %v491
  %v2440 = vunpack.c.h.b16 %v491
  %v2441 = vunpack.c.l.b16 %v492
  %v2442 = vunpack.c.h.b16 %v492
  %v2443 = vunpack.c.l.b16 %v493
  %v2444 = vunpack.c.h.b16 %v493
  %v2445 = vunpack.c.l.b16 %v494
  %v2446 = vunpack.c.h.b16 %v494
  %v2447 = vunpack.c.l.b16 %v495
  %v2448 = vunpack.c.h.b16 %v495
  %v2449 = vunpack.c.l.b16 %v496
  %v2450 = vunpack.c.h.b16 %v496
  %v2451 = vunpack.c.l.b16 %v497
  %v2452 = vunpack.c.h.b16 %v497
  %v2453 = vunpack.c.l.b16 %v498
  %v2454 = vunpack.c.h.b16 %v498
  %v2455 = vunpack.c.l.b16 %v499
  %v2456 = vunpack.c.h.b16 %v499
  %v2457 = vunpack.c.l.b16 %v500
  %v2458 = vunpack.c.h.b16 %v500
  %v2459 = vunpack.c.l.b16 %v501
  %v2460 = vunpack.c.h.b16 %v501
  %v2461 = vunpack.c.l.b16 %v502
  %v2462 = vunpack.c.h.b16 %v502
  %v2463 = vunpack.c.l.b16 %v503
  %v2464 = vunpack.c.h.b16 %v503
  %v2465 = vunpack.c.l.b16 %v504
  %v2466 = vunpack.c.h.b16 %v504
  %v2467 = vunpack.c.l.b16 %v505
  %v2468 = vunpack.c.h.b16 %v505
  %v2469 = vunpack.c.l.b16 %v506
  %v2470 = vunpack.c.h.b16 %v506
  %v2471 = vunpack.c.l.b16 %v507
  %v2472 = vunpack.c.h.b16 %v507
  %v2473 = vunpack.c.l.b16 %v508
  %v2474 = vunpack.c.h.b16 %v508
  %v2475 = vunpack.c.l.b16 %v509
  %v2476 = vunpack.c.h.b16 %v509
  %v2477 = vunpack.c.l.b16 %v510
  %v2478 = vunpack.c.h.b16 %v510
  %v2479 = vunpack.c.l.b16 %v511
  %v2480 = vunpack.c.h.b16 %v511
  %v2481 = vunpack.c.l.b16 %v512
  %v2482 = vunpack.c.h.b16 %v512
  %v2483 = vunpack.c.l.b16 %v513
  %v2484 = vunpack.c.h.b16 %v513
  %v2485 = vunpack.c.l.b16 %v514
  %v2486 = vunpack.c.h.b16 %v514
  %v2487 = vunpack.c.l.b16 %v515
  %v2488 = vunpack.c.h.b16 %v515
  %v2489 = vunpack.c.l.b16 %v516
  %v2490 = vunpack.c.h.b16 %v516
  %v2491 = vunpack.c.l.b16 %v517
  %v2492 = vunpack.c.h.b16 %v517
  %v2493 = vunpack.c.l.b16 %v518
  %v2494 = vunpack.c.h.b16 %v518
  %v2495 = vunpack.c.l.b16 %v519
  %v2496 = vunpack.c.h.b16 %v519
  %v2497 = vunpack.c.l.b16 %v520
  %v2498 = vunpack.c.h.b16 %v520
  %v2499 = vunpack.c.l.b16 %v521
  %v2500 = vunpack.c.h.b16 %v521
  %v2501 = vunpack.c.l.b16 %v522
  %v2502 = vunpack.c.h.b16 %v522
  %v2503 = vunpack.c.l.b16 %v523
  %v2504 = vunpack.c.h.b16 %v523
  %v2505 = vunpack.c.l.b16 %v524
  %v2506 = vunpack.c.h.b16 %v524
  %v2507 = vunpack.c.l.b16 %v525
  %v2508 = vunpack.c.h.b16 %v525
  %v2509 = vunpack.c.l.b16 %v526
  %v2510 = vunpack.c.h.b16 %v526
  %v2511 = vunpack.c.l.b16 %v527
  %v2512 = vunpack.c.h.b16 %v527
  %v2513 = vunpack.c.l.b16 %v528
  %v2514 = vunpack.c.h.b16 %v528
  %v2515 = vunpack.c.l.b16 %v529
  %v2516 = vunpack.c.h.b16 %v529
  %v2517 = vunpack.c.l.b16 %v530
  %v2518 = vunpack.c.h.b16 %v530
  %v2519 = vunpack.c.l.b16 %v531
  %v2520 = vunpack.c.h.b16 %v531
  %v2521 = vunpack.c.l.b16 %v532
  %v2522 = vunpack.c.h.b16 %v532
  %v2523 = vunpack.c.l.b16 %v533
  %v2524 = vunpack.c.h.b16 %v533
  %v2525 = vunpack.c.l.b16 %v534
  %v2526 = vunpack.c.h.b16 %v534
  %v2527 = vunpack.c.l.b16 %v535
  %v2528 = vunpack.c.h.b16 %v535
  %v2529 = vunpack.c.l.b16 %v536
  %v2530 = vunpack.c.h.b16 %v536
  %v2531 = vunpack.c.l.b16 %v537
  %v2532 = vunpack.c.h.b16 %v537
  %v2533 = vunpack.c.l.b16 %v538
  %v2534 = vunpack.c.h.b16 %v538
  %v2535 = vunpack.c.l.b16 %v539
  %v2536 = vunpack.c.h.b16 %v539
  %v2537 = vunpack.c.l.b16 %v540
  %v2538 = vunpack.c.h.b16 %v540
  %v2539 = vunpack.c.l.b16 %v541
  %v2540 = vunpack.c.h.b16 %v541
  %v2541 = vunpack.c.l.b16 %v542
  %v2542 = vunpack.c.h.b16 %v542
  %v2543 = vunpack.c.l.b16 %v543
  %v2544 = vunpack.c.h.b16 %v543
  %v2545 = vunpack.c.l.b16 %v544
  %v2546 = vunpack.c.h.b16 %v544
  %v2547 = vunpack.c.l.b16 %v545
  %v2548 = vunpack.c.h.b16 %v545
  %v2549 = vunpack.c.l.b16 %v546
  %v2550 = vunpack.c.h.b16 %v546
  %v2551 = vunpack.c.l.b16 %v547
  %v2552 = vunpack.c.h.b16 %v547
  %v2553 = vunpack.c.l.b16 %v548
  %v2554 = vunpack.c.h.b16 %v548
  %v2555 = vunpack.c.l.b16 %v549
  %v2556 = vunpack.c.h.b16 %v549
  %v2557 = vunpack.c.l.b16 %v550
  %v2558 = vunpack.c.h.b16 %v550
  %v2559 = vunpack.c.l.b16 %v551
  %v2560 = vunpack.c.h.b16 %v551
  %v2561 = vunpack.c.l.b16 %v552
  %v2562 = vunpack.c.h.b16 %v552
  %v2563 = vunpack.c.l.b16 %v553
  %v2564 = vunpack.c.h.b16 %v553
  %v2565 = vunpack.c.l.b16 %v554
  %v2566 = vunpack.c.h.b16 %v554
  %v2567 = vunpack.c.l.b16 %v555
  %v2568 = vunpack.c.h.b16 %v555
  %v2569 = vunpack.c.l.b16 %v556
  %v2570 = vunpack.c.h.b16 %v556
  %v2571 = vunpack.c.l.b16 %v557
  %v2572 = vunpack.c.h.b16 %v557
  %v2573 = vunpack.c.l.b16 %v558
  %v2574 = vunpack.c.h.b16 %v558
  %v2575 = vunpack.c.l.b16 %v559
  %v2576 = vunpack.c.h.b16 %v559
  %v2577 = vunpack.c.l.b16 %v560
  %v2578 = vunpack.c.h.b16 %v560
  %v2579 = vunpack.c.l.b16 %v561
  %v2580 = vunpack.c.h.b16 %v561
  %v2581 = vunpack.c.l.b16 %v562
  %v2582 = vunpack.c.h.b16 %v562
  %v2583 = vunpack.c.l.b16 %v563
  %v2584 = vunpack.c.h.b16 %v563
  %v2585 = vunpack.c.l.b16 %v564
  %v2586 = vunpack.c.h.b16 %v564
  %v2587 = vunpack.c.l.b16 %v565
  %v2588 = vunpack.c.h.b16 %v565
  %v2589 = vunpack.c.l.b16 %v566
  %v2590 = vunpack.c.h.b16 %v566
  %v2591 = vunpack.c.l.b16 %v567
  %v2592 = vunpack.c.h.b16 %v567
  %v2593 = vunpack.c.l.b16 %v568
  %v2594 = vunpack.c.h.b16 %v568
  %v2595 = vunpack.c.l.b16 %v569
  %v2596 = vunpack.c.h.b16 %v569
  %v2597 = vunpack.c.l.b16 %v570
  %v2598 = vunpack.c.h.b16 %v570
  %v2599 = vunpack.c.l.b16 %v571
  %v2600 = vunpack.c.h.b16 %v571
  %v2601 = vunpack.c.l.b16 %v572
  %v2602 = vunpack.c.h.b16 %v572
  %v2603 = vunpack.c.l.b16 %v573
  %v2604 = vunpack.c.h.b16 %v573
  %v2605 = vunpack.c.l.b16 %v574
  %v2606 = vunpack.c.h.b16 %v574
  %v2607 = vunpack.c.l.b16 %v575
  %v2608 = vunpack.c.h.b16 %v575
  %v2609 = vunpack.c.l.b16 %v576
  %v2610 = vunpack.c.h.b16 %v576
  %v2611 = vunpack.c.l.b16 %v577
  %v2612 = vunpack.c.h.b16 %v577
  %v2613 = vunpack.c.l.b16 %v578
  %v2614 = vunpack.c.h.b16 %v578
  %v2615 = vunpack.c.l.b16 %v579
  %v2616 = vunpack.c.h.b16 %v579
  %v2617 = vunpack.c.l.b16 %v580
  %v2618 = vunpack.c.h.b16 %v580
  %v2619 = vunpack.c.l.b16 %v581
  %v2620 = vunpack.c.h.b16 %v581
  %v2621 = vunpack.c.l.b16 %v582
  %v2622 = vunpack.c.h.b16 %v582
  %v2623 = vunpack.c.l.b16 %v583
  %v2624 = vunpack.c.h.b16 %v583
  %v2625 = vunpack.c.l.b16 %v584
  %v2626 = vunpack.c.h.b16 %v584
  %v2627 = vunpack.c.l.b16 %v585
  %v2628 = vunpack.c.h.b16 %v585
  %v2629 = vunpack.c.l.b16 %v586
  %v2630 = vunpack.c.h.b16 %v586
  %v2631 = vunpack.c.l.b16 %v587
  %v2632 = vunpack.c.h.b16 %v587
  %v2633 = vunpack.c.l.b16 %v588
  %v2634 = vunpack.c.h.b16 %v588
  %v2635 = vunpack.c.l.b16 %v589
  %v2636 = vunpack.c.h.b16 %v589
  %v2637 = vunpack.c.l.b16 %v590
  %v2638 = vunpack.c.h.b16 %v590
  %v2639 = vunpack.c.l.b16 %v591
  %v2640 = vunpack.c.h.b16 %v591
  %v2641 = vunpack.c.l.b16 %v592
  %v2642 = vunpack.c.h.b16 %v592
  %v2643 = vunpack.c.l.b16 %v593
  %v2644 = vunpack.c.h.b16 %v593
  %v2645 = vunpack.c.l.b16 %v594
  %v2646 = vunpack.c.h.b16 %v594
  %v2647 = vunpack.c.l.b16 %v595
  %v2648 = vunpack.c.h.b16 %v595
  %v2649 = vunpack.c.l.b16 %v596
  %v2650 = vunpack.c.h.b16 %v596
  %v2651 = vunpack.c.l.b16 %v597
  %v2652 = vunpack.c.h.b16 %v597
  %v2653 = vunpack.c.l.b16 %v598
  %v2654 = vunpack.c.h.b16 %v598
  %v2655 = vunpack.c.l.b16 %v599
  %v2656 = vunpack.c.h.b16 %v599
  %v2657 = vunpack.c.l.b16 %v600
  %v2658 = vunpack.c.h.b16 %v600
  %v2659 = vunpack.c.l.b16 %v601
  %v2660 = vunpack.c.h.b16 %v601
  %v2661 = vunpack.c.l.b16 %v602
  %v2662 = vunpack.c.h.b16 %v602
  %v2663 = vunpack.c.l.b16 %v603
  %v2664 = vunpack.c.h.b16 %v603
  %v2665 = vunpack.c.l.b16 %v604
  %v2666 = vunpack.c.h.b16 %v604
  %v2667 = vunpack.c.l.b16 %v605
  %v2668 = vunpack.c.h.b16 %v605
  %v2669 = vunpack.c.l.b16 %v606
  %v2670 = vunpack.c.h.b16 %v606
  %v2671 = vunpack.c.l.b16 %v607
  %v2672 = vunpack.c.h.b16 %v607
  %v2673 = vunpack.c.l.b16 %v608
  %v2674 = vunpack.c.h.b16 %v608
  %v2675 = vunpack.c.l.b16 %v609
  %v2676 = vunpack.c.h.b16 %v609
  %v2677 = vunpack.c.l.b16 %v610
  %v2678 = vunpack.c.h.b16 %v610
  %v2679 = vunpack.c.l.b16 %v611
  %v2680 = vunpack.c.h.b16 %v611
  %v2681 = vunpack.c.l.b16 %v612
  %v2682 = vunpack.c.h.b16 %v612
  %v2683 = vunpack.c.l.b16 %v613
  %v2684 = vunpack.c.h.b16 %v613
  %v2685 = vunpack.c.l.b16 %v614
  %v2686 = vunpack.c.h.b16 %v614
  %v2687 = vunpack.c.l.b16 %v615
  %v2688 = vunpack.c.h.b16 %v615
  %v2689 = vunpack.c.l.b16 %v616
  %v2690 = vunpack.c.h.b16 %v616
  %v2691 = vunpack.c.l.b16 %v617
  %v2692 = vunpack.c.h.b16 %v617
  %v2693 = vunpack.c.l.b16 %v618
  %v2694 = vunpack.c.h.b16 %v618
  %v2695 = vunpack.c.l.b16 %v619
  %v2696 = vunpack.c.h.b16 %v619
  %v2697 = vunpack.c.l.b16 %v620
  %v2698 = vunpack.c.h.b16 %v620
  %v2699 = vunpack.c.l.b16 %v621
  %v2700 = vunpack.c.h.b16 %v621
  %v2701 = vunpack.c.l.b16 %v622
  %v2702 = vunpack.c.h.b16 %v622
  %v2703 = vunpack.c.l.b16 %v623
  %v2704 = vunpack.c.h.b16 %v623
  %v2705 = vunpack.c.l.b16 %v624
  %v2706 = vunpack.c.h.b16 %v624
  %v2707 = vunpack.c.l.b16 %v625
  %v2708 = vunpack.c.h.b16 %v625
  %v2709 = vunpack.c.l.b16 %v626
  %v2710 = vunpack.c.h.b16 %v626
  %v2711 = vunpack.c.l.b16 %v627
  %v2712 = vunpack.c.h.b16 %v627
  %v2713 = vunpack.c.l.b16 %v628
  %v2714 = vunpack.c.h.b16 %v628
  %v2715 = vunpack.c.l.b16 %v629
  %v2716 = vunpack.c.h.b16 %v629
  %v2717 = vunpack.c.l.b16 %v630
  %v2718 = vunpack.c.h.b16 %v630
  %v2719 = vunpack.c.l.b16 %v631
  %v2720 = vunpack.c.h.b16 %v631
  %v2721 = vunpack.c.l.b16 %v632
  %v2722 = vunpack.c.h.b16 %v632
  %v2723 = vunpack.c.l.b16 %v633
  %v2724 = vunpack.c.h.b16 %v633
  %v2725 = vunpack.c.l.b16 %v634
  %v2726 = vunpack.c.h.b16 %v634
  %v2727 = vunpack.c.l.b16 %v635
  %v2728 = vunpack.c.h.b16 %v635
  %v2729 = vunpack.c.l.b16 %v636
  %v2730 = vunpack.c.h.b16 %v636
  %v2731 = vunpack.c.l.b16 %v637
  %v2732 = vunpack.c.h.b16 %v637
  %v2733 = vunpack.c.l.b16 %v638
  %v2734 = vunpack.c.h.b16 %v638
  %v2735 = vunpack.c.l.b16 %v639
  %v2736 = vunpack.c.h.b16 %v639
  %v2737 = vunpack.c.l.b16 %v640
  %v2738 = vunpack.c.h.b16 %v640
  %v2739 = vunpack.c.l.b16 %v641
  %v2740 = vunpack.c.h.b16 %v641
  %v2741 = vunpack.c.l.b16 %v642
  %v2742 = vunpack.c.h.b16 %v642
  %v2743 = vunpack.c.l.b16 %v643
  %v2744 = vunpack.c.h.b16 %v643
  %v2745 = vunpack.c.l.b16 %v644
  %v2746 = vunpack.c.h.b16 %v644
  %v2747 = vunpack.c.l.b16 %v645
  %v2748 = vunpack.c.h.b16 %v645
  %v2749 = vunpack.c.l.b16 %v646
  %v2750 = vunpack.c.h.b16 %v646
  %v2751 = vunpack.c.l.b16 %v647
  %v2752 = vunpack.c.h.b16 %v647
  %v2753 = vunpack.c.l.b16 %v648
  %v2754 = vunpack.c.h.b16 %v648
  %v2755 = vunpack.c.l.b16 %v649
  %v2756 = vunpack.c.h.b16 %v649
  %v2757 = vunpack.c.l.b16 %v650
  %v2758 = vunpack.c.h.b16 %v650
  %v2759 = vunpack.c.l.b16 %v651
  %v2760 = vunpack.c.h.b16 %v651
  %v2761 = vunpack.c.l.b16 %v652
  %v2762 = vunpack.c.h.b16 %v652
  %v2763 = vunpack.c.l.b16 %v653
  %v2764 = vunpack.c.h.b16 %v653
  %v2765 = vunpack.c.l.b16 %v654
  %v2766 = vunpack.c.h.b16 %v654
  %v2767 = vunpack.c.l.b16 %v655
  %v2768 = vunpack.c.h.b16 %v655
  %v2769 = vunpack.c.l.b16 %v656
  %v2770 = vunpack.c.h.b16 %v656
  %v2771 = vunpack.c.l.b16 %v657
  %v2772 = vunpack.c.h.b16 %v657
  %v2773 = vunpack.c.l.b16 %v658
  %v2774 = vunpack.c.h.b16 %v658
  %v2775 = vunpack.c.l.b16 %v659
  %v2776 = vunpack.c.h.b16 %v659
  %v2777 = vunpack.c.l.b16 %v660
  %v2778 = vunpack.c.h.b16 %v660
  %v2779 = vunpack.c.l.b16 %v661
  %v2780 = vunpack.c.h.b16 %v661
  %v2781 = vunpack.c.l.b16 %v662
  %v2782 = vunpack.c.h.b16 %v662
  %v2783 = vunpack.c.l.b16 %v663
  %v2784 = vunpack.c.h.b16 %v663
  %v2785 = vunpack.c.l.b16 %v664
  %v2786 = vunpack.c.h.b16 %v664
  %v2787 = vunpack.c.l.b16 %v665
  %v2788 = vunpack.c.h.b16 %v665
  %v2789 = vunpack.c.l.b16 %v666
  %v2790 = vunpack.c.h.b16 %v666
  %v2791 = vunpack.c.l.b16 %v667
  %v2792 = vunpack.c.h.b16 %v667
  %v2793 = vunpack.c.l.b16 %v668
  %v2794 = vunpack.c.h.b16 %v668
  %v2795 = vunpack.c.l.b16 %v669
  %v2796 = vunpack.c.h.b16 %v669
  %v2797 = vunpack.c.l.b16 %v670
  %v2798 = vunpack.c.h.b16 %v670
  %v2799 = vunpack.c.l.b16 %v671
  %v2800 = vunpack.c.h.b16 %v671
  %v2801 = vunpack.c.l.b16 %v672
  %v2802 = vunpack.c.h.b16 %v672
  %v2803 = vunpack.c.l.b16 %v673
  %v2804 = vunpack.c.h.b16 %v673
  %v2805 = vunpack.c.l.b16 %v674
  %v2806 = vunpack.c.h.b16 %v674
  %v2807 = vunpack.c.l.b16 %v675
  %v2808 = vunpack.c.h.b16 %v675
  %v2809 = vunpack.c.l.b16 %v676
  %v2810 = vunpack.c.h.b16 %v676
  %v2811 = vunpack.c.l.b16 %v677
  %v2812 = vunpack.c.h.b16 %v677
  %v2813 = vunpack.c.l.b16 %v678
  %v2814 = vunpack.c.h.b16 %v678
  %v2815 = vpack.c.b16 %v1663, %v1659
  %v2816 = vpack.c.b16 %v1664, %v1660
  %v2817 = vpack.c.b16 %v1665, %v1661
  %v2818 = vpack.c.b16 %v1666, %v1662
  %v2819 = vpack.c.b16 %v1671, %v1667
  %v2820 = vpack.c.b16 %v1672, %v1668
  %v2821 = vpack.c.b16 %v1673, %v1669
  %v2822 = vpack.c.b16 %v1674, %v1670
  %v2823 = vpack.c.b16 %v1679, %v1675
  %v2824 = vpack.c.b16 %v1680, %v1676
  %v2825 = vpack.c.b16 %v1681, %v1677
  %v2826 = vpack.c.b16 %v1682, %v1678
  %v2827 = vpack.c.b16 %v1687, %v1683
  %v2828 = vpack.c.b16 %v1688, %v1684
  %v2829 = vpack.c.b16 %v1689, %v1685
  %v2830 = vpack.c.b16 %v1690, %v1686
  %v2831 = vpack.c.b16 %v1695, %v1691
  %v2832 = vpack.c.b16 %v1696, %v1692
  %v2833 = vpack.c.b16 %v1697, %v1693
  %v2834 = vpack.c.b16 %v1698, %v1694
  %v2835 = vpack.c.b16 %v1703, %v1699
  %v2836 = vpack.c.b16 %v1704, %v1700
  %v2837 = vpack.c.b16 %v1705, %v1701
  %v2838 = vpack.c.b16 %v1706, %v1702
  %v2839 = vpack.c.b16 %v1711, %v1707
  %v2840 = vpack.c.b16 %v1712, %v1708
  %v2841 = vpack.c.b16 %v1713, %v1709
  %v2842 = vpack.c.b16 %v1714, %v1710
  %v2843 = vpack.c.b16 %v1719, %v1715
  %v2844 = vpack.c.b16 %v1720, %v1716
  %v2845 = vpack.c.b16 %v1721, %v1717
  %v2846 = vpack.c.b16 %v1722, %v1718
  %v2847 = vpack.c.b16 %v1727, %v1723
  %v2848 = vpack.c.b16 %v1728, %v1724
  %v2849 = vpack.c.b16 %v1729, %v1725
  %v2850 = vpack.c.b16 %v1730, %v1726
  %v2851 = vpack.c.b16 %v1735, %v1731
  %v2852 = vpack.c.b16 %v1736, %v1732
  %v2853 = vpack.c.b16 %v1737, %v1733
  %v2854 = vpack.c.b16 %v1738, %v1734
  %v2855 = vpack.c.b16 %v1743, %v1739
  %v2856 = vpack.c.b16 %v1744, %v1740
  %v2857 = vpack.c.b16 %v1745, %v1741
  %v2858 = vpack.c.b16 %v1746, %v1742
  %v2859 = vpack.c.b16 %v1751, %v1747
  %v2860 = vpack.c.b16 %v1752, %v1748
  %v2861 = vpack.c.b16 %v1753, %v1749
  %v2862 = vpack.c.b16 %v1754, %v1750
  %v2863 = vpack.c.b16 %v1759, %v1755
  %v2864 = vpack.c.b16 %v1760, %v1756
  %v2865 = vpack.c.b16 %v1761, %v1757
  %v2866 = vpack.c.b16 %v1762, %v1758
  %v2867 = vpack.c.b16 %v1767, %v1763
  %v2868 = vpack.c.b16 %v1768, %v1764
  %v2869 = vpack.c.b16 %v1769, %v1765
  %v2870 = vpack.c.b16 %v1770, %v1766
  %v2871 = vpack.c.b16 %v1775, %v1771
  %v2872 = vpack.c.b16 %v1776, %v1772
  %v2873 = vpack.c.b16 %v1777, %v1773
  %v2874 = vpack.c.b16 %v1778, %v1774
  %v2875 = vpack.c.b16 %v1783, %v1779
  %v2876 = vpack.c.b16 %v1784, %v1780
  %v2877 = vpack.c.b16 %v1785, %v1781
  %v2878 = vpack.c.b16 %v1786, %v1782
  %v2879 = vpack.c.b16 %v1791, %v1787
  %v2880 = vpack.c.b16 %v1792, %v1788
  %v2881 = vpack.c.b16 %v1793, %v1789
  %v2882 = vpack.c.b16 %v1794, %v1790
  %v2883 = vpack.c.b16 %v1799, %v1795
  %v2884 = vpack.c.b16 %v1800, %v1796
  %v2885 = vpack.c.b16 %v1801, %v1797
  %v2886 = vpack.c.b16 %v1802, %v1798
  %v2887 = vpack.c.b16 %v1807, %v1803
  %v2888 = vpack.c.b16 %v1808, %v1804
  %v2889 = vpack.c.b16 %v1809, %v1805
  %v2890 = vpack.c.b16 %v1810, %v1806
  %v2891 = vpack.c.b16 %v1815, %v1811
  %v2892 = vpack.c.b16 %v1816, %v1812
  %v2893 = vpack.c.b16 %v1817, %v1813
  %v2894 = vpack.c.b16 %v1818, %v1814
  %v2895 = vpack.c.b16 %v1823, %v1819
  %v2896 = vpack.c.b16 %v1824, %v1820
  %v2897 = vpack.c.b16 %v1825, %v1821
  %v2898 = vpack.c.b16 %v1826, %v1822
  %v2899 = vpack.c.b16 %v1831, %v1827
  %v2900 = vpack.c.b16 %v1832, %v1828
  %v2901 = vpack.c.b16 %v1833, %v1829
  %v2902 = vpack.c.b16 %v1834, %v1830
  %v2903 = vpack.c.b16 %v1839, %v1835
  %v2904 = vpack.c.b16 %v1840, %v1836
  %v2905 = vpack.c.b16 %v1841, %v1837
  %v2906 = vpack.c.b16 %v1842, %v1838
  %v2907 = vpack.c.b16 %v1847, %v1843
  %v2908 = vpack.c.b16 %v1848, %v1844
  %v2909 = vpack.c.b16 %v1849, %v1845
  %v2910 = vpack.c.b16 %v1850, %v1846
  %v2911 = vpack.c.b16 %v1855, %v1851
  %v2912 = vpack.c.b16 %v1856, %v1852
  %v2913 = vpack.c.b16 %v1857, %v1853
  %v2914 = vpack.c.b16 %v1858, %v1854
  %v2915 = vpack.c.b16 %v1863, %v1859
  %v2916 = vpack.c.b16 %v1864, %v1860
  %v2917 = vpack.c.b16 %v1865, %v1861
  %v2918 = vpack.c.b16 %v1866, %v1862
  %v2919 = vpack.c.b16 %v1871, %v1867
  %v2920 = vpack.c.b16 %v1872, %v1868
  %v2921 = vpack.c.b16 %v1873, %v1869
  %v2922 = vpack.c.b16 %v1874, %v1870
  %v2923 = vpack.c.b16 %v1879, %v1875
  %v2924 = vpack.c.b16 %v1880, %v1876
  %v2925 = vpack.c.b16 %v1881, %v1877
  %v2926 = vpack.c.b16 %v1882, %v1878
  %v2927 = vpack.c.b16 %v1887, %v1883
  %v2928 = vpack.c.b16 %v1888, %v1884
  %v2929 = vpack.c.b16 %v1889, %v1885
  %v2930 = vpack.c.b16 %v1890, %v1886
  %v2931 = vpack.c.b16 %v1895, %v1891
  %v2932 = vpack.c.b16 %v1896, %v1892
  %v2933 = vpack.c.b16 %v1897, %v1893
  %v2934 = vpack.c.b16 %v1898, %v1894
  %v2935 = vpack.c.b16 %v1903, %v1899
  %v2936 = vpack.c.b16 %v1904, %v1900
  %v2937 = vpack.c.b16 %v1905, %v1901
  %v2938 = vpack.c.b16 %v1906, %v1902
  %v2939 = vpack.c.b16 %v1911, %v1907
  %v2940 = vpack.c.b16 %v1912, %v1908
  %v2941 = vpack.c.b16 %v1913, %v1909
  %v2942 = vpack.c.b16 %v1914, %v1910
  %v2943 = vpack.c.b16 %v1919, %v1915
  %v2944 = vpack.c.b16 %v1920, %v1916
  %v2945 = vpack.c.b16 %v1921, %v1917
  %v2946 = vpack.c.b16 %v1922, %v1918
  %v2947 = vpack.c.b16 %v1927, %v1923
  %v2948 = vpack.c.b16 %v1928, %v1924
  %v2949 = vpack.c.b16 %v1929, %v1925
  %v2950 = vpack.c.b16 %v1930, %v1926
  %v2951 = vpack.c.b16 %v1935, %v1931
  %v2952 = vpack.c.b16 %v1936, %v1932
  %v2953 = vpack.c.b16 %v1937, %v1933
  %v2954 = vpack.c.b16 %v1938, %v1934
  %v2955 = vpack.c.b16 %v1943, %v1939
  %v2956 = vpack.c.b16 %v1944, %v1940
  %v2957 = vpack.c.b16 %v1945, %v1941
  %v2958 = vpack.c.b16 %v1946, %v1942
  %v2959 = vpack.c.b16 %v1951, %v1947
  %v2960 = vpack.c.b16 %v1952, %v1948
  %v2961 = vpack.c.b16 %v1953, %v1949
  %v2962 = vpack.c.b16 %v1954, %v1950
  %v2963 = vpack.c.b16 %v1959, %v1955
  %v2964 = vpack.c.b16 %v1960, %v1956
  %v2965 = vpack.c.b16 %v1961, %v1957
  %v2966 = vpack.c.b16 %v1962, %v1958
  %v2967 = vpack.c.b16 %v1967, %v1963
  %v2968 = vpack.c.b16 %v1968, %v1964
  %v2969 = vpack.c.b16 %v1969, %v1965
  %v2970 = vpack.c.b16 %v1970, %v1966
  %v2971 = vpack.c.b16 %v1975, %v1971
  %v2972 = vpack.c.b16 %v1976, %v1972
  %v2973 = vpack.c.b16 %v1977, %v1973
  %v2974 = vpack.c.b16 %v1978, %v1974
  %v2975 = vpack.c.b16 %v1983, %v1979
  %v2976 = vpack.c.b16 %v1984, %v1980
  %v2977 = vpack.c.b16 %v1985, %v1981
  %v2978 = vpack.c.b16 %v1986, %v1982
  %v2979 = vpack.c.b16 %v1991, %v1987
  %v2980 = vpack.c.b16 %v1992, %v1988
  %v2981 = vpack.c.b16 %v1993, %v1989
  %v2982 = vpack.c.b16 %v1994, %v1990
  %v2983 = vpack.c.b16 %v1999, %v1995
  %v2984 = vpack.c.b16 %v2000, %v1996
  %v2985 = vpack.c.b16 %v2001, %v1997
  %v2986 = vpack.c.b16 %v2002, %v1998
  %v2987 = vpack.c.b16 %v2007, %v2003
  %v2988 = vpack.c.b16 %v2008, %v2004
  %v2989 = vpack.c.b16 %v2009, %v2005
  %v2990 = vpack.c.b16 %v2010, %v2006
  %v2991 = vpack.c.b16 %v2015, %v2011
  %v2992 = vpack.c.b16 %v2016, %v2012
  %v2993 = vpack.c.b16 %v2017, %v2013
  %v2994 = vpack.c.b16 %v2018, %v2014
  %v2995 = vpack.c.b16 %v2023, %v2019
  %v2996 = vpack.c.b16 %v2024, %v2020
  %v2997 = vpack.c.b16 %v2025, %v2021
  %v2998 = vpack.c.b16 %v2026, %v2022
  %v2999 = vpack.c.b16 %v2031, %v2027
  %v3000 = vpack.c.b16 %v2032, %v2028
  %v3001 = vpack.c.b16 %v2033, %v2029
  %v3002 = vpack.c.b16 %v2034, %v2030
  %v3003 = vpack.c.b16 %v2039, %v2035
  %v3004 = vpack.c.b16 %v2040, %v2036
  %v3005 = vpack.c.b16 %v2041, %v2037
  %v3006 = vpack.c.b16 %v2042, %v2038
  %v3007 = vpack.c.b16 %v2047, %v2043
  %v3008 = vpack.c.b16 %v2048, %v2044
  %v3009 = vpack.c.b16 %v2049, %v2045
  %v3010 = vpack.c.b16 %v2050, %v2046
  %v3011 = vpack.c.b16 %v2055, %v2051
  %v3012 = vpack.c.b16 %v2056, %v2052
  %v3013 = vpack.c.b16 %v2057, %v2053
  %v3014 = vpack.c.b16 %v2058, %v2054
  %v3015 = vpack.c.b16 %v2063, %v2059
  %v3016 = vpack.c.b16 %v2064, %v2060
  %v3017 = vpack.c.b16 %v2065, %v2061
  %v3018 = vpack.c.b16 %v2066, %v2062
  %v3019 = vpack.c.b16 %v2071, %v2067
  %v3020 = vpack.c.b16 %v2072, %v2068
  %v3021 = vpack.c.b16 %v2073, %v2069
  %v3022 = vpack.c.b16 %v2074, %v2070
  %v3023 = vpack.c.b16 %v2079, %v2075
  %v3024 = vpack.c.b16 %v2080, %v2076
  %v3025 = vpack.c.b16 %v2081, %v2077
  %v3026 = vpack.c.b16 %v2082, %v2078
  %v3027 = vpack.c.b16 %v2087, %v2083
  %v3028 = vpack.c.b16 %v2088, %v2084
  %v3029 = vpack.c.b16 %v2089, %v2085
  %v3030 = vpack.c.b16 %v2090, %v2086
  %v3031 = vpack.c.b16 %v2095, %v2091
  %v3032 = vpack.c.b16 %v2096, %v2092
  %v3033 = vpack.c.b16 %v2097, %v2093
  %v3034 = vpack.c.b16 %v2098, %v2094
  %v3035 = vpack.c.b16 %v2103, %v2099
  %v3036 = vpack.c.b16 %v2104, %v2100
  %v3037 = vpack.c.b16 %v2105, %v2101
  %v3038 = vpack.c.b16 %v2106, %v2102
  %v3039 = vpack.c.b16 %v2111, %v2107
  %v3040 = vpack.c.b16 %v2112, %v2108
  %v3041 = vpack.c.b16 %v2113, %v2109
  %v3042 = vpack.c.b16 %v2114, %v2110
  %v3043 = vpack.c.b16 %v2119, %v2115
  %v3044 = vpack.c.b16 %v2120, %v2116
  %v3045 = vpack.c.b16 %v2121, %v2117
  %v3046 = vpack.c.b16 %v2122, %v2118
  %v3047 = vpack.c.b16 %v2127, %v2123
  %v3048 = vpack.c.b16 %v2128, %v2124
  %v3049 = vpack.c.b16 %v2129, %v2125
  %v3050 = vpack.c.b16 %v2130, %v2126
  %v3051 = vpack.c.b16 %v2135, %v2131
  %v3052 = vpack.c.b16 %v2136, %v2132
  %v3053 = vpack.c.b16 %v2137, %v2133
  %v3054 = vpack.c.b16 %v2138, %v2134
  %v3055 = vpack.c.b16 %v2143, %v2139
  %v3056 = vpack.c.b16 %v2144, %v2140
  %v3057 = vpack.c.b16 %v2145, %v2141
  %v3058 = vpack.c.b16 %v2146, %v2142
  %v3059 = vpack.c.b16 %v2151, %v2147
  %v3060 = vpack.c.b16 %v2152, %v2148
  %v3061 = vpack.c.b16 %v2153, %v2149
  %v3062 = vpack.c.b16 %v2154, %v2150
  %v3063 = vpack.c.b16 %v2159, %v2155
  %v3064 = vpack.c.b16 %v2160, %v2156
  %v3065 = vpack.c.b16 %v2161, %v2157
  %v3066 = vpack.c.b16 %v2162, %v2158
  %v3067 = vpack.c.b16 %v2167, %v2163
  %v3068 = vpack.c.b16 %v2168, %v2164
  %v3069 = vpack.c.b16 %v2169, %v2165
  %v3070 = vpack.c.b16 %v2170, %v2166
  %v3071 = vpack.c.b16 %v2175, %v2171
  %v3072 = vpack.c.b16 %v2176, %v2172
  %v3073 = vpack.c.b16 %v2177, %v2173
  %v3074 = vpack.c.b16 %v2178, %v2174
  %v3075 = vpack.c.b16 %v2183, %v2179
  %v3076 = vpack.c.b16 %v2184, %v2180
  %v3077 = vpack.c.b16 %v2185, %v2181
  %v3078 = vpack.c.b16 %v2186, %v2182
  %v3079 = vpack.c.b16 %v2191, %v2187
  %v3080 = vpack.c.b16 %v2192, %v2188
  %v3081 = vpack.c.b16 %v2193, %v2189
  %v3082 = vpack.c.b16 %v2194, %v2190
  %v3083 = vpack.c.b16 %v2199, %v2195
  %v3084 = vpack.c.b16 %v2200, %v2196
  %v3085 = vpack.c.b16 %v2201, %v2197
  %v3086 = vpack.c.b16 %v2202, %v2198
  %v3087 = vpack.c.b16 %v2207, %v2203
  %v3088 = vpack.c.b16 %v2208, %v2204
  %v3089 = vpack.c.b16 %v2209, %v2205
  %v3090 = vpack.c.b16 %v2210, %v2206
  %v3091 = vpack.c.b16 %v2215, %v2211
  %v3092 = vpack.c.b16 %v2216, %v2212
  %v3093 = vpack.c.b16 %v2217, %v2213
  %v3094 = vpack.c.b16 %v2218, %v2214
  %v3095 = vpack.c.b16 %v2223, %v2219
  %v3096 = vpack.c.b16 %v2224, %v2220
  %v3097 = vpack.c.b16 %v2225, %v2221
  %v3098 = vpack.c.b16 %v2226, %v2222
  %v3099 = vpack.c.b16 %v2231, %v2227
  %v3100 = vpack.c.b16 %v2232, %v2228
  %v3101 = vpack.c.b16 %v2233, %v2229
  %v3102 = vpack.c.b16 %v2234, %v2230
  %v3103 = vpack.c.b16 %v2239, %v2235
  %v3104 = vpack.c.b16 %v2240, %v2236
  %v3105 = vpack.c.b16 %v2241, %v2237
  %v3106 = vpack.c.b16 %v2242, %v2238
  %v3107 = vpack.c.b16 %v2247, %v2243
  %v3108 = vpack.c.b16 %v2248, %v2244
  %v3109 = vpack.c.b16 %v2249, %v2245
  %v3110 = vpack.c.b16 %v2250, %v2246
  %v3111 = vpack.c.b16 %v2255, %v2251
  %v3112 = vpack.c.b16 %v2256, %v2252
  %v3113 = vpack.c.b16 %v2257, %v2253
  %v3114 = vpack.c.b16 %v2258, %v2254
  %v3115 = vpack.c.b16 %v2263, %v2259
  %v3116 = vpack.c.b16 %v2264, %v2260
  %v3117 = vpack.c.b16 %v2265, %v2261
  %v3118 = vpack.c.b16 %v2266, %v2262
  %v3119 = vpack.c.b16 %v2271, %v2267
  %v3120 = vpack.c.b16 %v2272, %v2268
  %v3121 = vpack.c.b16 %v2273, %v2269
  %v3122 = vpack.c.b16 %v2274, %v2270
  %v3123 = vpack.c.b16 %v2279, %v2275
  %v3124 = vpack.c.b16 %v2280, %v2276
  %v3125 = vpack.c.b16 %v2281, %v2277
  %v3126 = vpack.c.b16 %v2282, %v2278
  %v3127 = vpack.c.b16 %v2287, %v2283
  %v3128 = vpack.c.b16 %v2288, %v2284
  %v3129 = vpack.c.b16 %v2289, %v2285
  %v3130 = vpack.c.b16 %v2290, %v2286
  %v3131 = vpack.c.b16 %v2295, %v2291
  %v3132 = vpack.c.b16 %v2296, %v2292
  %v3133 = vpack.c.b16 %v2297, %v2293
  %v3134 = vpack.c.b16 %v2298, %v2294
  %v3135 = vpack.c.b16 %v2303, %v2299
  %v3136 = vpack.c.b16 %v2304, %v2300
  %v3137 = vpack.c.b16 %v2305, %v2301
  %v3138 = vpack.c.b16 %v2306, %v2302
  %v3139 = vpack.c.b16 %v2311, %v2307
  %v3140 = vpack.c.b16 %v2312, %v2308
  %v3141 = vpack.c.b16 %v2313, %v2309
  %v3142 = vpack.c.b16 %v2314, %v2310
  %v3143 = vpack.c.b16 %v2319, %v2315
  %v3144 = vpack.c.b16 %v2320, %v2316
  %v3145 = vpack.c.b16 %v2321, %v2317
  %v3146 = vpack.c.b16 %v2322, %v2318
  %v3147 = vpack.c.b16 %v2327, %v2323
  %v3148 = vpack.c.b16 %v2328, %v2324
  %v3149 = vpack.c.b16 %v2329, %v2325
  %v3150 = vpack.c.b16 %v2330, %v2326
  %v3151 = vpack.c.b16 %v2335, %v2331
  %v3152 = vpack.c.b16 %v2336, %v2332
  %v3153 = vpack.c.b16 %v2337, %v2333
  %v3154 = vpack.c.b16 %v2338, %v2334
  %v3155 = vpack.c.b16 %v2343, %v2339
  %v3156 = vpack.c.b16 %v2344, %v2340
  %v3157 = vpack.c.b16 %v2345, %v2341
  %v3158 = vpack.c.b16 %v2346, %v2342
  %v3159 = vpack.c.b16 %v2351, %v2347
  %v3160 = vpack.c.b16 %v2352, %v2348
  %v3161 = vpack.c.b16 %v2353, %v2349
  %v3162 = vpack.c.b16 %v2354, %v2350
  %v3163 = vpack.c.b16 %v2359, %v2355
  %v3164 = vpack.c.b16 %v2360, %v2356
  %v3165 = vpack.c.b16 %v2361, %v2357
  %v3166 = vpack.c.b16 %v2362, %v2358
  %v3167 = vpack.c.b16 %v2367, %v2363
  %v3168 = vpack.c.b16 %v2368, %v2364
  %v3169 = vpack.c.b16 %v2369, %v2365
  %v3170 = vpack.c.b16 %v2370, %v2366
  %v3171 = vpack.c.b16 %v2375, %v2371
  %v3172 = vpack.c.b16 %v2376, %v2372
  %v3173 = vpack.c.b16 %v2377, %v2373
  %v3174 = vpack.c.b16 %v2378, %v2374
  %v3175 = vpack.c.b16 %v2383, %v2379
  %v3176 = vpack.c.b16 %v2384, %v2380
  %v3177 = vpack.c.b16 %v2385, %v2381
  %v3178 = vpack.c.b16 %v2386, %v2382
  %v3179 = vpack.c.b16 %v2391, %v2387
  %v3180 = vpack.c.b16 %v2392, %v2388
  %v3181 = vpack.c.b16 %v2393, %v2389
  %v3182 = vpack.c.b16 %v2394, %v2390
  %v3183 = vpack.c.b16 %v2399, %v2395
  %v3184 = vpack.c.b16 %v2400, %v2396
  %v3185 = vpack.c.b16 %v2401, %v2397
  %v3186 = vpack.c.b16 %v2402, %v2398
  %v3187 = vpack.c.b16 %v2407, %v2403
  %v3188 = vpack.c.b16 %v2408, %v2404
  %v3189 = vpack.c.b16 %v2409, %v2405
  %v3190 = vpack.c.b16 %v2410, %v2406
  %v3191 = vpack.c.b16 %v2415, %v2411
  %v3192 = vpack.c.b16 %v2416, %v2412
  %v3193 = vpack.c.b16 %v2417, %v2413
  %v3194 = vpack.c.b16 %v2418, %v2414
  %v3195 = vpack.c.b16 %v2423, %v2419
  %v3196 = vpack.c.b16 %v2424, %v2420
  %v3197 = vpack.c.b16 %v2425, %v2421
  %v3198 = vpack.c.b16 %v2426, %v2422
  %v3199 = vpack.c.b16 %v2431, %v2427
  %v3200 = vpack.c.b16 %v2432, %v2428
  %v3201 = vpack.c.b16 %v2433, %v2429
  %v3202 = vpack.c.b16 %v2434, %v2430
  %v3203 = vpack.c.b16 %v2439, %v2435
  %v3204 = vpack.c.b16 %v2440, %v2436
  %v3205 = vpack.c.b16 %v2441, %v2437
  %v3206 = vpack.c.b16 %v2442, %v2438
  %v3207 = vpack.c.b16 %v2447, %v2443
  %v3208 = vpack.c.b16 %v2448, %v2444
  %v3209 = vpack.c.b16 %v2449, %v2445
  %v3210 = vpack.c.b16 %v2450, %v2446
  %v3211 = vpack.c.b16 %v2455, %v2451
  %v3212 = vpack.c.b16 %v2456, %v2452
  %v3213 = vpack.c.b16 %v2457, %v2453
  %v3214 = vpack.c.b16 %v2458, %v2454
  %v3215 = vpack.c.b16 %v2463, %v2459
  %v3216 = vpack.c.b16 %v2464, %v2460
  %v3217 = vpack.c.b16 %v2465, %v2461
  %v3218 = vpack.c.b16 %v2466, %v2462
  %v3219 = vpack.c.b16 %v2471, %v2467
  %v3220 = vpack.c.b16 %v2472, %v2468
  %v3221 = vpack.c.b16 %v2473, %v2469
  %v3222 = vpack.c.b16 %v2474, %v2470
  %v3223 = vpack.c.b16 %v2479, %v2475
  %v3224 = vpack.c.b16 %v2480, %v2476
  %v3225 = vpack.c.b16 %v2481, %v2477
  %v3226 = vpack.c.b16 %v2482, %v2478
  %v3227 = vpack.c.b16 %v2487, %v2483
  %v3228 = vpack.c.b16 %v2488, %v2484
  %v3229 = vpack.c.b16 %v2489, %v2485
  %v3230 = vpack.c.b16 %v2490, %v2486
  %v3231 = vpack.c.b16 %v2495, %v2491
  %v3232 = vpack.c.b16 %v2496, %v2492
  %v3233 = vpack.c.b16 %v2497, %v2493
  %v3234 = vpack.c.b16 %v2498, %v2494
  %v3235 = vpack.c.b16 %v2503, %v2499
  %v3236 = vpack.c.b16 %v2504, %v2500
  %v3237 = vpack.c.b16 %v2505, %v2501
  %v3238 = vpack.c.b16 %v2506, %v2502
  %v3239 = vpack.c.b16 %v2511, %v2507
  %v3240 = vpack.c.b16 %v2512, %v2508
  %v3241 = vpack.c.b16 %v2513, %v2509
  %v3242 = vpack.c.b16 %v2514, %v2510
  %v3243 = vpack.c.b16 %v2519, %v2515
  %v3244 = vpack.c.b16 %v2520, %v2516
  %v3245 = vpack.c.b16 %v2521, %v2517
  %v3246 = vpack.c.b16 %v2522, %v2518
  %v3247 = vpack.c.b16 %v2527, %v2523
  %v3248 = vpack.c.b16 %v2528, %v2524
  %v3249 = vpack.c.b16 %v2529, %v2525
  %v3250 = vpack.c.b16 %v2530, %v2526
  %v3251 = vpack.c.b16 %v2535, %v2531
  %v3252 = vpack.c.b16 %v2536, %v2532
  %v3253 = vpack.c.b16 %v2537, %v2533
  %v3254 = vpack.c.b16 %v2538, %v2534
  %v3255 = vpack.c.b16 %v2543, %v2539
  %v3256 = vpack.c.b16 %v2544, %v2540
  %v3257 = vpack.c.b16 %v2545, %v2541
  %v3258 = vpack.c.b16 %v2546, %v2542
  %v3259 = vpack.c.b16 %v2551, %v2547
  %v3260 = vpack.c.b16 %v2552, %v2548
  %v3261 = vpack.c.b16 %v2553, %v2549
  %v3262 = vpack.c.b16 %v2554, %v2550
  %v3263 = vpack.c.b16 %v2559, %v2555
  %v3264 = vpack.c.b16 %v2560, %v2556
  %v3265 = vpack.c.b16 %v2561, %v2557
  %v3266 = vpack.c.b16 %v2562, %v2558
  %v3267 = vpack.c.b16 %v2567, %v2563
  %v3268 = vpack.c.b16 %v2568, %v2564
  %v3269 = vpack.c.b16 %v2569, %v2565
  %v3270 = vpack.c.b16 %v2570, %v2566
  %v3271 = vpack.c.b16 %v2575, %v2571
  %v3272 = vpack.c.b16 %v2576, %v2572
  %v3273 = vpack.c.b16 %v2577, %v2573
  %v3274 = vpack.c.b16 %v2578, %v2574
  %v3275 = vpack.c.b16 %v2583, %v2579
  %v3276 = vpack.c.b16 %v2584, %v2580
  %v3277 = vpack.c.b16 %v2585, %v2581
  %v3278 = vpack.c.b16 %v2586, %v2582
  %v3279 = vpack.c.b16 %v2591, %v2587
  %v3280 = vpack.c.b16 %v2592, %v2588
  %v3281 = vpack.c.b16 %v2593, %v2589
  %v3282 = vpack.c.b16 %v2594, %v2590
  %v3283 = vpack.c.b16 %v2599, %v2595
  %v3284 = vpack.c.b16 %v2600, %v2596
  %v3285 = vpack.c.b16 %v2601, %v2597
  %v3286 = vpack.c.b16 %v2602, %v2598
  %v3287 = vpack.c.b16 %v2607, %v2603
  %v3288 = vpack.c.b16 %v2608, %v2604
  %v3289 = vpack.c.b16 %v2609, %v2605
  %v3290 = vpack.c.b16 %v2610, %v2606
  %v3291 = vpack.c.b16 %v2615, %v2611
  %v3292 = vpack.c.b16 %v2616, %v2612
  %v3293 = vpack.c.b16 %v2617, %v2613
  %v3294 = vpack.c.b16 %v2618, %v2614
  %v3295 = vpack.c.b16 %v2623, %v2619
  %v3296 = vpack.c.b16 %v2624, %v2620
  %v3297 = vpack.c.b16 %v2625, %v2621
  %v3298 = vpack.c.b16 %v2626, %v2622
  %v3299 = vpack.c.b16 %v2631, %v2627
  %v3300 = vpack.c.b16 %v2632, %v2628
  %v3301 = vpack.c.b16 %v2633, %v2629
  %v3302 = vpack.c.b16 %v2634, %v2630
  %v3303 = vpack.c.b16 %v2639, %v2635
  %v3304 = vpack.c.b16 %v2640, %v2636
  %v3305 = vpack.c.b16 %v2641, %v2637
  %v3306 = vpack.c.b16 %v2642, %v2638
  %v3307 = vpack.c.b16 %v2647, %v2643
  %v3308 = vpack.c.b16 %v2648, %v2644
  %v3309 = vpack.c.b16 %v2649, %v2645
  %v3310 = vpack.c.b16 %v2650, %v2646
  %v3311 = vpack.c.b16 %v2655, %v2651
  %v3312 = vpack.c.b16 %v2656, %v2652
  %v3313 = vpack.c.b16 %v2657, %v2653
  %v3314 = vpack.c.b16 %v2658, %v2654
  %v3315 = vpack.c.b16 %v2663, %v2659
  %v3316 = vpack.c.b16 %v2664, %v2660
  %v3317 = vpack.c.b16 %v2665, %v2661
  %v3318 = vpack.c.b16 %v2666, %v2662
  %v3319 = vpack.c.b16 %v2671, %v2667
  %v3320 = vpack.c.b16 %v2672, %v2668
  %v3321 = vpack.c.b16 %v2673, %v2669
  %v3322 = vpack.c.b16 %v2674, %v2670
  %v3323 = vpack.c.b16 %v2679, %v2675
  %v3324 = vpack.c.b16 %v2680, %v2676
  %v3325 = vpack.c.b16 %v2681, %v2677
  %v3326 = vpack.c.b16 %v2682, %v2678
  %v3327 = vpack.c.b16 %v2687, %v2683
  %v3328 = vpack.c.b16 %v2688, %v2684
  %v3329 = vpack.c.b16 %v2689, %v2685
  %v3330 = vpack.c.b16 %v2690, %v2686
  %v3331 = vpack.c.b16 %v2695, %v2691
  %v3332 = vpack.c.b16 %v2696, %v2692
  %v3333 = vpack.c.b16 %v2697, %v2693
  %v3334 = vpack.c.b16 %v2698, %v2694
  %v3335 = vpack.c.b16 %v2703, %v2699
  %v3336 = vpack.c.b16 %v2704, %v2700
  %v3337 = vpack.c.b16 %v2705, %v2701
  %v3338 = vpack.c.b16 %v2706, %v2702
  %v3339 = vpack.c.b16 %v2711, %v2707
  %v3340 = vpack.c.b16 %v2712, %v2708
  %v3341 = vpack.c.b16 %v2713, %v2709
  %v3342 = vpack.c.b16 %v2714, %v2710
  %v3343 = vpack.c.b16 %v2719, %v2715
  %v3344 = vpack.c.b16 %v2720, %v2716
  %v3345 = vpack.c.b16 %v2721, %v2717
  %v3346 = vpack.c.b16 %v2722, %v2718
  %v3347 = vpack.c.b16 %v2727, %v2723
  %v3348 = vpack.c.b16 %v2728, %v2724
  %v3349 = vpack.c.b16 %v2729, %v2725
  %v3350 = vpack.c.b16 %v2730, %v2726
  %v3351 = vpack.c.b16 %v2735, %v2731
  %v3352 = vpack.c.b16 %v2736, %v2732
  %v3353 = vpack.c.b16 %v2737, %v2733
  %v3354 = vpack.c.b16 %v2738, %v2734
  %v3355 = vpack.c.b16 %v2743, %v2739
  %v3356 = vpack.c.b16 %v2744, %v2740
  %v3357 = vpack.c.b16 %v2745, %v2741
  %v3358 = vpack.c.b16 %v2746, %v2742
  %v3359 = vpack.c.b16 %v2751, %v2747
  %v3360 = vpack.c.b16 %v2752, %v2748
  %v3361 = vpack.c.b16 %v2753, %v2749
  %v3362 = vpack.c.b16 %v2754, %v2750
  %v3363 = vpack.c.b16 %v2759, %v2755
  %v3364 = vpack.c.b16 %v2760, %v2756
  %v3365 = vpack.c.b16 %v2761, %v2757
  %v3366 = vpack.c.b16 %v2762, %v2758
  %v3367 = vpack.c.b16 %v2767, %v2763
  %v3368 = vpack.c.b16 %v2768, %v2764
  %v3369 = vpack.c.b16 %v2769, %v2765
  %v3370 = vpack.c.b16 %v2770, %v2766
  %v3371 = vpack.c.b16 %v2775, %v2771
  %v3372 = vpack.c.b16 %v2776, %v2772
  %v3373 = vpack.c.b16 %v2777, %v2773
  %v3374 = vpack.c.b16 %v2778, %v2774
  %v3375 = vpack.c.b16 %v2783, %v2779
  %v3376 = vpack.c.b16 %v2784, %v2780
  %v3377 = vpack.c.b16 %v2785, %v2781
  %v3378 = vpack.c.b16 %v2786, %v2782
  %v3379 = vpack.c.b16 %v2791, %v2787
  %v3380 = vpack.c.b16 %v2792, %v2788
  %v3381 = vpack.c.b16 %v2793, %v2789
  %v3382 = vpack.c.b16 %v2794, %v2790
  %v3383 = vpack.c.b16 %v2799, %v2795
  %v3384 = vpack.c.b16 %v2800, %v2796
  %v3385 = vpack.c.b16 %v2801, %v2797
  %v3386 = vpack.c.b16 %v2802, %v2798
  %v3387 = vpack.c.b16 %v2807, %v2803
  %v3388 = vpack.c.b16 %v2808, %v2804
  %v3389 = vpack.c.b16 %v2809, %v2805
  %v3390 = vpack.c.b16 %v2810, %v2806
  %v3391 = vpack.c.b16 %v2811, %v2811
  %v3392 = vpack.c.b16 %v2812, %v2812
  %v3393 = vpack.c.b16 %v2813, %v2813
  %v3394 = vpack.c.b16 %v2814, %v2814
  %vm3971 = vcmask 64512
  %v3973 = vsel %vm3971, %v951, 0
  %v3976 = vsel %vm3971, %v970, 0
  %v3979 = vsel %vm3971, %v989, 0
  %v3982 = vsel %vm3971, %v1008, 0
  %vm3984 = vcmask 1043456
  %v3986 = vsel %vm3984, %v3391, 0
  %v3989 = vsel %vm3984, %v3392, 0
  %v3992 = vsel %vm3984, %v3393, 0
  %v3995 = vsel %vm3984, %v3394, 0
  %3997 = vmatprep.subr.bf16.mxu0 %v2844
  %3998 = vmatpush1.bf16.msra.mxu0 %v2843
  %3999 = vmatprep.subr.bf16.mxu0 %v2840
  %4000 = vmatpush1.bf16.msra.mxu0 %v2839
  %4001 = vmatprep.subr.bf16.mxu0 %v2836
  %4002 = vmatpush1.bf16.msra.mxu0 %v2835
  %4003 = vmatprep.subr.bf16.mxu0 %v2832
  %4004 = vmatpush1.bf16.msra.mxu0 %v2831
  %4005 = vmatprep.subr.bf16.mxu0 %v2828
  %4006 = vmatpush1.bf16.msra.mxu0 %v2827
  %4007 = vmatprep.subr.bf16.mxu0 %v2824
  %4008 = vmatpush1.bf16.msra.mxu0 %v2823
  %4009 = vmatprep.subr.bf16.mxu0 %v2820
  %4010 = vmatpush1.bf16.msra.mxu0 %v2819
  %4011 = vmatprep.subr.bf16.mxu0 %v2816
  %4012 = vmatpush1.bf16.msra.mxu0 %v2815
  %4013 = vmatprep.subr.bf16.mxu0 %v2876
  %4014 = vmatpush2.bf16.msra.mxu0 %v2875
  %4015 = vmatprep.subr.bf16.mxu0 %v2872
  %4016 = vmatpush2.bf16.msra.mxu0 %v2871
  %4017 = vmatprep.subr.bf16.mxu0 %v2868
  %4018 = vmatpush2.bf16.msra.mxu0 %v2867
  %4019 = vmatprep.subr.bf16.mxu0 %v2864
  %4020 = vmatpush2.bf16.msra.mxu0 %v2863
  %4021 = vmatprep.subr.bf16.mxu0 %v2860
  %4022 = vmatpush2.bf16.msra.mxu0 %v2859
  %4023 = vmatprep.subr.bf16.mxu0 %v2856
  %4024 = vmatpush2.bf16.msra.mxu0 %v2855
  %4025 = vmatprep.subr.bf16.mxu0 %v2852
  %4026 = vmatpush2.bf16.msra.mxu0 %v2851
  %4027 = vmatprep.subr.bf16.mxu0 %v2848
  %4028 = vmatpush2.bf16.msra.mxu0 %v2847
  %4029 = vmatprep.mubr.bf16.mxu0 %v934
  %4030 = vmatmul.mubr.bf16.gmra.mxu0 %v933
  %v4031 = vpop.f32.mrf.mxu0
  %v4032 = vadd.f32 %v684, %v4031
  %v4033 = vpop.f32.mrf.mxu0
  %v4034 = vadd.f32 %v688, %v4033
  %v4035 = vpop.f32.mrf.mxu0
  %v4036 = vadd.f32 %v684, %v4035
  %v4037 = vpop.f32.mrf.mxu0
  %v4038 = vadd.f32 %v688, %v4037
  %4039 = vmatprep.mubr.bf16.mxu0 %v953
  %4040 = vmatmul.mubr.bf16.gmra.mxu0 %v952
  %v4041 = vpop.f32.mrf.mxu0
  %v4042 = vadd.f32 %v684, %v4041
  %v4043 = vpop.f32.mrf.mxu0
  %v4044 = vadd.f32 %v688, %v4043
  %v4045 = vpop.f32.mrf.mxu0
  %v4046 = vadd.f32 %v684, %v4045
  %v4047 = vpop.f32.mrf.mxu0
  %v4048 = vadd.f32 %v688, %v4047
  %4049 = vmatprep.mubr.bf16.mxu0 %v972
  %4050 = vmatmul.mubr.bf16.gmra.mxu0 %v971
  %v4051 = vpop.f32.mrf.mxu0
  %v4052 = vadd.f32 %v684, %v4051
  %v4053 = vpop.f32.mrf.mxu0
  %v4054 = vadd.f32 %v688, %v4053
  %v4055 = vpop.f32.mrf.mxu0
  %v4056 = vadd.f32 %v684, %v4055
  %v4057 = vpop.f32.mrf.mxu0
  %v4058 = vadd.f32 %v688, %v4057
  %4059 = vmatprep.mubr.bf16.mxu0 %v991
  %4060 = vmatmul.mubr.bf16.gmra.mxu0 %v990
  %v4061 = vpop.f32.mrf.mxu0
  %v4062 = vadd.f32 %v684, %v4061
  %v4063 = vpop.f32.mrf.mxu0
  %v4064 = vadd.f32 %v688, %v4063
  %v4065 = vpop.f32.mrf.mxu0
  %v4066 = vadd.f32 %v684, %v4065
  %v4067 = vpop.f32.mrf.mxu0
  %v4068 = vadd.f32 %v688, %v4067
  %4069 = vdwg.mxu0
  %4070 = vmatprep.subr.bf16.mxu0 %v2908
  %4071 = vmatpush1.bf16.msra.mxu0 %v2907
  %4072 = vmatprep.subr.bf16.mxu0 %v2904
  %4073 = vmatpush1.bf16.msra.mxu0 %v2903
  %4074 = vmatprep.subr.bf16.mxu0 %v2900
  %4075 = vmatpush1.bf16.msra.mxu0 %v2899
  %4076 = vmatprep.subr.bf16.mxu0 %v2896
  %4077 = vmatpush1.bf16.msra.mxu0 %v2895
  %4078 = vmatprep.subr.bf16.mxu0 %v2892
  %4079 = vmatpush1.bf16.msra.mxu0 %v2891
  %4080 = vmatprep.subr.bf16.mxu0 %v2888
  %4081 = vmatpush1.bf16.msra.mxu0 %v2887
  %4082 = vmatprep.subr.bf16.mxu0 %v2884
  %4083 = vmatpush1.bf16.msra.mxu0 %v2883
  %4084 = vmatprep.subr.bf16.mxu0 %v2880
  %4085 = vmatpush1.bf16.msra.mxu0 %v2879
  %4086 = vmatprep.subr.bf16.mxu0 %v2940
  %4087 = vmatpush2.bf16.msra.mxu0 %v2939
  %4088 = vmatprep.subr.bf16.mxu0 %v2936
  %4089 = vmatpush2.bf16.msra.mxu0 %v2935
  %4090 = vmatprep.subr.bf16.mxu0 %v2932
  %4091 = vmatpush2.bf16.msra.mxu0 %v2931
  %4092 = vmatprep.subr.bf16.mxu0 %v2928
  %4093 = vmatpush2.bf16.msra.mxu0 %v2927
  %4094 = vmatprep.subr.bf16.mxu0 %v2924
  %4095 = vmatpush2.bf16.msra.mxu0 %v2923
  %4096 = vmatprep.subr.bf16.mxu0 %v2920
  %4097 = vmatpush2.bf16.msra.mxu0 %v2919
  %4098 = vmatprep.subr.bf16.mxu0 %v2916
  %4099 = vmatpush2.bf16.msra.mxu0 %v2915
  %4100 = vmatprep.subr.bf16.mxu0 %v2912
  %4101 = vmatpush2.bf16.msra.mxu0 %v2911
  %4102 = vmatprep.mubr.bf16.mxu0 %v936
  %4103 = vmatmul.mubr.bf16.gmra.mxu0 %v935
  %v4104 = vpop.f32.mrf.mxu0
  %v4105 = vadd.f32 %v4032, %v4104
  %v4106 = vpop.f32.mrf.mxu0
  %v4107 = vadd.f32 %v4034, %v4106
  %v4108 = vpop.f32.mrf.mxu0
  %v4109 = vadd.f32 %v4036, %v4108
  %v4110 = vpop.f32.mrf.mxu0
  %v4111 = vadd.f32 %v4038, %v4110
  %4112 = vmatprep.mubr.bf16.mxu0 %v955
  %4113 = vmatmul.mubr.bf16.gmra.mxu0 %v954
  %v4114 = vpop.f32.mrf.mxu0
  %v4115 = vadd.f32 %v4042, %v4114
  %v4116 = vpop.f32.mrf.mxu0
  %v4117 = vadd.f32 %v4044, %v4116
  %v4118 = vpop.f32.mrf.mxu0
  %v4119 = vadd.f32 %v4046, %v4118
  %v4120 = vpop.f32.mrf.mxu0
  %v4121 = vadd.f32 %v4048, %v4120
  %4122 = vmatprep.mubr.bf16.mxu0 %v974
  %4123 = vmatmul.mubr.bf16.gmra.mxu0 %v973
  %v4124 = vpop.f32.mrf.mxu0
  %v4125 = vadd.f32 %v4052, %v4124
  %v4126 = vpop.f32.mrf.mxu0
  %v4127 = vadd.f32 %v4054, %v4126
  %v4128 = vpop.f32.mrf.mxu0
  %v4129 = vadd.f32 %v4056, %v4128
  %v4130 = vpop.f32.mrf.mxu0
  %v4131 = vadd.f32 %v4058, %v4130
  %4132 = vmatprep.mubr.bf16.mxu0 %v993
  %4133 = vmatmul.mubr.bf16.gmra.mxu0 %v992
  %v4134 = vpop.f32.mrf.mxu0
  %v4135 = vadd.f32 %v4062, %v4134
  %v4136 = vpop.f32.mrf.mxu0
  %v4137 = vadd.f32 %v4064, %v4136
  %v4138 = vpop.f32.mrf.mxu0
  %v4139 = vadd.f32 %v4066, %v4138
  %v4140 = vpop.f32.mrf.mxu0
  %v4141 = vadd.f32 %v4068, %v4140
  %4142 = vdwg.mxu0
  %4143 = vmatprep.subr.bf16.mxu0 %v2972
  %4144 = vmatpush1.bf16.msra.mxu0 %v2971
  %4145 = vmatprep.subr.bf16.mxu0 %v2968
  %4146 = vmatpush1.bf16.msra.mxu0 %v2967
  %4147 = vmatprep.subr.bf16.mxu0 %v2964
  %4148 = vmatpush1.bf16.msra.mxu0 %v2963
  %4149 = vmatprep.subr.bf16.mxu0 %v2960
  %4150 = vmatpush1.bf16.msra.mxu0 %v2959
  %4151 = vmatprep.subr.bf16.mxu0 %v2956
  %4152 = vmatpush1.bf16.msra.mxu0 %v2955
  %4153 = vmatprep.subr.bf16.mxu0 %v2952
  %4154 = vmatpush1.bf16.msra.mxu0 %v2951
  %4155 = vmatprep.subr.bf16.mxu0 %v2948
  %4156 = vmatpush1.bf16.msra.mxu0 %v2947
  %4157 = vmatprep.subr.bf16.mxu0 %v2944
  %4158 = vmatpush1.bf16.msra.mxu0 %v2943
  %4159 = vmatprep.subr.bf16.mxu0 %v3004
  %4160 = vmatpush2.bf16.msra.mxu0 %v3003
  %4161 = vmatprep.subr.bf16.mxu0 %v3000
  %4162 = vmatpush2.bf16.msra.mxu0 %v2999
  %4163 = vmatprep.subr.bf16.mxu0 %v2996
  %4164 = vmatpush2.bf16.msra.mxu0 %v2995
  %4165 = vmatprep.subr.bf16.mxu0 %v2992
  %4166 = vmatpush2.bf16.msra.mxu0 %v2991
  %4167 = vmatprep.subr.bf16.mxu0 %v2988
  %4168 = vmatpush2.bf16.msra.mxu0 %v2987
  %4169 = vmatprep.subr.bf16.mxu0 %v2984
  %4170 = vmatpush2.bf16.msra.mxu0 %v2983
  %4171 = vmatprep.subr.bf16.mxu0 %v2980
  %4172 = vmatpush2.bf16.msra.mxu0 %v2979
  %4173 = vmatprep.subr.bf16.mxu0 %v2976
  %4174 = vmatpush2.bf16.msra.mxu0 %v2975
  %4175 = vmatprep.mubr.bf16.mxu0 %v938
  %4176 = vmatmul.mubr.bf16.gmra.mxu0 %v937
  %v4177 = vpop.f32.mrf.mxu0
  %v4178 = vadd.f32 %v4105, %v4177
  %v4179 = vpop.f32.mrf.mxu0
  %v4180 = vadd.f32 %v4107, %v4179
  %v4181 = vpop.f32.mrf.mxu0
  %v4182 = vadd.f32 %v4109, %v4181
  %v4183 = vpop.f32.mrf.mxu0
  %v4184 = vadd.f32 %v4111, %v4183
  %4185 = vmatprep.mubr.bf16.mxu0 %v957
  %4186 = vmatmul.mubr.bf16.gmra.mxu0 %v956
  %v4187 = vpop.f32.mrf.mxu0
  %v4188 = vadd.f32 %v4115, %v4187
  %v4189 = vpop.f32.mrf.mxu0
  %v4190 = vadd.f32 %v4117, %v4189
  %v4191 = vpop.f32.mrf.mxu0
  %v4192 = vadd.f32 %v4119, %v4191
  %v4193 = vpop.f32.mrf.mxu0
  %v4194 = vadd.f32 %v4121, %v4193
  %4195 = vmatprep.mubr.bf16.mxu0 %v976
  %4196 = vmatmul.mubr.bf16.gmra.mxu0 %v975
  %v4197 = vpop.f32.mrf.mxu0
  %v4198 = vadd.f32 %v4125, %v4197
  %v4199 = vpop.f32.mrf.mxu0
  %v4200 = vadd.f32 %v4127, %v4199
  %v4201 = vpop.f32.mrf.mxu0
  %v4202 = vadd.f32 %v4129, %v4201
  %v4203 = vpop.f32.mrf.mxu0
  %v4204 = vadd.f32 %v4131, %v4203
  %4205 = vmatprep.mubr.bf16.mxu0 %v995
  %4206 = vmatmul.mubr.bf16.gmra.mxu0 %v994
  %v4207 = vpop.f32.mrf.mxu0
  %v4208 = vadd.f32 %v4135, %v4207
  %v4209 = vpop.f32.mrf.mxu0
  %v4210 = vadd.f32 %v4137, %v4209
  %v4211 = vpop.f32.mrf.mxu0
  %v4212 = vadd.f32 %v4139, %v4211
  %v4213 = vpop.f32.mrf.mxu0
  %v4214 = vadd.f32 %v4141, %v4213
  %4215 = vdwg.mxu0
  %4216 = vmatprep.subr.bf16.mxu0 %v3036
  %4217 = vmatpush1.bf16.msra.mxu0 %v3035
  %4218 = vmatprep.subr.bf16.mxu0 %v3032
  %4219 = vmatpush1.bf16.msra.mxu0 %v3031
  %4220 = vmatprep.subr.bf16.mxu0 %v3028
  %4221 = vmatpush1.bf16.msra.mxu0 %v3027
  %4222 = vmatprep.subr.bf16.mxu0 %v3024
  %4223 = vmatpush1.bf16.msra.mxu0 %v3023
  %4224 = vmatprep.subr.bf16.mxu0 %v3020
  %4225 = vmatpush1.bf16.msra.mxu0 %v3019
  %4226 = vmatprep.subr.bf16.mxu0 %v3016
  %4227 = vmatpush1.bf16.msra.mxu0 %v3015
  %4228 = vmatprep.subr.bf16.mxu0 %v3012
  %4229 = vmatpush1.bf16.msra.mxu0 %v3011
  %4230 = vmatprep.subr.bf16.mxu0 %v3008
  %4231 = vmatpush1.bf16.msra.mxu0 %v3007
  %4232 = vmatprep.subr.bf16.mxu0 %v3068
  %4233 = vmatpush2.bf16.msra.mxu0 %v3067
  %4234 = vmatprep.subr.bf16.mxu0 %v3064
  %4235 = vmatpush2.bf16.msra.mxu0 %v3063
  %4236 = vmatprep.subr.bf16.mxu0 %v3060
  %4237 = vmatpush2.bf16.msra.mxu0 %v3059
  %4238 = vmatprep.subr.bf16.mxu0 %v3056
  %4239 = vmatpush2.bf16.msra.mxu0 %v3055
  %4240 = vmatprep.subr.bf16.mxu0 %v3052
  %4241 = vmatpush2.bf16.msra.mxu0 %v3051
  %4242 = vmatprep.subr.bf16.mxu0 %v3048
  %4243 = vmatpush2.bf16.msra.mxu0 %v3047
  %4244 = vmatprep.subr.bf16.mxu0 %v3044
  %4245 = vmatpush2.bf16.msra.mxu0 %v3043
  %4246 = vmatprep.subr.bf16.mxu0 %v3040
  %4247 = vmatpush2.bf16.msra.mxu0 %v3039
  %4248 = vmatprep.mubr.bf16.mxu0 %v940
  %4249 = vmatmul.mubr.bf16.gmra.mxu0 %v939
  %v4250 = vpop.f32.mrf.mxu0
  %v4251 = vadd.f32 %v4178, %v4250
  %v4252 = vpop.f32.mrf.mxu0
  %v4253 = vadd.f32 %v4180, %v4252
  %v4254 = vpop.f32.mrf.mxu0
  %v4255 = vadd.f32 %v4182, %v4254
  %v4256 = vpop.f32.mrf.mxu0
  %v4257 = vadd.f32 %v4184, %v4256
  %4258 = vmatprep.mubr.bf16.mxu0 %v959
  %4259 = vmatmul.mubr.bf16.gmra.mxu0 %v958
  %v4260 = vpop.f32.mrf.mxu0
  %v4261 = vadd.f32 %v4188, %v4260
  %v4262 = vpop.f32.mrf.mxu0
  %v4263 = vadd.f32 %v4190, %v4262
  %v4264 = vpop.f32.mrf.mxu0
  %v4265 = vadd.f32 %v4192, %v4264
  %v4266 = vpop.f32.mrf.mxu0
  %v4267 = vadd.f32 %v4194, %v4266
  %4268 = vmatprep.mubr.bf16.mxu0 %v978
  %4269 = vmatmul.mubr.bf16.gmra.mxu0 %v977
  %v4270 = vpop.f32.mrf.mxu0
  %v4271 = vadd.f32 %v4198, %v4270
  %v4272 = vpop.f32.mrf.mxu0
  %v4273 = vadd.f32 %v4200, %v4272
  %v4274 = vpop.f32.mrf.mxu0
  %v4275 = vadd.f32 %v4202, %v4274
  %v4276 = vpop.f32.mrf.mxu0
  %v4277 = vadd.f32 %v4204, %v4276
  %4278 = vmatprep.mubr.bf16.mxu0 %v997
  %4279 = vmatmul.mubr.bf16.gmra.mxu0 %v996
  %v4280 = vpop.f32.mrf.mxu0
  %v4281 = vadd.f32 %v4208, %v4280
  %v4282 = vpop.f32.mrf.mxu0
  %v4283 = vadd.f32 %v4210, %v4282
  %v4284 = vpop.f32.mrf.mxu0
  %v4285 = vadd.f32 %v4212, %v4284
  %v4286 = vpop.f32.mrf.mxu0
  %v4287 = vadd.f32 %v4214, %v4286
  %4288 = vdwg.mxu0
  %4289 = vmatprep.subr.bf16.mxu0 %v3100
  %4290 = vmatpush1.bf16.msra.mxu0 %v3099
  %4291 = vmatprep.subr.bf16.mxu0 %v3096
  %4292 = vmatpush1.bf16.msra.mxu0 %v3095
  %4293 = vmatprep.subr.bf16.mxu0 %v3092
  %4294 = vmatpush1.bf16.msra.mxu0 %v3091
  %4295 = vmatprep.subr.bf16.mxu0 %v3088
  %4296 = vmatpush1.bf16.msra.mxu0 %v3087
  %4297 = vmatprep.subr.bf16.mxu0 %v3084
  %4298 = vmatpush1.bf16.msra.mxu0 %v3083
  %4299 = vmatprep.subr.bf16.mxu0 %v3080
  %4300 = vmatpush1.bf16.msra.mxu0 %v3079
  %4301 = vmatprep.subr.bf16.mxu0 %v3076
  %4302 = vmatpush1.bf16.msra.mxu0 %v3075
  %4303 = vmatprep.subr.bf16.mxu0 %v3072
  %4304 = vmatpush1.bf16.msra.mxu0 %v3071
  %4305 = vmatprep.subr.bf16.mxu0 %v3132
  %4306 = vmatpush2.bf16.msra.mxu0 %v3131
  %4307 = vmatprep.subr.bf16.mxu0 %v3128
  %4308 = vmatpush2.bf16.msra.mxu0 %v3127
  %4309 = vmatprep.subr.bf16.mxu0 %v3124
  %4310 = vmatpush2.bf16.msra.mxu0 %v3123
  %4311 = vmatprep.subr.bf16.mxu0 %v3120
  %4312 = vmatpush2.bf16.msra.mxu0 %v3119
  %4313 = vmatprep.subr.bf16.mxu0 %v3116
  %4314 = vmatpush2.bf16.msra.mxu0 %v3115
  %4315 = vmatprep.subr.bf16.mxu0 %v3112
  %4316 = vmatpush2.bf16.msra.mxu0 %v3111
  %4317 = vmatprep.subr.bf16.mxu0 %v3108
  %4318 = vmatpush2.bf16.msra.mxu0 %v3107
  %4319 = vmatprep.subr.bf16.mxu0 %v3104
  %4320 = vmatpush2.bf16.msra.mxu0 %v3103
  %4321 = vmatprep.mubr.bf16.mxu0 %v942
  %4322 = vmatmul.mubr.bf16.gmra.mxu0 %v941
  %v4323 = vpop.f32.mrf.mxu0
  %v4324 = vadd.f32 %v4251, %v4323
  %v4325 = vpop.f32.mrf.mxu0
  %v4326 = vadd.f32 %v4253, %v4325
  %v4327 = vpop.f32.mrf.mxu0
  %v4328 = vadd.f32 %v4255, %v4327
  %v4329 = vpop.f32.mrf.mxu0
  %v4330 = vadd.f32 %v4257, %v4329
  %4331 = vmatprep.mubr.bf16.mxu0 %v961
  %4332 = vmatmul.mubr.bf16.gmra.mxu0 %v960
  %v4333 = vpop.f32.mrf.mxu0
  %v4334 = vadd.f32 %v4261, %v4333
  %v4335 = vpop.f32.mrf.mxu0
  %v4336 = vadd.f32 %v4263, %v4335
  %v4337 = vpop.f32.mrf.mxu0
  %v4338 = vadd.f32 %v4265, %v4337
  %v4339 = vpop.f32.mrf.mxu0
  %v4340 = vadd.f32 %v4267, %v4339
  %4341 = vmatprep.mubr.bf16.mxu0 %v980
  %4342 = vmatmul.mubr.bf16.gmra.mxu0 %v979
  %v4343 = vpop.f32.mrf.mxu0
  %v4344 = vadd.f32 %v4271, %v4343
  %v4345 = vpop.f32.mrf.mxu0
  %v4346 = vadd.f32 %v4273, %v4345
  %v4347 = vpop.f32.mrf.mxu0
  %v4348 = vadd.f32 %v4275, %v4347
  %v4349 = vpop.f32.mrf.mxu0
  %v4350 = vadd.f32 %v4277, %v4349
  %4351 = vmatprep.mubr.bf16.mxu0 %v999
  %4352 = vmatmul.mubr.bf16.gmra.mxu0 %v998
  %v4353 = vpop.f32.mrf.mxu0
  %v4354 = vadd.f32 %v4281, %v4353
  %v4355 = vpop.f32.mrf.mxu0
  %v4356 = vadd.f32 %v4283, %v4355
  %v4357 = vpop.f32.mrf.mxu0
  %v4358 = vadd.f32 %v4285, %v4357
  %v4359 = vpop.f32.mrf.mxu0
  %v4360 = vadd.f32 %v4287, %v4359
  %4361 = vdwg.mxu0
  %4362 = vmatprep.subr.bf16.mxu0 %v3164
  %4363 = vmatpush1.bf16.msra.mxu0 %v3163
  %4364 = vmatprep.subr.bf16.mxu0 %v3160
  %4365 = vmatpush1.bf16.msra.mxu0 %v3159
  %4366 = vmatprep.subr.bf16.mxu0 %v3156
  %4367 = vmatpush1.bf16.msra.mxu0 %v3155
  %4368 = vmatprep.subr.bf16.mxu0 %v3152
  %4369 = vmatpush1.bf16.msra.mxu0 %v3151
  %4370 = vmatprep.subr.bf16.mxu0 %v3148
  %4371 = vmatpush1.bf16.msra.mxu0 %v3147
  %4372 = vmatprep.subr.bf16.mxu0 %v3144
  %4373 = vmatpush1.bf16.msra.mxu0 %v3143
  %4374 = vmatprep.subr.bf16.mxu0 %v3140
  %4375 = vmatpush1.bf16.msra.mxu0 %v3139
  %4376 = vmatprep.subr.bf16.mxu0 %v3136
  %4377 = vmatpush1.bf16.msra.mxu0 %v3135
  %4378 = vmatprep.subr.bf16.mxu0 %v3196
  %4379 = vmatpush2.bf16.msra.mxu0 %v3195
  %4380 = vmatprep.subr.bf16.mxu0 %v3192
  %4381 = vmatpush2.bf16.msra.mxu0 %v3191
  %4382 = vmatprep.subr.bf16.mxu0 %v3188
  %4383 = vmatpush2.bf16.msra.mxu0 %v3187
  %4384 = vmatprep.subr.bf16.mxu0 %v3184
  %4385 = vmatpush2.bf16.msra.mxu0 %v3183
  %4386 = vmatprep.subr.bf16.mxu0 %v3180
  %4387 = vmatpush2.bf16.msra.mxu0 %v3179
  %4388 = vmatprep.subr.bf16.mxu0 %v3176
  %4389 = vmatpush2.bf16.msra.mxu0 %v3175
  %4390 = vmatprep.subr.bf16.mxu0 %v3172
  %4391 = vmatpush2.bf16.msra.mxu0 %v3171
  %4392 = vmatprep.subr.bf16.mxu0 %v3168
  %4393 = vmatpush2.bf16.msra.mxu0 %v3167
  %4394 = vmatprep.mubr.bf16.mxu0 %v944
  %4395 = vmatmul.mubr.bf16.gmra.mxu0 %v943
  %v4396 = vpop.f32.mrf.mxu0
  %v4397 = vadd.f32 %v4324, %v4396
  %v4398 = vpop.f32.mrf.mxu0
  %v4399 = vadd.f32 %v4326, %v4398
  %v4400 = vpop.f32.mrf.mxu0
  %v4401 = vadd.f32 %v4328, %v4400
  %v4402 = vpop.f32.mrf.mxu0
  %v4403 = vadd.f32 %v4330, %v4402
  %4404 = vmatprep.mubr.bf16.mxu0 %v963
  %4405 = vmatmul.mubr.bf16.gmra.mxu0 %v962
  %v4406 = vpop.f32.mrf.mxu0
  %v4407 = vadd.f32 %v4334, %v4406
  %v4408 = vpop.f32.mrf.mxu0
  %v4409 = vadd.f32 %v4336, %v4408
  %v4410 = vpop.f32.mrf.mxu0
  %v4411 = vadd.f32 %v4338, %v4410
  %v4412 = vpop.f32.mrf.mxu0
  %v4413 = vadd.f32 %v4340, %v4412
  %4414 = vmatprep.mubr.bf16.mxu0 %v982
  %4415 = vmatmul.mubr.bf16.gmra.mxu0 %v981
  %v4416 = vpop.f32.mrf.mxu0
  %v4417 = vadd.f32 %v4344, %v4416
  %v4418 = vpop.f32.mrf.mxu0
  %v4419 = vadd.f32 %v4346, %v4418
  %v4420 = vpop.f32.mrf.mxu0
  %v4421 = vadd.f32 %v4348, %v4420
  %v4422 = vpop.f32.mrf.mxu0
  %v4423 = vadd.f32 %v4350, %v4422
  %4424 = vmatprep.mubr.bf16.mxu0 %v1001
  %4425 = vmatmul.mubr.bf16.gmra.mxu0 %v1000
  %v4426 = vpop.f32.mrf.mxu0
  %v4427 = vadd.f32 %v4354, %v4426
  %v4428 = vpop.f32.mrf.mxu0
  %v4429 = vadd.f32 %v4356, %v4428
  %v4430 = vpop.f32.mrf.mxu0
  %v4431 = vadd.f32 %v4358, %v4430
  %v4432 = vpop.f32.mrf.mxu0
  %v4433 = vadd.f32 %v4360, %v4432
  %4434 = vdwg.mxu0
  %4435 = vmatprep.subr.bf16.mxu0 %v3228
  %4436 = vmatpush1.bf16.msra.mxu0 %v3227
  %4437 = vmatprep.subr.bf16.mxu0 %v3224
  %4438 = vmatpush1.bf16.msra.mxu0 %v3223
  %4439 = vmatprep.subr.bf16.mxu0 %v3220
  %4440 = vmatpush1.bf16.msra.mxu0 %v3219
  %4441 = vmatprep.subr.bf16.mxu0 %v3216
  %4442 = vmatpush1.bf16.msra.mxu0 %v3215
  %4443 = vmatprep.subr.bf16.mxu0 %v3212
  %4444 = vmatpush1.bf16.msra.mxu0 %v3211
  %4445 = vmatprep.subr.bf16.mxu0 %v3208
  %4446 = vmatpush1.bf16.msra.mxu0 %v3207
  %4447 = vmatprep.subr.bf16.mxu0 %v3204
  %4448 = vmatpush1.bf16.msra.mxu0 %v3203
  %4449 = vmatprep.subr.bf16.mxu0 %v3200
  %4450 = vmatpush1.bf16.msra.mxu0 %v3199
  %4451 = vmatprep.subr.bf16.mxu0 %v3260
  %4452 = vmatpush2.bf16.msra.mxu0 %v3259
  %4453 = vmatprep.subr.bf16.mxu0 %v3256
  %4454 = vmatpush2.bf16.msra.mxu0 %v3255
  %4455 = vmatprep.subr.bf16.mxu0 %v3252
  %4456 = vmatpush2.bf16.msra.mxu0 %v3251
  %4457 = vmatprep.subr.bf16.mxu0 %v3248
  %4458 = vmatpush2.bf16.msra.mxu0 %v3247
  %4459 = vmatprep.subr.bf16.mxu0 %v3244
  %4460 = vmatpush2.bf16.msra.mxu0 %v3243
  %4461 = vmatprep.subr.bf16.mxu0 %v3240
  %4462 = vmatpush2.bf16.msra.mxu0 %v3239
  %4463 = vmatprep.subr.bf16.mxu0 %v3236
  %4464 = vmatpush2.bf16.msra.mxu0 %v3235
  %4465 = vmatprep.subr.bf16.mxu0 %v3232
  %4466 = vmatpush2.bf16.msra.mxu0 %v3231
  %4467 = vmatprep.mubr.bf16.mxu0 %v946
  %4468 = vmatmul.mubr.bf16.gmra.mxu0 %v945
  %v4469 = vpop.f32.mrf.mxu0
  %v4470 = vadd.f32 %v4397, %v4469
  %v4471 = vpop.f32.mrf.mxu0
  %v4472 = vadd.f32 %v4399, %v4471
  %v4473 = vpop.f32.mrf.mxu0
  %v4474 = vadd.f32 %v4401, %v4473
  %v4475 = vpop.f32.mrf.mxu0
  %v4476 = vadd.f32 %v4403, %v4475
  %4477 = vmatprep.mubr.bf16.mxu0 %v965
  %4478 = vmatmul.mubr.bf16.gmra.mxu0 %v964
  %v4479 = vpop.f32.mrf.mxu0
  %v4480 = vadd.f32 %v4407, %v4479
  %v4481 = vpop.f32.mrf.mxu0
  %v4482 = vadd.f32 %v4409, %v4481
  %v4483 = vpop.f32.mrf.mxu0
  %v4484 = vadd.f32 %v4411, %v4483
  %v4485 = vpop.f32.mrf.mxu0
  %v4486 = vadd.f32 %v4413, %v4485
  %4487 = vmatprep.mubr.bf16.mxu0 %v984
  %4488 = vmatmul.mubr.bf16.gmra.mxu0 %v983
  %v4489 = vpop.f32.mrf.mxu0
  %v4490 = vadd.f32 %v4417, %v4489
  %v4491 = vpop.f32.mrf.mxu0
  %v4492 = vadd.f32 %v4419, %v4491
  %v4493 = vpop.f32.mrf.mxu0
  %v4494 = vadd.f32 %v4421, %v4493
  %v4495 = vpop.f32.mrf.mxu0
  %v4496 = vadd.f32 %v4423, %v4495
  %4497 = vmatprep.mubr.bf16.mxu0 %v1003
  %4498 = vmatmul.mubr.bf16.gmra.mxu0 %v1002
  %v4499 = vpop.f32.mrf.mxu0
  %v4500 = vadd.f32 %v4427, %v4499
  %v4501 = vpop.f32.mrf.mxu0
  %v4502 = vadd.f32 %v4429, %v4501
  %v4503 = vpop.f32.mrf.mxu0
  %v4504 = vadd.f32 %v4431, %v4503
  %v4505 = vpop.f32.mrf.mxu0
  %v4506 = vadd.f32 %v4433, %v4505
  %4507 = vdwg.mxu0
  %4508 = vmatprep.subr.bf16.mxu0 %v3292
  %4509 = vmatpush1.bf16.msra.mxu0 %v3291
  %4510 = vmatprep.subr.bf16.mxu0 %v3288
  %4511 = vmatpush1.bf16.msra.mxu0 %v3287
  %4512 = vmatprep.subr.bf16.mxu0 %v3284
  %4513 = vmatpush1.bf16.msra.mxu0 %v3283
  %4514 = vmatprep.subr.bf16.mxu0 %v3280
  %4515 = vmatpush1.bf16.msra.mxu0 %v3279
  %4516 = vmatprep.subr.bf16.mxu0 %v3276
  %4517 = vmatpush1.bf16.msra.mxu0 %v3275
  %4518 = vmatprep.subr.bf16.mxu0 %v3272
  %4519 = vmatpush1.bf16.msra.mxu0 %v3271
  %4520 = vmatprep.subr.bf16.mxu0 %v3268
  %4521 = vmatpush1.bf16.msra.mxu0 %v3267
  %4522 = vmatprep.subr.bf16.mxu0 %v3264
  %4523 = vmatpush1.bf16.msra.mxu0 %v3263
  %4524 = vmatprep.subr.bf16.mxu0 %v3324
  %4525 = vmatpush2.bf16.msra.mxu0 %v3323
  %4526 = vmatprep.subr.bf16.mxu0 %v3320
  %4527 = vmatpush2.bf16.msra.mxu0 %v3319
  %4528 = vmatprep.subr.bf16.mxu0 %v3316
  %4529 = vmatpush2.bf16.msra.mxu0 %v3315
  %4530 = vmatprep.subr.bf16.mxu0 %v3312
  %4531 = vmatpush2.bf16.msra.mxu0 %v3311
  %4532 = vmatprep.subr.bf16.mxu0 %v3308
  %4533 = vmatpush2.bf16.msra.mxu0 %v3307
  %4534 = vmatprep.subr.bf16.mxu0 %v3304
  %4535 = vmatpush2.bf16.msra.mxu0 %v3303
  %4536 = vmatprep.subr.bf16.mxu0 %v3300
  %4537 = vmatpush2.bf16.msra.mxu0 %v3299
  %4538 = vmatprep.subr.bf16.mxu0 %v3296
  %4539 = vmatpush2.bf16.msra.mxu0 %v3295
  %4540 = vmatprep.mubr.bf16.mxu0 %v948
  %4541 = vmatmul.mubr.bf16.gmra.mxu0 %v947
  %v4542 = vpop.f32.mrf.mxu0
  %v4543 = vadd.f32 %v4470, %v4542
  %v4544 = vpop.f32.mrf.mxu0
  %v4545 = vadd.f32 %v4472, %v4544
  %v4546 = vpop.f32.mrf.mxu0
  %v4547 = vadd.f32 %v4474, %v4546
  %v4548 = vpop.f32.mrf.mxu0
  %v4549 = vadd.f32 %v4476, %v4548
  %4550 = vmatprep.mubr.bf16.mxu0 %v967
  %4551 = vmatmul.mubr.bf16.gmra.mxu0 %v966
  %v4552 = vpop.f32.mrf.mxu0
  %v4553 = vadd.f32 %v4480, %v4552
  %v4554 = vpop.f32.mrf.mxu0
  %v4555 = vadd.f32 %v4482, %v4554
  %v4556 = vpop.f32.mrf.mxu0
  %v4557 = vadd.f32 %v4484, %v4556
  %v4558 = vpop.f32.mrf.mxu0
  %v4559 = vadd.f32 %v4486, %v4558
  %4560 = vmatprep.mubr.bf16.mxu0 %v986
  %4561 = vmatmul.mubr.bf16.gmra.mxu0 %v985
  %v4562 = vpop.f32.mrf.mxu0
  %v4563 = vadd.f32 %v4490, %v4562
  %v4564 = vpop.f32.mrf.mxu0
  %v4565 = vadd.f32 %v4492, %v4564
  %v4566 = vpop.f32.mrf.mxu0
  %v4567 = vadd.f32 %v4494, %v4566
  %v4568 = vpop.f32.mrf.mxu0
  %v4569 = vadd.f32 %v4496, %v4568
  %4570 = vmatprep.mubr.bf16.mxu0 %v1005
  %4571 = vmatmul.mubr.bf16.gmra.mxu0 %v1004
  %v4572 = vpop.f32.mrf.mxu0
  %v4573 = vadd.f32 %v4500, %v4572
  %v4574 = vpop.f32.mrf.mxu0
  %v4575 = vadd.f32 %v4502, %v4574
  %v4576 = vpop.f32.mrf.mxu0
  %v4577 = vadd.f32 %v4504, %v4576
  %v4578 = vpop.f32.mrf.mxu0
  %v4579 = vadd.f32 %v4506, %v4578
  %4580 = vdwg.mxu0
  %4581 = vmatprep.subr.bf16.mxu0 %v3356
  %4582 = vmatpush1.bf16.msra.mxu0 %v3355
  %4583 = vmatprep.subr.bf16.mxu0 %v3352
  %4584 = vmatpush1.bf16.msra.mxu0 %v3351
  %4585 = vmatprep.subr.bf16.mxu0 %v3348
  %4586 = vmatpush1.bf16.msra.mxu0 %v3347
  %4587 = vmatprep.subr.bf16.mxu0 %v3344
  %4588 = vmatpush1.bf16.msra.mxu0 %v3343
  %4589 = vmatprep.subr.bf16.mxu0 %v3340
  %4590 = vmatpush1.bf16.msra.mxu0 %v3339
  %4591 = vmatprep.subr.bf16.mxu0 %v3336
  %4592 = vmatpush1.bf16.msra.mxu0 %v3335
  %4593 = vmatprep.subr.bf16.mxu0 %v3332
  %4594 = vmatpush1.bf16.msra.mxu0 %v3331
  %4595 = vmatprep.subr.bf16.mxu0 %v3328
  %4596 = vmatpush1.bf16.msra.mxu0 %v3327
  %4597 = vmatprep.subr.bf16.mxu0 %v3388
  %4598 = vmatpush2.bf16.msra.mxu0 %v3387
  %4599 = vmatprep.subr.bf16.mxu0 %v3384
  %4600 = vmatpush2.bf16.msra.mxu0 %v3383
  %4601 = vmatprep.subr.bf16.mxu0 %v3380
  %4602 = vmatpush2.bf16.msra.mxu0 %v3379
  %4603 = vmatprep.subr.bf16.mxu0 %v3376
  %4604 = vmatpush2.bf16.msra.mxu0 %v3375
  %4605 = vmatprep.subr.bf16.mxu0 %v3372
  %4606 = vmatpush2.bf16.msra.mxu0 %v3371
  %4607 = vmatprep.subr.bf16.mxu0 %v3368
  %4608 = vmatpush2.bf16.msra.mxu0 %v3367
  %4609 = vmatprep.subr.bf16.mxu0 %v3364
  %4610 = vmatpush2.bf16.msra.mxu0 %v3363
  %4611 = vmatprep.subr.bf16.mxu0 %v3360
  %4612 = vmatpush2.bf16.msra.mxu0 %v3359
  %4613 = vmatprep.mubr.bf16.mxu0 %v950
  %4614 = vmatmul.mubr.bf16.gmra.mxu0 %v949
  %v4615 = vpop.f32.mrf.mxu0
  %v4616 = vadd.f32 %v4543, %v4615
  %v4617 = vpop.f32.mrf.mxu0
  %v4618 = vadd.f32 %v4545, %v4617
  %v4619 = vpop.f32.mrf.mxu0
  %v4620 = vadd.f32 %v4547, %v4619
  %v4621 = vpop.f32.mrf.mxu0
  %v4622 = vadd.f32 %v4549, %v4621
  %4623 = vmatprep.mubr.bf16.mxu0 %v969
  %4624 = vmatmul.mubr.bf16.gmra.mxu0 %v968
  %v4625 = vpop.f32.mrf.mxu0
  %v4626 = vadd.f32 %v4553, %v4625
  %v4627 = vpop.f32.mrf.mxu0
  %v4628 = vadd.f32 %v4555, %v4627
  %v4629 = vpop.f32.mrf.mxu0
  %v4630 = vadd.f32 %v4557, %v4629
  %v4631 = vpop.f32.mrf.mxu0
  %v4632 = vadd.f32 %v4559, %v4631
  %4633 = vmatprep.mubr.bf16.mxu0 %v988
  %4634 = vmatmul.mubr.bf16.gmra.mxu0 %v987
  %v4635 = vpop.f32.mrf.mxu0
  %v4636 = vadd.f32 %v4563, %v4635
  %v4637 = vpop.f32.mrf.mxu0
  %v4638 = vadd.f32 %v4565, %v4637
  %v4639 = vpop.f32.mrf.mxu0
  %v4640 = vadd.f32 %v4567, %v4639
  %v4641 = vpop.f32.mrf.mxu0
  %v4642 = vadd.f32 %v4569, %v4641
  %4643 = vmatprep.mubr.bf16.mxu0 %v1007
  %4644 = vmatmul.mubr.bf16.gmra.mxu0 %v1006
  %v4645 = vpop.f32.mrf.mxu0
  %v4646 = vadd.f32 %v4573, %v4645
  %v4647 = vpop.f32.mrf.mxu0
  %v4648 = vadd.f32 %v4575, %v4647
  %v4649 = vpop.f32.mrf.mxu0
  %v4650 = vadd.f32 %v4577, %v4649
  %v4651 = vpop.f32.mrf.mxu0
  %v4652 = vadd.f32 %v4579, %v4651
  %4653 = vdwg.mxu0
  %4654 = vmatprep.subr.bf16.mxu0 0
  %4655 = vmatpush1.bf16.msra.mxu0 0
  %4656 = vmatprep.subr.bf16.mxu0 0
  %4657 = vmatpush1.bf16.msra.mxu0 0
  %4658 = vmatprep.subr.bf16.mxu0 0
  %4659 = vmatpush1.bf16.msra.mxu0 0
  %4660 = vmatprep.subr.bf16.mxu0 0
  %4661 = vmatpush1.bf16.msra.mxu0 0
  %4662 = vmatprep.subr.bf16.mxu0 0
  %4663 = vmatpush1.bf16.msra.mxu0 0
  %4664 = vmatprep.subr.bf16.mxu0 0
  %4665 = vmatpush1.bf16.msra.mxu0 0
  %4666 = vmatprep.subr.bf16.mxu0 0
  %4667 = vmatpush1.bf16.msra.mxu0 0
  %4668 = vmatprep.subr.bf16.mxu0 %v3989
  %4669 = vmatpush1.bf16.msra.mxu0 %v3986
  %4670 = vmatprep.subr.bf16.mxu0 0
  %4671 = vmatpush2.bf16.msra.mxu0 0
  %4672 = vmatprep.subr.bf16.mxu0 0
  %4673 = vmatpush2.bf16.msra.mxu0 0
  %4674 = vmatprep.subr.bf16.mxu0 0
  %4675 = vmatpush2.bf16.msra.mxu0 0
  %4676 = vmatprep.subr.bf16.mxu0 0
  %4677 = vmatpush2.bf16.msra.mxu0 0
  %4678 = vmatprep.subr.bf16.mxu0 0
  %4679 = vmatpush2.bf16.msra.mxu0 0
  %4680 = vmatprep.subr.bf16.mxu0 0
  %4681 = vmatpush2.bf16.msra.mxu0 0
  %4682 = vmatprep.subr.bf16.mxu0 0
  %4683 = vmatpush2.bf16.msra.mxu0 0
  %4684 = vmatprep.subr.bf16.mxu0 0
  %4685 = vmatpush2.bf16.msra.mxu0 0
  %4686 = vmatprep.mubr.bf16.mxu0 0
  %4687 = vmatmul.mubr.bf16.gmra.mxu0 %v3973
  %v4688 = vpop.f32.mrf.mxu0
  %v4689 = vadd.f32 %v4616, %v4688
  %v4690 = vpop.f32.mrf.mxu0
  %v4691 = vadd.f32 %v4618, %v4690
  %v4692 = vpop.f32.mrf.mxu0
  %v4693 = vadd.f32 %v4620, %v4692
  %v4694 = vpop.f32.mrf.mxu0
  %v4695 = vadd.f32 %v4622, %v4694
  %4696 = vmatprep.mubr.bf16.mxu0 0
  %4697 = vmatmul.mubr.bf16.gmra.mxu0 %v3976
  %v4698 = vpop.f32.mrf.mxu0
  %v4699 = vadd.f32 %v4626, %v4698
  %v4700 = vpop.f32.mrf.mxu0
  %v4701 = vadd.f32 %v4628, %v4700
  %v4702 = vpop.f32.mrf.mxu0
  %v4703 = vadd.f32 %v4630, %v4702
  %v4704 = vpop.f32.mrf.mxu0
  %v4705 = vadd.f32 %v4632, %v4704
  %4706 = vmatprep.mubr.bf16.mxu0 0
  %4707 = vmatmul.mubr.bf16.gmra.mxu0 %v3979
  %v4708 = vpop.f32.mrf.mxu0
  %v4709 = vadd.f32 %v4636, %v4708
  %v4710 = vpop.f32.mrf.mxu0
  %v4711 = vadd.f32 %v4638, %v4710
  %v4712 = vpop.f32.mrf.mxu0
  %v4713 = vadd.f32 %v4640, %v4712
  %v4714 = vpop.f32.mrf.mxu0
  %v4715 = vadd.f32 %v4642, %v4714
  %4716 = vmatprep.mubr.bf16.mxu0 0
  %4717 = vmatmul.mubr.bf16.gmra.mxu0 %v3982
  %v4718 = vpop.f32.mrf.mxu0
  %v4719 = vadd.f32 %v4646, %v4718
  %v4720 = vpop.f32.mrf.mxu0
  %v4721 = vadd.f32 %v4648, %v4720
  %v4722 = vpop.f32.mrf.mxu0
  %v4723 = vadd.f32 %v4650, %v4722
  %v4724 = vpop.f32.mrf.mxu0
  %v4725 = vadd.f32 %v4652, %v4724
  %4726 = vdwg.mxu0
  %4727 = vmatprep.subr.bf16.mxu0 %v2846
  %4728 = vmatpush1.bf16.msra.mxu0 %v2845
  %4729 = vmatprep.subr.bf16.mxu0 %v2842
  %4730 = vmatpush1.bf16.msra.mxu0 %v2841
  %4731 = vmatprep.subr.bf16.mxu0 %v2838
  %4732 = vmatpush1.bf16.msra.mxu0 %v2837
  %4733 = vmatprep.subr.bf16.mxu0 %v2834
  %4734 = vmatpush1.bf16.msra.mxu0 %v2833
  %4735 = vmatprep.subr.bf16.mxu0 %v2830
  %4736 = vmatpush1.bf16.msra.mxu0 %v2829
  %4737 = vmatprep.subr.bf16.mxu0 %v2826
  %4738 = vmatpush1.bf16.msra.mxu0 %v2825
  %4739 = vmatprep.subr.bf16.mxu0 %v2822
  %4740 = vmatpush1.bf16.msra.mxu0 %v2821
  %4741 = vmatprep.subr.bf16.mxu0 %v2818
  %4742 = vmatpush1.bf16.msra.mxu0 %v2817
  %4743 = vmatprep.subr.bf16.mxu0 %v2878
  %4744 = vmatpush2.bf16.msra.mxu0 %v2877
  %4745 = vmatprep.subr.bf16.mxu0 %v2874
  %4746 = vmatpush2.bf16.msra.mxu0 %v2873
  %4747 = vmatprep.subr.bf16.mxu0 %v2870
  %4748 = vmatpush2.bf16.msra.mxu0 %v2869
  %4749 = vmatprep.subr.bf16.mxu0 %v2866
  %4750 = vmatpush2.bf16.msra.mxu0 %v2865
  %4751 = vmatprep.subr.bf16.mxu0 %v2862
  %4752 = vmatpush2.bf16.msra.mxu0 %v2861
  %4753 = vmatprep.subr.bf16.mxu0 %v2858
  %4754 = vmatpush2.bf16.msra.mxu0 %v2857
  %4755 = vmatprep.subr.bf16.mxu0 %v2854
  %4756 = vmatpush2.bf16.msra.mxu0 %v2853
  %4757 = vmatprep.subr.bf16.mxu0 %v2850
  %4758 = vmatpush2.bf16.msra.mxu0 %v2849
  %4759 = vmatprep.mubr.bf16.mxu0 %v934
  %4760 = vmatmul.mubr.bf16.gmra.mxu0 %v933
  %v4761 = vpop.f32.mrf.mxu0
  %v4762 = vadd.f32 %v692, %v4761
  %v4763 = vpop.f32.mrf.mxu0
  %v4764 = vadd.f32 %v696, %v4763
  %v4765 = vpop.f32.mrf.mxu0
  %v4766 = vadd.f32 %v692, %v4765
  %v4767 = vpop.f32.mrf.mxu0
  %v4768 = vadd.f32 %v696, %v4767
  %4769 = vmatprep.mubr.bf16.mxu0 %v953
  %4770 = vmatmul.mubr.bf16.gmra.mxu0 %v952
  %v4771 = vpop.f32.mrf.mxu0
  %v4772 = vadd.f32 %v692, %v4771
  %v4773 = vpop.f32.mrf.mxu0
  %v4774 = vadd.f32 %v696, %v4773
  %v4775 = vpop.f32.mrf.mxu0
  %v4776 = vadd.f32 %v692, %v4775
  %v4777 = vpop.f32.mrf.mxu0
  %v4778 = vadd.f32 %v696, %v4777
  %4779 = vmatprep.mubr.bf16.mxu0 %v972
  %4780 = vmatmul.mubr.bf16.gmra.mxu0 %v971
  %v4781 = vpop.f32.mrf.mxu0
  %v4782 = vadd.f32 %v692, %v4781
  %v4783 = vpop.f32.mrf.mxu0
  %v4784 = vadd.f32 %v696, %v4783
  %v4785 = vpop.f32.mrf.mxu0
  %v4786 = vadd.f32 %v692, %v4785
  %v4787 = vpop.f32.mrf.mxu0
  %v4788 = vadd.f32 %v696, %v4787
  %4789 = vmatprep.mubr.bf16.mxu0 %v991
  %4790 = vmatmul.mubr.bf16.gmra.mxu0 %v990
  %v4791 = vpop.f32.mrf.mxu0
  %v4792 = vadd.f32 %v692, %v4791
  %v4793 = vpop.f32.mrf.mxu0
  %v4794 = vadd.f32 %v696, %v4793
  %v4795 = vpop.f32.mrf.mxu0
  %v4796 = vadd.f32 %v692, %v4795
  %v4797 = vpop.f32.mrf.mxu0
  %v4798 = vadd.f32 %v696, %v4797
  %4799 = vdwg.mxu0
  %4800 = vmatprep.subr.bf16.mxu0 %v2910
  %4801 = vmatpush1.bf16.msra.mxu0 %v2909
  %4802 = vmatprep.subr.bf16.mxu0 %v2906
  %4803 = vmatpush1.bf16.msra.mxu0 %v2905
  %4804 = vmatprep.subr.bf16.mxu0 %v2902
  %4805 = vmatpush1.bf16.msra.mxu0 %v2901
  %4806 = vmatprep.subr.bf16.mxu0 %v2898
  %4807 = vmatpush1.bf16.msra.mxu0 %v2897
  %4808 = vmatprep.subr.bf16.mxu0 %v2894
  %4809 = vmatpush1.bf16.msra.mxu0 %v2893
  %4810 = vmatprep.subr.bf16.mxu0 %v2890
  %4811 = vmatpush1.bf16.msra.mxu0 %v2889
  %4812 = vmatprep.subr.bf16.mxu0 %v2886
  %4813 = vmatpush1.bf16.msra.mxu0 %v2885
  %4814 = vmatprep.subr.bf16.mxu0 %v2882
  %4815 = vmatpush1.bf16.msra.mxu0 %v2881
  %4816 = vmatprep.subr.bf16.mxu0 %v2942
  %4817 = vmatpush2.bf16.msra.mxu0 %v2941
  %4818 = vmatprep.subr.bf16.mxu0 %v2938
  %4819 = vmatpush2.bf16.msra.mxu0 %v2937
  %4820 = vmatprep.subr.bf16.mxu0 %v2934
  %4821 = vmatpush2.bf16.msra.mxu0 %v2933
  %4822 = vmatprep.subr.bf16.mxu0 %v2930
  %4823 = vmatpush2.bf16.msra.mxu0 %v2929
  %4824 = vmatprep.subr.bf16.mxu0 %v2926
  %4825 = vmatpush2.bf16.msra.mxu0 %v2925
  %4826 = vmatprep.subr.bf16.mxu0 %v2922
  %4827 = vmatpush2.bf16.msra.mxu0 %v2921
  %4828 = vmatprep.subr.bf16.mxu0 %v2918
  %4829 = vmatpush2.bf16.msra.mxu0 %v2917
  %4830 = vmatprep.subr.bf16.mxu0 %v2914
  %4831 = vmatpush2.bf16.msra.mxu0 %v2913
  %4832 = vmatprep.mubr.bf16.mxu0 %v936
  %4833 = vmatmul.mubr.bf16.gmra.mxu0 %v935
  %v4834 = vpop.f32.mrf.mxu0
  %v4835 = vadd.f32 %v4762, %v4834
  %v4836 = vpop.f32.mrf.mxu0
  %v4837 = vadd.f32 %v4764, %v4836
  %v4838 = vpop.f32.mrf.mxu0
  %v4839 = vadd.f32 %v4766, %v4838
  %v4840 = vpop.f32.mrf.mxu0
  %v4841 = vadd.f32 %v4768, %v4840
  %4842 = vmatprep.mubr.bf16.mxu0 %v955
  %4843 = vmatmul.mubr.bf16.gmra.mxu0 %v954
  %v4844 = vpop.f32.mrf.mxu0
  %v4845 = vadd.f32 %v4772, %v4844
  %v4846 = vpop.f32.mrf.mxu0
  %v4847 = vadd.f32 %v4774, %v4846
  %v4848 = vpop.f32.mrf.mxu0
  %v4849 = vadd.f32 %v4776, %v4848
  %v4850 = vpop.f32.mrf.mxu0
  %v4851 = vadd.f32 %v4778, %v4850
  %4852 = vmatprep.mubr.bf16.mxu0 %v974
  %4853 = vmatmul.mubr.bf16.gmra.mxu0 %v973
  %v4854 = vpop.f32.mrf.mxu0
  %v4855 = vadd.f32 %v4782, %v4854
  %v4856 = vpop.f32.mrf.mxu0
  %v4857 = vadd.f32 %v4784, %v4856
  %v4858 = vpop.f32.mrf.mxu0
  %v4859 = vadd.f32 %v4786, %v4858
  %v4860 = vpop.f32.mrf.mxu0
  %v4861 = vadd.f32 %v4788, %v4860
  %4862 = vmatprep.mubr.bf16.mxu0 %v993
  %4863 = vmatmul.mubr.bf16.gmra.mxu0 %v992
  %v4864 = vpop.f32.mrf.mxu0
  %v4865 = vadd.f32 %v4792, %v4864
  %v4866 = vpop.f32.mrf.mxu0
  %v4867 = vadd.f32 %v4794, %v4866
  %v4868 = vpop.f32.mrf.mxu0
  %v4869 = vadd.f32 %v4796, %v4868
  %v4870 = vpop.f32.mrf.mxu0
  %v4871 = vadd.f32 %v4798, %v4870
  %4872 = vdwg.mxu0
  %4873 = vmatprep.subr.bf16.mxu0 %v2974
  %4874 = vmatpush1.bf16.msra.mxu0 %v2973
  %4875 = vmatprep.subr.bf16.mxu0 %v2970
  %4876 = vmatpush1.bf16.msra.mxu0 %v2969
  %4877 = vmatprep.subr.bf16.mxu0 %v2966
  %4878 = vmatpush1.bf16.msra.mxu0 %v2965
  %4879 = vmatprep.subr.bf16.mxu0 %v2962
  %4880 = vmatpush1.bf16.msra.mxu0 %v2961
  %4881 = vmatprep.subr.bf16.mxu0 %v2958
  %4882 = vmatpush1.bf16.msra.mxu0 %v2957
  %4883 = vmatprep.subr.bf16.mxu0 %v2954
  %4884 = vmatpush1.bf16.msra.mxu0 %v2953
  %4885 = vmatprep.subr.bf16.mxu0 %v2950
  %4886 = vmatpush1.bf16.msra.mxu0 %v2949
  %4887 = vmatprep.subr.bf16.mxu0 %v2946
  %4888 = vmatpush1.bf16.msra.mxu0 %v2945
  %4889 = vmatprep.subr.bf16.mxu0 %v3006
  %4890 = vmatpush2.bf16.msra.mxu0 %v3005
  %4891 = vmatprep.subr.bf16.mxu0 %v3002
  %4892 = vmatpush2.bf16.msra.mxu0 %v3001
  %4893 = vmatprep.subr.bf16.mxu0 %v2998
  %4894 = vmatpush2.bf16.msra.mxu0 %v2997
  %4895 = vmatprep.subr.bf16.mxu0 %v2994
  %4896 = vmatpush2.bf16.msra.mxu0 %v2993
  %4897 = vmatprep.subr.bf16.mxu0 %v2990
  %4898 = vmatpush2.bf16.msra.mxu0 %v2989
  %4899 = vmatprep.subr.bf16.mxu0 %v2986
  %4900 = vmatpush2.bf16.msra.mxu0 %v2985
  %4901 = vmatprep.subr.bf16.mxu0 %v2982
  %4902 = vmatpush2.bf16.msra.mxu0 %v2981
  %4903 = vmatprep.subr.bf16.mxu0 %v2978
  %4904 = vmatpush2.bf16.msra.mxu0 %v2977
  %4905 = vmatprep.mubr.bf16.mxu0 %v938
  %4906 = vmatmul.mubr.bf16.gmra.mxu0 %v937
  %v4907 = vpop.f32.mrf.mxu0
  %v4908 = vadd.f32 %v4835, %v4907
  %v4909 = vpop.f32.mrf.mxu0
  %v4910 = vadd.f32 %v4837, %v4909
  %v4911 = vpop.f32.mrf.mxu0
  %v4912 = vadd.f32 %v4839, %v4911
  %v4913 = vpop.f32.mrf.mxu0
  %v4914 = vadd.f32 %v4841, %v4913
  %4915 = vmatprep.mubr.bf16.mxu0 %v957
  %4916 = vmatmul.mubr.bf16.gmra.mxu0 %v956
  %v4917 = vpop.f32.mrf.mxu0
  %v4918 = vadd.f32 %v4845, %v4917
  %v4919 = vpop.f32.mrf.mxu0
  %v4920 = vadd.f32 %v4847, %v4919
  %v4921 = vpop.f32.mrf.mxu0
  %v4922 = vadd.f32 %v4849, %v4921
  %v4923 = vpop.f32.mrf.mxu0
  %v4924 = vadd.f32 %v4851, %v4923
  %4925 = vmatprep.mubr.bf16.mxu0 %v976
  %4926 = vmatmul.mubr.bf16.gmra.mxu0 %v975
  %v4927 = vpop.f32.mrf.mxu0
  %v4928 = vadd.f32 %v4855, %v4927
  %v4929 = vpop.f32.mrf.mxu0
  %v4930 = vadd.f32 %v4857, %v4929
  %v4931 = vpop.f32.mrf.mxu0
  %v4932 = vadd.f32 %v4859, %v4931
  %v4933 = vpop.f32.mrf.mxu0
  %v4934 = vadd.f32 %v4861, %v4933
  %4935 = vmatprep.mubr.bf16.mxu0 %v995
  %4936 = vmatmul.mubr.bf16.gmra.mxu0 %v994
  %v4937 = vpop.f32.mrf.mxu0
  %v4938 = vadd.f32 %v4865, %v4937
  %v4939 = vpop.f32.mrf.mxu0
  %v4940 = vadd.f32 %v4867, %v4939
  %v4941 = vpop.f32.mrf.mxu0
  %v4942 = vadd.f32 %v4869, %v4941
  %v4943 = vpop.f32.mrf.mxu0
  %v4944 = vadd.f32 %v4871, %v4943
  %4945 = vdwg.mxu0
  %4946 = vmatprep.subr.bf16.mxu0 %v3038
  %4947 = vmatpush1.bf16.msra.mxu0 %v3037
  %4948 = vmatprep.subr.bf16.mxu0 %v3034
  %4949 = vmatpush1.bf16.msra.mxu0 %v3033
  %4950 = vmatprep.subr.bf16.mxu0 %v3030
  %4951 = vmatpush1.bf16.msra.mxu0 %v3029
  %4952 = vmatprep.subr.bf16.mxu0 %v3026
  %4953 = vmatpush1.bf16.msra.mxu0 %v3025
  %4954 = vmatprep.subr.bf16.mxu0 %v3022
  %4955 = vmatpush1.bf16.msra.mxu0 %v3021
  %4956 = vmatprep.subr.bf16.mxu0 %v3018
  %4957 = vmatpush1.bf16.msra.mxu0 %v3017
  %4958 = vmatprep.subr.bf16.mxu0 %v3014
  %4959 = vmatpush1.bf16.msra.mxu0 %v3013
  %4960 = vmatprep.subr.bf16.mxu0 %v3010
  %4961 = vmatpush1.bf16.msra.mxu0 %v3009
  %4962 = vmatprep.subr.bf16.mxu0 %v3070
  %4963 = vmatpush2.bf16.msra.mxu0 %v3069
  %4964 = vmatprep.subr.bf16.mxu0 %v3066
  %4965 = vmatpush2.bf16.msra.mxu0 %v3065
  %4966 = vmatprep.subr.bf16.mxu0 %v3062
  %4967 = vmatpush2.bf16.msra.mxu0 %v3061
  %4968 = vmatprep.subr.bf16.mxu0 %v3058
  %4969 = vmatpush2.bf16.msra.mxu0 %v3057
  %4970 = vmatprep.subr.bf16.mxu0 %v3054
  %4971 = vmatpush2.bf16.msra.mxu0 %v3053
  %4972 = vmatprep.subr.bf16.mxu0 %v3050
  %4973 = vmatpush2.bf16.msra.mxu0 %v3049
  %4974 = vmatprep.subr.bf16.mxu0 %v3046
  %4975 = vmatpush2.bf16.msra.mxu0 %v3045
  %4976 = vmatprep.subr.bf16.mxu0 %v3042
  %4977 = vmatpush2.bf16.msra.mxu0 %v3041
  %4978 = vmatprep.mubr.bf16.mxu0 %v940
  %4979 = vmatmul.mubr.bf16.gmra.mxu0 %v939
  %v4980 = vpop.f32.mrf.mxu0
  %v4981 = vadd.f32 %v4908, %v4980
  %v4982 = vpop.f32.mrf.mxu0
  %v4983 = vadd.f32 %v4910, %v4982
  %v4984 = vpop.f32.mrf.mxu0
  %v4985 = vadd.f32 %v4912, %v4984
  %v4986 = vpop.f32.mrf.mxu0
  %v4987 = vadd.f32 %v4914, %v4986
  %4988 = vmatprep.mubr.bf16.mxu0 %v959
  %4989 = vmatmul.mubr.bf16.gmra.mxu0 %v958
  %v4990 = vpop.f32.mrf.mxu0
  %v4991 = vadd.f32 %v4918, %v4990
  %v4992 = vpop.f32.mrf.mxu0
  %v4993 = vadd.f32 %v4920, %v4992
  %v4994 = vpop.f32.mrf.mxu0
  %v4995 = vadd.f32 %v4922, %v4994
  %v4996 = vpop.f32.mrf.mxu0
  %v4997 = vadd.f32 %v4924, %v4996
  %4998 = vmatprep.mubr.bf16.mxu0 %v978
  %4999 = vmatmul.mubr.bf16.gmra.mxu0 %v977
  %v5000 = vpop.f32.mrf.mxu0
  %v5001 = vadd.f32 %v4928, %v5000
  %v5002 = vpop.f32.mrf.mxu0
  %v5003 = vadd.f32 %v4930, %v5002
  %v5004 = vpop.f32.mrf.mxu0
  %v5005 = vadd.f32 %v4932, %v5004
  %v5006 = vpop.f32.mrf.mxu0
  %v5007 = vadd.f32 %v4934, %v5006
  %5008 = vmatprep.mubr.bf16.mxu0 %v997
  %5009 = vmatmul.mubr.bf16.gmra.mxu0 %v996
  %v5010 = vpop.f32.mrf.mxu0
  %v5011 = vadd.f32 %v4938, %v5010
  %v5012 = vpop.f32.mrf.mxu0
  %v5013 = vadd.f32 %v4940, %v5012
  %v5014 = vpop.f32.mrf.mxu0
  %v5015 = vadd.f32 %v4942, %v5014
  %v5016 = vpop.f32.mrf.mxu0
  %v5017 = vadd.f32 %v4944, %v5016
  %5018 = vdwg.mxu0
  %5019 = vmatprep.subr.bf16.mxu0 %v3102
  %5020 = vmatpush1.bf16.msra.mxu0 %v3101
  %5021 = vmatprep.subr.bf16.mxu0 %v3098
  %5022 = vmatpush1.bf16.msra.mxu0 %v3097
  %5023 = vmatprep.subr.bf16.mxu0 %v3094
  %5024 = vmatpush1.bf16.msra.mxu0 %v3093
  %5025 = vmatprep.subr.bf16.mxu0 %v3090
  %5026 = vmatpush1.bf16.msra.mxu0 %v3089
  %5027 = vmatprep.subr.bf16.mxu0 %v3086
  %5028 = vmatpush1.bf16.msra.mxu0 %v3085
  %5029 = vmatprep.subr.bf16.mxu0 %v3082
  %5030 = vmatpush1.bf16.msra.mxu0 %v3081
  %5031 = vmatprep.subr.bf16.mxu0 %v3078
  %5032 = vmatpush1.bf16.msra.mxu0 %v3077
  %5033 = vmatprep.subr.bf16.mxu0 %v3074
  %5034 = vmatpush1.bf16.msra.mxu0 %v3073
  %5035 = vmatprep.subr.bf16.mxu0 %v3134
  %5036 = vmatpush2.bf16.msra.mxu0 %v3133
  %5037 = vmatprep.subr.bf16.mxu0 %v3130
  %5038 = vmatpush2.bf16.msra.mxu0 %v3129
  %5039 = vmatprep.subr.bf16.mxu0 %v3126
  %5040 = vmatpush2.bf16.msra.mxu0 %v3125
  %5041 = vmatprep.subr.bf16.mxu0 %v3122
  %5042 = vmatpush2.bf16.msra.mxu0 %v3121
  %5043 = vmatprep.subr.bf16.mxu0 %v3118
  %5044 = vmatpush2.bf16.msra.mxu0 %v3117
  %5045 = vmatprep.subr.bf16.mxu0 %v3114
  %5046 = vmatpush2.bf16.msra.mxu0 %v3113
  %5047 = vmatprep.subr.bf16.mxu0 %v3110
  %5048 = vmatpush2.bf16.msra.mxu0 %v3109
  %5049 = vmatprep.subr.bf16.mxu0 %v3106
  %5050 = vmatpush2.bf16.msra.mxu0 %v3105
  %5051 = vmatprep.mubr.bf16.mxu0 %v942
  %5052 = vmatmul.mubr.bf16.gmra.mxu0 %v941
  %v5053 = vpop.f32.mrf.mxu0
  %v5054 = vadd.f32 %v4981, %v5053
  %v5055 = vpop.f32.mrf.mxu0
  %v5056 = vadd.f32 %v4983, %v5055
  %v5057 = vpop.f32.mrf.mxu0
  %v5058 = vadd.f32 %v4985, %v5057
  %v5059 = vpop.f32.mrf.mxu0
  %v5060 = vadd.f32 %v4987, %v5059
  %5061 = vmatprep.mubr.bf16.mxu0 %v961
  %5062 = vmatmul.mubr.bf16.gmra.mxu0 %v960
  %v5063 = vpop.f32.mrf.mxu0
  %v5064 = vadd.f32 %v4991, %v5063
  %v5065 = vpop.f32.mrf.mxu0
  %v5066 = vadd.f32 %v4993, %v5065
  %v5067 = vpop.f32.mrf.mxu0
  %v5068 = vadd.f32 %v4995, %v5067
  %v5069 = vpop.f32.mrf.mxu0
  %v5070 = vadd.f32 %v4997, %v5069
  %5071 = vmatprep.mubr.bf16.mxu0 %v980
  %5072 = vmatmul.mubr.bf16.gmra.mxu0 %v979
  %v5073 = vpop.f32.mrf.mxu0
  %v5074 = vadd.f32 %v5001, %v5073
  %v5075 = vpop.f32.mrf.mxu0
  %v5076 = vadd.f32 %v5003, %v5075
  %v5077 = vpop.f32.mrf.mxu0
  %v5078 = vadd.f32 %v5005, %v5077
  %v5079 = vpop.f32.mrf.mxu0
  %v5080 = vadd.f32 %v5007, %v5079
  %5081 = vmatprep.mubr.bf16.mxu0 %v999
  %5082 = vmatmul.mubr.bf16.gmra.mxu0 %v998
  %v5083 = vpop.f32.mrf.mxu0
  %v5084 = vadd.f32 %v5011, %v5083
  %v5085 = vpop.f32.mrf.mxu0
  %v5086 = vadd.f32 %v5013, %v5085
  %v5087 = vpop.f32.mrf.mxu0
  %v5088 = vadd.f32 %v5015, %v5087
  %v5089 = vpop.f32.mrf.mxu0
  %v5090 = vadd.f32 %v5017, %v5089
  %5091 = vdwg.mxu0
  %5092 = vmatprep.subr.bf16.mxu0 %v3166
  %5093 = vmatpush1.bf16.msra.mxu0 %v3165
  %5094 = vmatprep.subr.bf16.mxu0 %v3162
  %5095 = vmatpush1.bf16.msra.mxu0 %v3161
  %5096 = vmatprep.subr.bf16.mxu0 %v3158
  %5097 = vmatpush1.bf16.msra.mxu0 %v3157
  %5098 = vmatprep.subr.bf16.mxu0 %v3154
  %5099 = vmatpush1.bf16.msra.mxu0 %v3153
  %5100 = vmatprep.subr.bf16.mxu0 %v3150
  %5101 = vmatpush1.bf16.msra.mxu0 %v3149
  %5102 = vmatprep.subr.bf16.mxu0 %v3146
  %5103 = vmatpush1.bf16.msra.mxu0 %v3145
  %5104 = vmatprep.subr.bf16.mxu0 %v3142
  %5105 = vmatpush1.bf16.msra.mxu0 %v3141
  %5106 = vmatprep.subr.bf16.mxu0 %v3138
  %5107 = vmatpush1.bf16.msra.mxu0 %v3137
  %5108 = vmatprep.subr.bf16.mxu0 %v3198
  %5109 = vmatpush2.bf16.msra.mxu0 %v3197
  %5110 = vmatprep.subr.bf16.mxu0 %v3194
  %5111 = vmatpush2.bf16.msra.mxu0 %v3193
  %5112 = vmatprep.subr.bf16.mxu0 %v3190
  %5113 = vmatpush2.bf16.msra.mxu0 %v3189
  %5114 = vmatprep.subr.bf16.mxu0 %v3186
  %5115 = vmatpush2.bf16.msra.mxu0 %v3185
  %5116 = vmatprep.subr.bf16.mxu0 %v3182
  %5117 = vmatpush2.bf16.msra.mxu0 %v3181
  %5118 = vmatprep.subr.bf16.mxu0 %v3178
  %5119 = vmatpush2.bf16.msra.mxu0 %v3177
  %5120 = vmatprep.subr.bf16.mxu0 %v3174
  %5121 = vmatpush2.bf16.msra.mxu0 %v3173
  %5122 = vmatprep.subr.bf16.mxu0 %v3170
  %5123 = vmatpush2.bf16.msra.mxu0 %v3169
  %5124 = vmatprep.mubr.bf16.mxu0 %v944
  %5125 = vmatmul.mubr.bf16.gmra.mxu0 %v943
  %v5126 = vpop.f32.mrf.mxu0
  %v5127 = vadd.f32 %v5054, %v5126
  %v5128 = vpop.f32.mrf.mxu0
  %v5129 = vadd.f32 %v5056, %v5128
  %v5130 = vpop.f32.mrf.mxu0
  %v5131 = vadd.f32 %v5058, %v5130
  %v5132 = vpop.f32.mrf.mxu0
  %v5133 = vadd.f32 %v5060, %v5132
  %5134 = vmatprep.mubr.bf16.mxu0 %v963
  %5135 = vmatmul.mubr.bf16.gmra.mxu0 %v962
  %v5136 = vpop.f32.mrf.mxu0
  %v5137 = vadd.f32 %v5064, %v5136
  %v5138 = vpop.f32.mrf.mxu0
  %v5139 = vadd.f32 %v5066, %v5138
  %v5140 = vpop.f32.mrf.mxu0
  %v5141 = vadd.f32 %v5068, %v5140
  %v5142 = vpop.f32.mrf.mxu0
  %v5143 = vadd.f32 %v5070, %v5142
  %5144 = vmatprep.mubr.bf16.mxu0 %v982
  %5145 = vmatmul.mubr.bf16.gmra.mxu0 %v981
  %v5146 = vpop.f32.mrf.mxu0
  %v5147 = vadd.f32 %v5074, %v5146
  %v5148 = vpop.f32.mrf.mxu0
  %v5149 = vadd.f32 %v5076, %v5148
  %v5150 = vpop.f32.mrf.mxu0
  %v5151 = vadd.f32 %v5078, %v5150
  %v5152 = vpop.f32.mrf.mxu0
  %v5153 = vadd.f32 %v5080, %v5152
  %5154 = vmatprep.mubr.bf16.mxu0 %v1001
  %5155 = vmatmul.mubr.bf16.gmra.mxu0 %v1000
  %v5156 = vpop.f32.mrf.mxu0
  %v5157 = vadd.f32 %v5084, %v5156
  %v5158 = vpop.f32.mrf.mxu0
  %v5159 = vadd.f32 %v5086, %v5158
  %v5160 = vpop.f32.mrf.mxu0
  %v5161 = vadd.f32 %v5088, %v5160
  %v5162 = vpop.f32.mrf.mxu0
  %v5163 = vadd.f32 %v5090, %v5162
  %5164 = vdwg.mxu0
  %5165 = vmatprep.subr.bf16.mxu0 %v3230
  %5166 = vmatpush1.bf16.msra.mxu0 %v3229
  %5167 = vmatprep.subr.bf16.mxu0 %v3226
  %5168 = vmatpush1.bf16.msra.mxu0 %v3225
  %5169 = vmatprep.subr.bf16.mxu0 %v3222
  %5170 = vmatpush1.bf16.msra.mxu0 %v3221
  %5171 = vmatprep.subr.bf16.mxu0 %v3218
  %5172 = vmatpush1.bf16.msra.mxu0 %v3217
  %5173 = vmatprep.subr.bf16.mxu0 %v3214
  %5174 = vmatpush1.bf16.msra.mxu0 %v3213
  %5175 = vmatprep.subr.bf16.mxu0 %v3210
  %5176 = vmatpush1.bf16.msra.mxu0 %v3209
  %5177 = vmatprep.subr.bf16.mxu0 %v3206
  %5178 = vmatpush1.bf16.msra.mxu0 %v3205
  %5179 = vmatprep.subr.bf16.mxu0 %v3202
  %5180 = vmatpush1.bf16.msra.mxu0 %v3201
  %5181 = vmatprep.subr.bf16.mxu0 %v3262
  %5182 = vmatpush2.bf16.msra.mxu0 %v3261
  %5183 = vmatprep.subr.bf16.mxu0 %v3258
  %5184 = vmatpush2.bf16.msra.mxu0 %v3257
  %5185 = vmatprep.subr.bf16.mxu0 %v3254
  %5186 = vmatpush2.bf16.msra.mxu0 %v3253
  %5187 = vmatprep.subr.bf16.mxu0 %v3250
  %5188 = vmatpush2.bf16.msra.mxu0 %v3249
  %5189 = vmatprep.subr.bf16.mxu0 %v3246
  %5190 = vmatpush2.bf16.msra.mxu0 %v3245
  %5191 = vmatprep.subr.bf16.mxu0 %v3242
  %5192 = vmatpush2.bf16.msra.mxu0 %v3241
  %5193 = vmatprep.subr.bf16.mxu0 %v3238
  %5194 = vmatpush2.bf16.msra.mxu0 %v3237
  %5195 = vmatprep.subr.bf16.mxu0 %v3234
  %5196 = vmatpush2.bf16.msra.mxu0 %v3233
  %5197 = vmatprep.mubr.bf16.mxu0 %v946
  %5198 = vmatmul.mubr.bf16.gmra.mxu0 %v945
  %v5199 = vpop.f32.mrf.mxu0
  %v5200 = vadd.f32 %v5127, %v5199
  %v5201 = vpop.f32.mrf.mxu0
  %v5202 = vadd.f32 %v5129, %v5201
  %v5203 = vpop.f32.mrf.mxu0
  %v5204 = vadd.f32 %v5131, %v5203
  %v5205 = vpop.f32.mrf.mxu0
  %v5206 = vadd.f32 %v5133, %v5205
  %5207 = vmatprep.mubr.bf16.mxu0 %v965
  %5208 = vmatmul.mubr.bf16.gmra.mxu0 %v964
  %v5209 = vpop.f32.mrf.mxu0
  %v5210 = vadd.f32 %v5137, %v5209
  %v5211 = vpop.f32.mrf.mxu0
  %v5212 = vadd.f32 %v5139, %v5211
  %v5213 = vpop.f32.mrf.mxu0
  %v5214 = vadd.f32 %v5141, %v5213
  %v5215 = vpop.f32.mrf.mxu0
  %v5216 = vadd.f32 %v5143, %v5215
  %5217 = vmatprep.mubr.bf16.mxu0 %v984
  %5218 = vmatmul.mubr.bf16.gmra.mxu0 %v983
  %v5219 = vpop.f32.mrf.mxu0
  %v5220 = vadd.f32 %v5147, %v5219
  %v5221 = vpop.f32.mrf.mxu0
  %v5222 = vadd.f32 %v5149, %v5221
  %v5223 = vpop.f32.mrf.mxu0
  %v5224 = vadd.f32 %v5151, %v5223
  %v5225 = vpop.f32.mrf.mxu0
  %v5226 = vadd.f32 %v5153, %v5225
  %5227 = vmatprep.mubr.bf16.mxu0 %v1003
  %5228 = vmatmul.mubr.bf16.gmra.mxu0 %v1002
  %v5229 = vpop.f32.mrf.mxu0
  %v5230 = vadd.f32 %v5157, %v5229
  %v5231 = vpop.f32.mrf.mxu0
  %v5232 = vadd.f32 %v5159, %v5231
  %v5233 = vpop.f32.mrf.mxu0
  %v5234 = vadd.f32 %v5161, %v5233
  %v5235 = vpop.f32.mrf.mxu0
  %v5236 = vadd.f32 %v5163, %v5235
  %5237 = vdwg.mxu0
  %5238 = vmatprep.subr.bf16.mxu0 %v3294
  %5239 = vmatpush1.bf16.msra.mxu0 %v3293
  %5240 = vmatprep.subr.bf16.mxu0 %v3290
  %5241 = vmatpush1.bf16.msra.mxu0 %v3289
  %5242 = vmatprep.subr.bf16.mxu0 %v3286
  %5243 = vmatpush1.bf16.msra.mxu0 %v3285
  %5244 = vmatprep.subr.bf16.mxu0 %v3282
  %5245 = vmatpush1.bf16.msra.mxu0 %v3281
  %5246 = vmatprep.subr.bf16.mxu0 %v3278
  %5247 = vmatpush1.bf16.msra.mxu0 %v3277
  %5248 = vmatprep.subr.bf16.mxu0 %v3274
  %5249 = vmatpush1.bf16.msra.mxu0 %v3273
  %5250 = vmatprep.subr.bf16.mxu0 %v3270
  %5251 = vmatpush1.bf16.msra.mxu0 %v3269
  %5252 = vmatprep.subr.bf16.mxu0 %v3266
  %5253 = vmatpush1.bf16.msra.mxu0 %v3265
  %5254 = vmatprep.subr.bf16.mxu0 %v3326
  %5255 = vmatpush2.bf16.msra.mxu0 %v3325
  %5256 = vmatprep.subr.bf16.mxu0 %v3322
  %5257 = vmatpush2.bf16.msra.mxu0 %v3321
  %5258 = vmatprep.subr.bf16.mxu0 %v3318
  %5259 = vmatpush2.bf16.msra.mxu0 %v3317
  %5260 = vmatprep.subr.bf16.mxu0 %v3314
  %5261 = vmatpush2.bf16.msra.mxu0 %v3313
  %5262 = vmatprep.subr.bf16.mxu0 %v3310
  %5263 = vmatpush2.bf16.msra.mxu0 %v3309
  %5264 = vmatprep.subr.bf16.mxu0 %v3306
  %5265 = vmatpush2.bf16.msra.mxu0 %v3305
  %5266 = vmatprep.subr.bf16.mxu0 %v3302
  %5267 = vmatpush2.bf16.msra.mxu0 %v3301
  %5268 = vmatprep.subr.bf16.mxu0 %v3298
  %5269 = vmatpush2.bf16.msra.mxu0 %v3297
  %5270 = vmatprep.mubr.bf16.mxu0 %v948
  %5271 = vmatmul.mubr.bf16.gmra.mxu0 %v947
  %v5272 = vpop.f32.mrf.mxu0
  %v5273 = vadd.f32 %v5200, %v5272
  %v5274 = vpop.f32.mrf.mxu0
  %v5275 = vadd.f32 %v5202, %v5274
  %v5276 = vpop.f32.mrf.mxu0
  %v5277 = vadd.f32 %v5204, %v5276
  %v5278 = vpop.f32.mrf.mxu0
  %v5279 = vadd.f32 %v5206, %v5278
  %5280 = vmatprep.mubr.bf16.mxu0 %v967
  %5281 = vmatmul.mubr.bf16.gmra.mxu0 %v966
  %v5282 = vpop.f32.mrf.mxu0
  %v5283 = vadd.f32 %v5210, %v5282
  %v5284 = vpop.f32.mrf.mxu0
  %v5285 = vadd.f32 %v5212, %v5284
  %v5286 = vpop.f32.mrf.mxu0
  %v5287 = vadd.f32 %v5214, %v5286
  %v5288 = vpop.f32.mrf.mxu0
  %v5289 = vadd.f32 %v5216, %v5288
  %5290 = vmatprep.mubr.bf16.mxu0 %v986
  %5291 = vmatmul.mubr.bf16.gmra.mxu0 %v985
  %v5292 = vpop.f32.mrf.mxu0
  %v5293 = vadd.f32 %v5220, %v5292
  %v5294 = vpop.f32.mrf.mxu0
  %v5295 = vadd.f32 %v5222, %v5294
  %v5296 = vpop.f32.mrf.mxu0
  %v5297 = vadd.f32 %v5224, %v5296
  %v5298 = vpop.f32.mrf.mxu0
  %v5299 = vadd.f32 %v5226, %v5298
  %5300 = vmatprep.mubr.bf16.mxu0 %v1005
  %5301 = vmatmul.mubr.bf16.gmra.mxu0 %v1004
  %v5302 = vpop.f32.mrf.mxu0
  %v5303 = vadd.f32 %v5230, %v5302
  %v5304 = vpop.f32.mrf.mxu0
  %v5305 = vadd.f32 %v5232, %v5304
  %v5306 = vpop.f32.mrf.mxu0
  %v5307 = vadd.f32 %v5234, %v5306
  %v5308 = vpop.f32.mrf.mxu0
  %v5309 = vadd.f32 %v5236, %v5308
  %5310 = vdwg.mxu0
  %5311 = vmatprep.subr.bf16.mxu0 %v3358
  %5312 = vmatpush1.bf16.msra.mxu0 %v3357
  %5313 = vmatprep.subr.bf16.mxu0 %v3354
  %5314 = vmatpush1.bf16.msra.mxu0 %v3353
  %5315 = vmatprep.subr.bf16.mxu0 %v3350
  %5316 = vmatpush1.bf16.msra.mxu0 %v3349
  %5317 = vmatprep.subr.bf16.mxu0 %v3346
  %5318 = vmatpush1.bf16.msra.mxu0 %v3345
  %5319 = vmatprep.subr.bf16.mxu0 %v3342
  %5320 = vmatpush1.bf16.msra.mxu0 %v3341
  %5321 = vmatprep.subr.bf16.mxu0 %v3338
  %5322 = vmatpush1.bf16.msra.mxu0 %v3337
  %5323 = vmatprep.subr.bf16.mxu0 %v3334
  %5324 = vmatpush1.bf16.msra.mxu0 %v3333
  %5325 = vmatprep.subr.bf16.mxu0 %v3330
  %5326 = vmatpush1.bf16.msra.mxu0 %v3329
  %5327 = vmatprep.subr.bf16.mxu0 %v3390
  %5328 = vmatpush2.bf16.msra.mxu0 %v3389
  %5329 = vmatprep.subr.bf16.mxu0 %v3386
  %5330 = vmatpush2.bf16.msra.mxu0 %v3385
  %5331 = vmatprep.subr.bf16.mxu0 %v3382
  %5332 = vmatpush2.bf16.msra.mxu0 %v3381
  %5333 = vmatprep.subr.bf16.mxu0 %v3378
  %5334 = vmatpush2.bf16.msra.mxu0 %v3377
  %5335 = vmatprep.subr.bf16.mxu0 %v3374
  %5336 = vmatpush2.bf16.msra.mxu0 %v3373
  %5337 = vmatprep.subr.bf16.mxu0 %v3370
  %5338 = vmatpush2.bf16.msra.mxu0 %v3369
  %5339 = vmatprep.subr.bf16.mxu0 %v3366
  %5340 = vmatpush2.bf16.msra.mxu0 %v3365
  %5341 = vmatprep.subr.bf16.mxu0 %v3362
  %5342 = vmatpush2.bf16.msra.mxu0 %v3361
  %5343 = vmatprep.mubr.bf16.mxu0 %v950
  %5344 = vmatmul.mubr.bf16.gmra.mxu0 %v949
  %v5345 = vpop.f32.mrf.mxu0
  %v5346 = vadd.f32 %v5273, %v5345
  %v5347 = vpop.f32.mrf.mxu0
  %v5348 = vadd.f32 %v5275, %v5347
  %v5349 = vpop.f32.mrf.mxu0
  %v5350 = vadd.f32 %v5277, %v5349
  %v5351 = vpop.f32.mrf.mxu0
  %v5352 = vadd.f32 %v5279, %v5351
  %5353 = vmatprep.mubr.bf16.mxu0 %v969
  %5354 = vmatmul.mubr.bf16.gmra.mxu0 %v968
  %v5355 = vpop.f32.mrf.mxu0
  %v5356 = vadd.f32 %v5283, %v5355
  %v5357 = vpop.f32.mrf.mxu0
  %v5358 = vadd.f32 %v5285, %v5357
  %v5359 = vpop.f32.mrf.mxu0
  %v5360 = vadd.f32 %v5287, %v5359
  %v5361 = vpop.f32.mrf.mxu0
  %v5362 = vadd.f32 %v5289, %v5361
  %5363 = vmatprep.mubr.bf16.mxu0 %v988
  %5364 = vmatmul.mubr.bf16.gmra.mxu0 %v987
  %v5365 = vpop.f32.mrf.mxu0
  %v5366 = vadd.f32 %v5293, %v5365
  %v5367 = vpop.f32.mrf.mxu0
  %v5368 = vadd.f32 %v5295, %v5367
  %v5369 = vpop.f32.mrf.mxu0
  %v5370 = vadd.f32 %v5297, %v5369
  %v5371 = vpop.f32.mrf.mxu0
  %v5372 = vadd.f32 %v5299, %v5371
  %5373 = vmatprep.mubr.bf16.mxu0 %v1007
  %5374 = vmatmul.mubr.bf16.gmra.mxu0 %v1006
  %v5375 = vpop.f32.mrf.mxu0
  %v5376 = vadd.f32 %v5303, %v5375
  %v5377 = vpop.f32.mrf.mxu0
  %v5378 = vadd.f32 %v5305, %v5377
  %v5379 = vpop.f32.mrf.mxu0
  %v5380 = vadd.f32 %v5307, %v5379
  %v5381 = vpop.f32.mrf.mxu0
  %v5382 = vadd.f32 %v5309, %v5381
  %5383 = vdwg.mxu0
  %5384 = vmatprep.subr.bf16.mxu0 0
  %5385 = vmatpush1.bf16.msra.mxu0 0
  %5386 = vmatprep.subr.bf16.mxu0 0
  %5387 = vmatpush1.bf16.msra.mxu0 0
  %5388 = vmatprep.subr.bf16.mxu0 0
  %5389 = vmatpush1.bf16.msra.mxu0 0
  %5390 = vmatprep.subr.bf16.mxu0 0
  %5391 = vmatpush1.bf16.msra.mxu0 0
  %5392 = vmatprep.subr.bf16.mxu0 0
  %5393 = vmatpush1.bf16.msra.mxu0 0
  %5394 = vmatprep.subr.bf16.mxu0 0
  %5395 = vmatpush1.bf16.msra.mxu0 0
  %5396 = vmatprep.subr.bf16.mxu0 0
  %5397 = vmatpush1.bf16.msra.mxu0 0
  %5398 = vmatprep.subr.bf16.mxu0 %v3995
  %5399 = vmatpush1.bf16.msra.mxu0 %v3992
  %5400 = vmatprep.subr.bf16.mxu0 0
  %5401 = vmatpush2.bf16.msra.mxu0 0
  %5402 = vmatprep.subr.bf16.mxu0 0
  %5403 = vmatpush2.bf16.msra.mxu0 0
  %5404 = vmatprep.subr.bf16.mxu0 0
  %5405 = vmatpush2.bf16.msra.mxu0 0
  %5406 = vmatprep.subr.bf16.mxu0 0
  %5407 = vmatpush2.bf16.msra.mxu0 0
  %5408 = vmatprep.subr.bf16.mxu0 0
  %5409 = vmatpush2.bf16.msra.mxu0 0
  %5410 = vmatprep.subr.bf16.mxu0 0
  %5411 = vmatpush2.bf16.msra.mxu0 0
  %5412 = vmatprep.subr.bf16.mxu0 0
  %5413 = vmatpush2.bf16.msra.mxu0 0
  %5414 = vmatprep.subr.bf16.mxu0 0
  %5415 = vmatpush2.bf16.msra.mxu0 0
  %5416 = vmatprep.mubr.bf16.mxu0 0
  %5417 = vmatmul.mubr.bf16.gmra.mxu0 %v3973
  %v5418 = vpop.f32.mrf.mxu0
  %v5419 = vadd.f32 %v5346, %v5418
  %v5420 = vpop.f32.mrf.mxu0
  %v5421 = vadd.f32 %v5348, %v5420
  %v5422 = vpop.f32.mrf.mxu0
  %v5423 = vadd.f32 %v5350, %v5422
  %v5424 = vpop.f32.mrf.mxu0
  %v5425 = vadd.f32 %v5352, %v5424
  %5426 = vmatprep.mubr.bf16.mxu0 0
  %5427 = vmatmul.mubr.bf16.gmra.mxu0 %v3976
  %v5428 = vpop.f32.mrf.mxu0
  %v5429 = vadd.f32 %v5356, %v5428
  %v5430 = vpop.f32.mrf.mxu0
  %v5431 = vadd.f32 %v5358, %v5430
  %v5432 = vpop.f32.mrf.mxu0
  %v5433 = vadd.f32 %v5360, %v5432
  %v5434 = vpop.f32.mrf.mxu0
  %v5435 = vadd.f32 %v5362, %v5434
  %5436 = vmatprep.mubr.bf16.mxu0 0
  %5437 = vmatmul.mubr.bf16.gmra.mxu0 %v3979
  %v5438 = vpop.f32.mrf.mxu0
  %v5439 = vadd.f32 %v5366, %v5438
  %v5440 = vpop.f32.mrf.mxu0
  %v5441 = vadd.f32 %v5368, %v5440
  %v5442 = vpop.f32.mrf.mxu0
  %v5443 = vadd.f32 %v5370, %v5442
  %v5444 = vpop.f32.mrf.mxu0
  %v5445 = vadd.f32 %v5372, %v5444
  %5446 = vmatprep.mubr.bf16.mxu0 0
  %5447 = vmatmul.mubr.bf16.gmra.mxu0 %v3982
  %v5448 = vpop.f32.mrf.mxu0
  %v5449 = vadd.f32 %v5376, %v5448
  %v5450 = vpop.f32.mrf.mxu0
  %v5451 = vadd.f32 %v5378, %v5450
  %v5452 = vpop.f32.mrf.mxu0
  %v5453 = vadd.f32 %v5380, %v5452
  %v5454 = vpop.f32.mrf.mxu0
  %v5455 = vadd.f32 %v5382, %v5454
  %5456 = vdwg.mxu0
  %v5457 = vadd.f32 %v4689, 0.0
  %v5458 = vadd.f32 %v4691, 0.0
  %v5459 = vadd.f32 %v5419, 0.0
  %v5460 = vadd.f32 %v5421, 0.0
  %vm5461 = vcmp.gt.f32.partialorder %v5457, 0.3
  %vm5462 = vcmp.gt.f32.partialorder %v5458, 0.3
  %vm5463 = vcmp.gt.f32.partialorder %v5459, 0.3
  %vm5464 = vcmp.gt.f32.partialorder %v5460, 0.3
  %v5465 = vsel %vm5461, 1.0, 0.0
  %v5466 = vsel %vm5462, 1.0, 0.0
  %v5467 = vsel %vm5463, 1.0, 0.0
  %v5468 = vsel %vm5464, 1.0, 0.0
  %5469 = vst [vmem:[#allocation2] sm:$0xff] %v5465
  %5470 = vst [vmem:[#allocation2 + $0x8] sm:$0xff] %v5466
  %5471 = vst [vmem:[#allocation2 + $0x10] sm:$0xff] %v5467
  %5472 = vst [vmem:[#allocation2 + $0x18] sm:$0xff] %v5468
  %v5473 = vsel %vm5461, 0.0, %v5457
  %v5474 = vsel %vm5462, 0.0, %v5458
  %v5475 = vsel %vm5463, 0.0, %v5459
  %v5476 = vsel %vm5464, 0.0, %v5460
  %v5477 = vmul.f32 %v5473, 0.3
  %v5478 = vmul.f32 %v5474, 0.3
  %v5479 = vmul.f32 %v5475, 0.3
  %v5480 = vmul.f32 %v5476, 0.3
  %v5481 = vadd.f32 %v5477, %v4693
  %v5482 = vadd.f32 %v5478, %v4695
  %v5483 = vadd.f32 %v5479, %v5423
  %v5484 = vadd.f32 %v5480, %v5425
  %vm5485 = vcmp.gt.f32.partialorder %v5481, 0.3
  %vm5486 = vcmp.gt.f32.partialorder %v5482, 0.3
  %vm5487 = vcmp.gt.f32.partialorder %v5483, 0.3
  %vm5488 = vcmp.gt.f32.partialorder %v5484, 0.3
  %v5489 = vsel %vm5485, 1.0, 0.0
  %v5490 = vsel %vm5486, 1.0, 0.0
  %v5491 = vsel %vm5487, 1.0, 0.0
  %v5492 = vsel %vm5488, 1.0, 0.0
  %5493 = vst [vmem:[#allocation2 + $0x20] sm:$0xff] %v5489
  %5494 = vst [vmem:[#allocation2 + $0x28] sm:$0xff] %v5490
  %5495 = vst [vmem:[#allocation2 + $0x30] sm:$0xff] %v5491
  %5496 = vst [vmem:[#allocation2 + $0x38] sm:$0xff] %v5492
  %v5497 = vsel %vm5485, 0.0, %v5481
  %v5498 = vsel %vm5486, 0.0, %v5482
  %v5499 = vsel %vm5487, 0.0, %v5483
  %v5500 = vsel %vm5488, 0.0, %v5484
  %v5501 = vmul.f32 %v5497, 0.3
  %v5502 = vmul.f32 %v5498, 0.3
  %v5503 = vmul.f32 %v5499, 0.3
  %v5504 = vmul.f32 %v5500, 0.3
  %v5505 = vadd.f32 %v5501, %v4699
  %v5506 = vadd.f32 %v5502, %v4701
  %v5507 = vadd.f32 %v5503, %v5429
  %v5508 = vadd.f32 %v5504, %v5431
  %vm5509 = vcmp.gt.f32.partialorder %v5505, 0.3
  %vm5510 = vcmp.gt.f32.partialorder %v5506, 0.3
  %vm5511 = vcmp.gt.f32.partialorder %v5507, 0.3
  %vm5512 = vcmp.gt.f32.partialorder %v5508, 0.3
  %v5513 = vsel %vm5509, 1.0, 0.0
  %v5514 = vsel %vm5510, 1.0, 0.0
  %v5515 = vsel %vm5511, 1.0, 0.0
  %v5516 = vsel %vm5512, 1.0, 0.0
  %5517 = vst [vmem:[#allocation2 + $0x40] sm:$0xff] %v5513
  %5518 = vst [vmem:[#allocation2 + $0x48] sm:$0xff] %v5514
  %5519 = vst [vmem:[#allocation2 + $0x50] sm:$0xff] %v5515
  %5520 = vst [vmem:[#allocation2 + $0x58] sm:$0xff] %v5516
  %v5521 = vsel %vm5509, 0.0, %v5505
  %v5522 = vsel %vm5510, 0.0, %v5506
  %v5523 = vsel %vm5511, 0.0, %v5507
  %v5524 = vsel %vm5512, 0.0, %v5508
  %v5525 = vmul.f32 %v5521, 0.3
  %v5526 = vmul.f32 %v5522, 0.3
  %v5527 = vmul.f32 %v5523, 0.3
  %v5528 = vmul.f32 %v5524, 0.3
  %v5529 = vadd.f32 %v5525, %v4703
  %v5530 = vadd.f32 %v5526, %v4705
  %v5531 = vadd.f32 %v5527, %v5433
  %v5532 = vadd.f32 %v5528, %v5435
  %vm5533 = vcmp.gt.f32.partialorder %v5529, 0.3
  %vm5534 = vcmp.gt.f32.partialorder %v5530, 0.3
  %vm5535 = vcmp.gt.f32.partialorder %v5531, 0.3
  %vm5536 = vcmp.gt.f32.partialorder %v5532, 0.3
  %v5537 = vsel %vm5533, 1.0, 0.0
  %v5538 = vsel %vm5534, 1.0, 0.0
  %v5539 = vsel %vm5535, 1.0, 0.0
  %v5540 = vsel %vm5536, 1.0, 0.0
  %5541 = vst [vmem:[#allocation2 + $0x60] sm:$0xff] %v5537
  %5542 = vst [vmem:[#allocation2 + $0x68] sm:$0xff] %v5538
  %5543 = vst [vmem:[#allocation2 + $0x70] sm:$0xff] %v5539
  %5544 = vst [vmem:[#allocation2 + $0x78] sm:$0xff] %v5540
  %v5545 = vsel %vm5533, 0.0, %v5529
  %v5546 = vsel %vm5534, 0.0, %v5530
  %v5547 = vsel %vm5535, 0.0, %v5531
  %v5548 = vsel %vm5536, 0.0, %v5532
  %v5549 = vmul.f32 %v5545, 0.3
  %v5550 = vmul.f32 %v5546, 0.3
  %v5551 = vmul.f32 %v5547, 0.3
  %v5552 = vmul.f32 %v5548, 0.3
  %v5553 = vadd.f32 %v5549, %v4709
  %v5554 = vadd.f32 %v5550, %v4711
  %v5555 = vadd.f32 %v5551, %v5439
  %v5556 = vadd.f32 %v5552, %v5441
  %vm5557 = vcmp.gt.f32.partialorder %v5553, 0.3
  %vm5558 = vcmp.gt.f32.partialorder %v5554, 0.3
  %vm5559 = vcmp.gt.f32.partialorder %v5555, 0.3
  %vm5560 = vcmp.gt.f32.partialorder %v5556, 0.3
  %v5561 = vsel %vm5557, 1.0, 0.0
  %v5562 = vsel %vm5558, 1.0, 0.0
  %v5563 = vsel %vm5559, 1.0, 0.0
  %v5564 = vsel %vm5560, 1.0, 0.0
  %5565 = vst [vmem:[#allocation2 + $0x80] sm:$0xff] %v5561
  %5566 = vst [vmem:[#allocation2 + $0x88] sm:$0xff] %v5562
  %5567 = vst [vmem:[#allocation2 + $0x90] sm:$0xff] %v5563
  %5568 = vst [vmem:[#allocation2 + $0x98] sm:$0xff] %v5564
  %v5569 = vsel %vm5557, 0.0, %v5553
  %v5570 = vsel %vm5558, 0.0, %v5554
  %v5571 = vsel %vm5559, 0.0, %v5555
  %v5572 = vsel %vm5560, 0.0, %v5556
  %v5573 = vmul.f32 %v5569, 0.3
  %v5574 = vmul.f32 %v5570, 0.3
  %v5575 = vmul.f32 %v5571, 0.3
  %v5576 = vmul.f32 %v5572, 0.3
  %v5577 = vadd.f32 %v5573, %v4713
  %v5578 = vadd.f32 %v5574, %v4715
  %v5579 = vadd.f32 %v5575, %v5443
  %v5580 = vadd.f32 %v5576, %v5445
  %vm5581 = vcmp.gt.f32.partialorder %v5577, 0.3
  %vm5582 = vcmp.gt.f32.partialorder %v5578, 0.3
  %vm5583 = vcmp.gt.f32.partialorder %v5579, 0.3
  %vm5584 = vcmp.gt.f32.partialorder %v5580, 0.3
  %v5585 = vsel %vm5581, 1.0, 0.0
  %v5586 = vsel %vm5582, 1.0, 0.0
  %v5587 = vsel %vm5583, 1.0, 0.0
  %v5588 = vsel %vm5584, 1.0, 0.0
  %5589 = vst [vmem:[#allocation2 + $0xa0] sm:$0xff] %v5585
  %5590 = vst [vmem:[#allocation2 + $0xa8] sm:$0xff] %v5586
  %5591 = vst [vmem:[#allocation2 + $0xb0] sm:$0xff] %v5587
  %5592 = vst [vmem:[#allocation2 + $0xb8] sm:$0xff] %v5588
  %v5593 = vsel %vm5581, 0.0, %v5577
  %v5594 = vsel %vm5582, 0.0, %v5578
  %v5595 = vsel %vm5583, 0.0, %v5579
  %v5596 = vsel %vm5584, 0.0, %v5580
  %v5597 = vmul.f32 %v5593, 0.3
  %v5598 = vmul.f32 %v5594, 0.3
  %v5599 = vmul.f32 %v5595, 0.3
  %v5600 = vmul.f32 %v5596, 0.3
  %v5601 = vadd.f32 %v5597, %v4719
  %v5602 = vadd.f32 %v5598, %v4721
  %v5603 = vadd.f32 %v5599, %v5449
  %v5604 = vadd.f32 %v5600, %v5451
  %vm5605 = vcmp.gt.f32.partialorder %v5601, 0.3
  %vm5606 = vcmp.gt.f32.partialorder %v5602, 0.3
  %vm5607 = vcmp.gt.f32.partialorder %v5603, 0.3
  %vm5608 = vcmp.gt.f32.partialorder %v5604, 0.3
  %v5609 = vsel %vm5605, 1.0, 0.0
  %v5610 = vsel %vm5606, 1.0, 0.0
  %v5611 = vsel %vm5607, 1.0, 0.0
  %v5612 = vsel %vm5608, 1.0, 0.0
  %5613 = vst [vmem:[#allocation2 + $0xc0] sm:$0xff] %v5609
  %5614 = vst [vmem:[#allocation2 + $0xc8] sm:$0xff] %v5610
  %5615 = vst [vmem:[#allocation2 + $0xd0] sm:$0xff] %v5611
  %5616 = vst [vmem:[#allocation2 + $0xd8] sm:$0xff] %v5612
  %v5617 = vsel %vm5605, 0.0, %v5601
  %v5618 = vsel %vm5606, 0.0, %v5602
  %v5619 = vsel %vm5607, 0.0, %v5603
  %v5620 = vsel %vm5608, 0.0, %v5604
  %v5621 = vmul.f32 %v5617, 0.3
  %v5622 = vmul.f32 %v5618, 0.3
  %v5623 = vmul.f32 %v5619, 0.3
  %v5624 = vmul.f32 %v5620, 0.3
  %v5625 = vadd.f32 %v5621, %v4723
  %v5626 = vadd.f32 %v5622, %v4725
  %v5627 = vadd.f32 %v5623, %v5453
  %v5628 = vadd.f32 %v5624, %v5455
  %vm5629 = vcmp.gt.f32.partialorder %v5625, 0.3
  %vm5630 = vcmp.gt.f32.partialorder %v5626, 0.3
  %vm5631 = vcmp.gt.f32.partialorder %v5627, 0.3
  %vm5632 = vcmp.gt.f32.partialorder %v5628, 0.3
  %v5633 = vsel %vm5629, 1.0, 0.0
  %v5634 = vsel %vm5630, 1.0, 0.0
  %v5635 = vsel %vm5631, 1.0, 0.0
  %v5636 = vsel %vm5632, 1.0, 0.0
  %5637 = vst [vmem:[#allocation2 + $0xe0] sm:$0xff] %v5633
  %5638 = vst [vmem:[#allocation2 + $0xe8] sm:$0xff] %v5634
  %5639 = vst [vmem:[#allocation2 + $0xf0] sm:$0xff] %v5635
  %5640 = vst [vmem:[#allocation2 + $0xf8] sm:$0xff] %v5636
  %v5641 = vld [vmem:[#allocation2] sm:$0xff]
  %v5642 = vld [vmem:[#allocation2 + $0x8] sm:$0xff]
  %v5643 = vld [vmem:[#allocation2 + $0x10] sm:$0xff]
  %v5644 = vld [vmem:[#allocation2 + $0x18] sm:$0xff]
  %v5645 = vld [vmem:[#allocation2 + $0x20] sm:$0xff]
  %v5646 = vld [vmem:[#allocation2 + $0x28] sm:$0xff]
  %v5647 = vld [vmem:[#allocation2 + $0x30] sm:$0xff]
  %v5648 = vld [vmem:[#allocation2 + $0x38] sm:$0xff]
  %v5649 = vld [vmem:[#allocation2 + $0x40] sm:$0xff]
  %v5650 = vld [vmem:[#allocation2 + $0x48] sm:$0xff]
  %v5651 = vld [vmem:[#allocation2 + $0x50] sm:$0xff]
  %v5652 = vld [vmem:[#allocation2 + $0x58] sm:$0xff]
  %v5653 = vld [vmem:[#allocation2 + $0x60] sm:$0xff]
  %v5654 = vld [vmem:[#allocation2 + $0x68] sm:$0xff]
  %v5655 = vld [vmem:[#allocation2 + $0x70] sm:$0xff]
  %v5656 = vld [vmem:[#allocation2 + $0x78] sm:$0xff]
  %v5657 = vld [vmem:[#allocation2 + $0x80] sm:$0xff]
  %v5658 = vld [vmem:[#allocation2 + $0x88] sm:$0xff]
  %v5659 = vld [vmem:[#allocation2 + $0x90] sm:$0xff]
  %v5660 = vld [vmem:[#allocation2 + $0x98] sm:$0xff]
  %v5661 = vld [vmem:[#allocation2 + $0xa0] sm:$0xff]
  %v5662 = vld [vmem:[#allocation2 + $0xa8] sm:$0xff]
  %v5663 = vld [vmem:[#allocation2 + $0xb0] sm:$0xff]
  %v5664 = vld [vmem:[#allocation2 + $0xb8] sm:$0xff]
  %v5665 = vld [vmem:[#allocation2 + $0xc0] sm:$0xff]
  %v5666 = vld [vmem:[#allocation2 + $0xc8] sm:$0xff]
  %v5667 = vld [vmem:[#allocation2 + $0xd0] sm:$0xff]
  %v5668 = vld [vmem:[#allocation2 + $0xd8] sm:$0xff]
  %v5669 = vld [vmem:[#allocation2 + $0xe0] sm:$0xff]
  %v5670 = vld [vmem:[#allocation2 + $0xe8] sm:$0xff]
  %v5671 = vld [vmem:[#allocation2 + $0xf0] sm:$0xff]
  %v5672 = vld [vmem:[#allocation2 + $0xf8] sm:$0xff]
  %v5673 = vpack.c.bf16 %v5645, %v5641
  %v5674 = vpack.c.bf16 %v5646, %v5642
  %v5675 = vpack.c.bf16 %v5647, %v5643
  %v5676 = vpack.c.bf16 %v5648, %v5644
  %v5677 = vpack.c.bf16 %v5653, %v5649
  %v5678 = vpack.c.bf16 %v5654, %v5650
  %v5679 = vpack.c.bf16 %v5655, %v5651
  %v5680 = vpack.c.bf16 %v5656, %v5652
  %v5681 = vpack.c.bf16 %v5661, %v5657
  %v5682 = vpack.c.bf16 %v5662, %v5658
  %v5683 = vpack.c.bf16 %v5663, %v5659
  %v5684 = vpack.c.bf16 %v5664, %v5660
  %v5685 = vpack.c.bf16 %v5669, %v5665
  %v5686 = vpack.c.bf16 %v5670, %v5666
  %v5687 = vpack.c.bf16 %v5671, %v5667
  %v5688 = vpack.c.bf16 %v5672, %v5668
  %v5689 = vld [vmem:[%s3] sm:$0xf]
  %v5690 = vld [vmem:[%s3 + $0x4] sm:$0xf]
  %v5691 = vld [vmem:[%s3 + $0x8] sm:$0xf]
  %v5692 = vld [vmem:[%s3 + $0xc] sm:$0xf]
  %v5693 = vld [vmem:[%s3 + $0x10] sm:$0xf]
  %v5694 = vld [vmem:[%s3 + $0x14] sm:$0xf]
  %v5695 = vld [vmem:[%s3 + $0x18] sm:$0xf]
  %v5696 = vld [vmem:[%s3 + $0x1c] sm:$0xf]
  %v5697 = vld [vmem:[%s3 + $0x20] sm:$0xf]
  %v5698 = vld [vmem:[%s3 + $0x24] sm:$0xf]
  %v5699 = vld [vmem:[%s3 + $0x28] sm:$0xf]
  %v5700 = vld [vmem:[%s3 + $0x2c] sm:$0xf]
  %v5701 = vld [vmem:[%s3 + $0x30] sm:$0xf]
  %v5702 = vld [vmem:[%s3 + $0x34] sm:$0xf]
  %v5703 = vld [vmem:[%s3 + $0x38] sm:$0xf]
  %v5704 = vld [vmem:[%s3 + $0x3c] sm:$0xf]
  %v5705 = vld [vmem:[%s3 + $0x40] sm:$0xf]
  %v5706 = vld [vmem:[%s3 + $0x44] sm:$0xf]
  %v5707 = vld [vmem:[%s3 + $0x48] sm:$0xf]
  %v5708 = vld [vmem:[%s3 + $0x4c] sm:$0xf]
  %v5709 = vld [vmem:[%s3 + $0x50] sm:$0xf]
  %v5710 = vld [vmem:[%s3 + $0x54] sm:$0xf]
  %v5711 = vld [vmem:[%s3 + $0x58] sm:$0xf]
  %v5712 = vld [vmem:[%s3 + $0x5c] sm:$0xf]
  %v5713 = vld [vmem:[%s3 + $0x60] sm:$0xf]
  %v5714 = vld [vmem:[%s3 + $0x64] sm:$0xf]
  %v5715 = vld [vmem:[%s3 + $0x68] sm:$0xf]
  %v5716 = vld [vmem:[%s3 + $0x6c] sm:$0xf]
  %v5717 = vld [vmem:[%s3 + $0x70] sm:$0xf]
  %v5718 = vld [vmem:[%s3 + $0x74] sm:$0xf]
  %v5719 = vld [vmem:[%s3 + $0x78] sm:$0xf]
  %v5720 = vld [vmem:[%s3 + $0x7c] sm:$0xf]
  %v5721 = vld [vmem:[%s3 + $0x80] sm:$0xf]
  %v5722 = vld [vmem:[%s3 + $0x84] sm:$0xf]
  %v5723 = vld [vmem:[%s3 + $0x88] sm:$0xf]
  %v5724 = vld [vmem:[%s3 + $0x8c] sm:$0xf]
  %v5725 = vld [vmem:[%s3 + $0x90] sm:$0xf]
  %v5726 = vld [vmem:[%s3 + $0x94] sm:$0xf]
  %v5727 = vld [vmem:[%s3 + $0x98] sm:$0xf]
  %v5728 = vld [vmem:[%s3 + $0x9c] sm:$0xf]
  %v5729 = vld [vmem:[%s3 + $0xa0] sm:$0xf]
  %v5730 = vld [vmem:[%s3 + $0xa4] sm:$0xf]
  %v5731 = vld [vmem:[%s3 + $0xa8] sm:$0xf]
  %v5732 = vld [vmem:[%s3 + $0xac] sm:$0xf]
  %v5733 = vld [vmem:[%s3 + $0xb0] sm:$0xf]
  %v5734 = vld [vmem:[%s3 + $0xb4] sm:$0xf]
  %v5735 = vld [vmem:[%s3 + $0xb8] sm:$0xf]
  %v5736 = vld [vmem:[%s3 + $0xbc] sm:$0xf]
  %v5737 = vld [vmem:[%s3 + $0xc0] sm:$0xf]
  %v5738 = vld [vmem:[%s3 + $0xc4] sm:$0xf]
  %v5739 = vld [vmem:[%s3 + $0xc8] sm:$0xf]
  %v5740 = vld [vmem:[%s3 + $0xcc] sm:$0xf]
  %v5741 = vld [vmem:[%s3 + $0xd0] sm:$0xf]
  %v5742 = vld [vmem:[%s3 + $0xd4] sm:$0xf]
  %v5743 = vld [vmem:[%s3 + $0xd8] sm:$0xf]
  %v5744 = vld [vmem:[%s3 + $0xdc] sm:$0xf]
  %v5745 = vld [vmem:[%s3 + $0xe0] sm:$0xf]
  %v5746 = vld [vmem:[%s3 + $0xe4] sm:$0xf]
  %v5747 = vld [vmem:[%s3 + $0xe8] sm:$0xf]
  %v5748 = vld [vmem:[%s3 + $0xec] sm:$0xf]
  %v5749 = vld [vmem:[%s3 + $0xf0] sm:$0xf]
  %v5750 = vld [vmem:[%s3 + $0xf4] sm:$0xf]
  %v5751 = vld [vmem:[%s3 + $0xf8] sm:$0xf]
  %v5752 = vld [vmem:[%s3 + $0xfc] sm:$0xf]
  %v5753 = vld [vmem:[%s4] sm:$0x1]
  %v5755 = vlaneseq
  %v5756 = vshrl.u32 %v5755, 7
  %v5757 = vsub.s32 0, %v5756
  %v5758 = vrot.slane %v5753, %v5757
  %v5824 = vunpack.c.l.b16 %v5689
  %v5825 = vunpack.c.l.b16 %v5690
  %v5826 = vunpack.c.l.b16 %v5691
  %v5827 = vunpack.c.l.b16 %v5692
  %v5828 = vunpack.c.l.b16 %v5693
  %v5829 = vunpack.c.l.b16 %v5694
  %v5830 = vunpack.c.l.b16 %v5695
  %v5831 = vunpack.c.l.b16 %v5696
  %v5832 = vunpack.c.l.b16 %v5697
  %v5833 = vunpack.c.l.b16 %v5698
  %v5834 = vunpack.c.l.b16 %v5699
  %v5835 = vunpack.c.l.b16 %v5700
  %v5836 = vunpack.c.l.b16 %v5701
  %v5837 = vunpack.c.l.b16 %v5702
  %v5838 = vunpack.c.l.b16 %v5703
  %v5839 = vunpack.c.l.b16 %v5704
  %v5840 = vunpack.c.l.b16 %v5705
  %v5841 = vunpack.c.l.b16 %v5706
  %v5842 = vunpack.c.l.b16 %v5707
  %v5843 = vunpack.c.l.b16 %v5708
  %v5844 = vunpack.c.l.b16 %v5709
  %v5845 = vunpack.c.l.b16 %v5710
  %v5846 = vunpack.c.l.b16 %v5711
  %v5847 = vunpack.c.l.b16 %v5712
  %v5848 = vunpack.c.l.b16 %v5713
  %v5849 = vunpack.c.l.b16 %v5714
  %v5850 = vunpack.c.l.b16 %v5715
  %v5851 = vunpack.c.l.b16 %v5716
  %v5852 = vunpack.c.l.b16 %v5717
  %v5853 = vunpack.c.l.b16 %v5718
  %v5854 = vunpack.c.l.b16 %v5719
  %v5855 = vunpack.c.l.b16 %v5720
  %v5856 = vunpack.c.l.b16 %v5721
  %v5857 = vunpack.c.l.b16 %v5722
  %v5858 = vunpack.c.l.b16 %v5723
  %v5859 = vunpack.c.l.b16 %v5724
  %v5860 = vunpack.c.l.b16 %v5725
  %v5861 = vunpack.c.l.b16 %v5726
  %v5862 = vunpack.c.l.b16 %v5727
  %v5863 = vunpack.c.l.b16 %v5728
  %v5864 = vunpack.c.l.b16 %v5729
  %v5865 = vunpack.c.l.b16 %v5730
  %v5866 = vunpack.c.l.b16 %v5731
  %v5867 = vunpack.c.l.b16 %v5732
  %v5868 = vunpack.c.l.b16 %v5733
  %v5869 = vunpack.c.l.b16 %v5734
  %v5870 = vunpack.c.l.b16 %v5735
  %v5871 = vunpack.c.l.b16 %v5736
  %v5872 = vunpack.c.l.b16 %v5737
  %v5873 = vunpack.c.l.b16 %v5738
  %v5874 = vunpack.c.l.b16 %v5739
  %v5875 = vunpack.c.l.b16 %v5740
  %v5876 = vunpack.c.l.b16 %v5741
  %v5877 = vunpack.c.l.b16 %v5742
  %v5878 = vunpack.c.l.b16 %v5743
  %v5879 = vunpack.c.l.b16 %v5744
  %v5880 = vunpack.c.l.b16 %v5745
  %v5881 = vunpack.c.l.b16 %v5746
  %v5882 = vunpack.c.l.b16 %v5747
  %v5883 = vunpack.c.l.b16 %v5748
  %v5884 = vunpack.c.l.b16 %v5749
  %v5885 = vunpack.c.l.b16 %v5750
  %v5886 = vunpack.c.l.b16 %v5751
  %v5887 = vunpack.c.l.b16 %v5752
  %v5888 = vpack.c.b16 %v5825, %v5824
  %v5889 = vpack.c.b16 %v5827, %v5826
  %v5890 = vpack.c.b16 %v5829, %v5828
  %v5891 = vpack.c.b16 %v5831, %v5830
  %v5892 = vpack.c.b16 %v5833, %v5832
  %v5893 = vpack.c.b16 %v5835, %v5834
  %v5894 = vpack.c.b16 %v5837, %v5836
  %v5895 = vpack.c.b16 %v5839, %v5838
  %v5896 = vpack.c.b16 %v5841, %v5840
  %v5897 = vpack.c.b16 %v5843, %v5842
  %v5898 = vpack.c.b16 %v5845, %v5844
  %v5899 = vpack.c.b16 %v5847, %v5846
  %v5900 = vpack.c.b16 %v5849, %v5848
  %v5901 = vpack.c.b16 %v5851, %v5850
  %v5902 = vpack.c.b16 %v5853, %v5852
  %v5903 = vpack.c.b16 %v5855, %v5854
  %v5904 = vpack.c.b16 %v5857, %v5856
  %v5905 = vpack.c.b16 %v5859, %v5858
  %v5906 = vpack.c.b16 %v5861, %v5860
  %v5907 = vpack.c.b16 %v5863, %v5862
  %v5908 = vpack.c.b16 %v5865, %v5864
  %v5909 = vpack.c.b16 %v5867, %v5866
  %v5910 = vpack.c.b16 %v5869, %v5868
  %v5911 = vpack.c.b16 %v5871, %v5870
  %v5912 = vpack.c.b16 %v5873, %v5872
  %v5913 = vpack.c.b16 %v5875, %v5874
  %v5914 = vpack.c.b16 %v5877, %v5876
  %v5915 = vpack.c.b16 %v5879, %v5878
  %v5916 = vpack.c.b16 %v5881, %v5880
  %v5917 = vpack.c.b16 %v5883, %v5882
  %v5918 = vpack.c.b16 %v5885, %v5884
  %v5919 = vpack.c.b16 %v5887, %v5886
  %5952 = vmatprep.subr.bf16.mxu0 0
  %5953 = vmatpush1.bf16.msra.mxu0 %v5895
  %5954 = vmatprep.subr.bf16.mxu0 0
  %5955 = vmatpush1.bf16.msra.mxu0 %v5894
  %5956 = vmatprep.subr.bf16.mxu0 0
  %5957 = vmatpush1.bf16.msra.mxu0 %v5893
  %5958 = vmatprep.subr.bf16.mxu0 0
  %5959 = vmatpush1.bf16.msra.mxu0 %v5892
  %5960 = vmatprep.subr.bf16.mxu0 0
  %5961 = vmatpush1.bf16.msra.mxu0 %v5891
  %5962 = vmatprep.subr.bf16.mxu0 0
  %5963 = vmatpush1.bf16.msra.mxu0 %v5890
  %5964 = vmatprep.subr.bf16.mxu0 0
  %5965 = vmatpush1.bf16.msra.mxu0 %v5889
  %5966 = vmatprep.subr.bf16.mxu0 0
  %5967 = vmatpush1.bf16.msra.mxu0 %v5888
  %5968 = vmatprep.subr.bf16.mxu0 0
  %5969 = vmatpush2.bf16.msra.mxu0 %v5903
  %5970 = vmatprep.subr.bf16.mxu0 0
  %5971 = vmatpush2.bf16.msra.mxu0 %v5902
  %5972 = vmatprep.subr.bf16.mxu0 0
  %5973 = vmatpush2.bf16.msra.mxu0 %v5901
  %5974 = vmatprep.subr.bf16.mxu0 0
  %5975 = vmatpush2.bf16.msra.mxu0 %v5900
  %5976 = vmatprep.subr.bf16.mxu0 0
  %5977 = vmatpush2.bf16.msra.mxu0 %v5899
  %5978 = vmatprep.subr.bf16.mxu0 0
  %5979 = vmatpush2.bf16.msra.mxu0 %v5898
  %5980 = vmatprep.subr.bf16.mxu0 0
  %5981 = vmatpush2.bf16.msra.mxu0 %v5897
  %5982 = vmatprep.subr.bf16.mxu0 0
  %5983 = vmatpush2.bf16.msra.mxu0 %v5896
  %5984 = vmatprep.mubr.bf16.mxu0 %v5674
  %5985 = vmatmul.mubr.bf16.gmra.mxu0 %v5673
  %v5986 = vpop.f32.mrf.mxu0
  %v5987 = vadd.f32 %v5758, %v5986
  %v5988 = vpop.f32.mrf.mxu0
  %v5989 = vpop.f32.mrf.mxu0
  %v5990 = vadd.f32 %v5758, %v5989
  %v5991 = vpop.f32.mrf.mxu0
  %5992 = vmatprep.mubr.bf16.mxu0 %v5678
  %5993 = vmatmul.mubr.bf16.gmra.mxu0 %v5677
  %v5994 = vpop.f32.mrf.mxu0
  %v5995 = vadd.f32 %v5758, %v5994
  %v5996 = vpop.f32.mrf.mxu0
  %v5997 = vpop.f32.mrf.mxu0
  %v5998 = vadd.f32 %v5758, %v5997
  %v5999 = vpop.f32.mrf.mxu0
  %6000 = vmatprep.mubr.bf16.mxu0 %v5682
  %6001 = vmatmul.mubr.bf16.gmra.mxu0 %v5681
  %v6002 = vpop.f32.mrf.mxu0
  %v6003 = vadd.f32 %v5758, %v6002
  %v6004 = vpop.f32.mrf.mxu0
  %v6005 = vpop.f32.mrf.mxu0
  %v6006 = vadd.f32 %v5758, %v6005
  %v6007 = vpop.f32.mrf.mxu0
  %6008 = vmatprep.mubr.bf16.mxu0 %v5686
  %6009 = vmatmul.mubr.bf16.gmra.mxu0 %v5685
  %v6010 = vpop.f32.mrf.mxu0
  %v6011 = vadd.f32 %v5758, %v6010
  %v6012 = vpop.f32.mrf.mxu0
  %v6013 = vpop.f32.mrf.mxu0
  %v6014 = vadd.f32 %v5758, %v6013
  %v6015 = vpop.f32.mrf.mxu0
  %6016 = vdwg.mxu0
  %6017 = vmatprep.subr.bf16.mxu0 0
  %6018 = vmatpush1.bf16.msra.mxu0 %v5911
  %6019 = vmatprep.subr.bf16.mxu0 0
  %6020 = vmatpush1.bf16.msra.mxu0 %v5910
  %6021 = vmatprep.subr.bf16.mxu0 0
  %6022 = vmatpush1.bf16.msra.mxu0 %v5909
  %6023 = vmatprep.subr.bf16.mxu0 0
  %6024 = vmatpush1.bf16.msra.mxu0 %v5908
  %6025 = vmatprep.subr.bf16.mxu0 0
  %6026 = vmatpush1.bf16.msra.mxu0 %v5907
  %6027 = vmatprep.subr.bf16.mxu0 0
  %6028 = vmatpush1.bf16.msra.mxu0 %v5906
  %6029 = vmatprep.subr.bf16.mxu0 0
  %6030 = vmatpush1.bf16.msra.mxu0 %v5905
  %6031 = vmatprep.subr.bf16.mxu0 0
  %6032 = vmatpush1.bf16.msra.mxu0 %v5904
  %6033 = vmatprep.subr.bf16.mxu0 0
  %6034 = vmatpush2.bf16.msra.mxu0 %v5919
  %6035 = vmatprep.subr.bf16.mxu0 0
  %6036 = vmatpush2.bf16.msra.mxu0 %v5918
  %6037 = vmatprep.subr.bf16.mxu0 0
  %6038 = vmatpush2.bf16.msra.mxu0 %v5917
  %6039 = vmatprep.subr.bf16.mxu0 0
  %6040 = vmatpush2.bf16.msra.mxu0 %v5916
  %6041 = vmatprep.subr.bf16.mxu0 0
  %6042 = vmatpush2.bf16.msra.mxu0 %v5915
  %6043 = vmatprep.subr.bf16.mxu0 0
  %6044 = vmatpush2.bf16.msra.mxu0 %v5914
  %6045 = vmatprep.subr.bf16.mxu0 0
  %6046 = vmatpush2.bf16.msra.mxu0 %v5913
  %6047 = vmatprep.subr.bf16.mxu0 0
  %6048 = vmatpush2.bf16.msra.mxu0 %v5912
  %6049 = vmatprep.mubr.bf16.mxu0 %v5676
  %6050 = vmatmul.mubr.bf16.gmra.mxu0 %v5675
  %v6051 = vpop.f32.mrf.mxu0
  %v6052 = vadd.f32 %v5987, %v6051
  %v6053 = vpop.f32.mrf.mxu0
  %v6054 = vpop.f32.mrf.mxu0
  %v6055 = vadd.f32 %v5990, %v6054
  %v6056 = vpop.f32.mrf.mxu0
  %6057 = vmatprep.mubr.bf16.mxu0 %v5680
  %6058 = vmatmul.mubr.bf16.gmra.mxu0 %v5679
  %v6059 = vpop.f32.mrf.mxu0
  %v6060 = vadd.f32 %v5995, %v6059
  %v6061 = vpop.f32.mrf.mxu0
  %v6062 = vpop.f32.mrf.mxu0
  %v6063 = vadd.f32 %v5998, %v6062
  %v6064 = vpop.f32.mrf.mxu0
  %6065 = vmatprep.mubr.bf16.mxu0 %v5684
  %6066 = vmatmul.mubr.bf16.gmra.mxu0 %v5683
  %v6067 = vpop.f32.mrf.mxu0
  %v6068 = vadd.f32 %v6003, %v6067
  %v6069 = vpop.f32.mrf.mxu0
  %v6070 = vpop.f32.mrf.mxu0
  %v6071 = vadd.f32 %v6006, %v6070
  %v6072 = vpop.f32.mrf.mxu0
  %6073 = vmatprep.mubr.bf16.mxu0 %v5688
  %6074 = vmatmul.mubr.bf16.gmra.mxu0 %v5687
  %v6075 = vpop.f32.mrf.mxu0
  %v6076 = vadd.f32 %v6011, %v6075
  %v6077 = vpop.f32.mrf.mxu0
  %v6078 = vpop.f32.mrf.mxu0
  %v6079 = vadd.f32 %v6014, %v6078
  %v6080 = vpop.f32.mrf.mxu0
  %6081 = vdwg.mxu0
  %v6082 = vadd.f32 %v6052, 0.0
  %vm6083 = vcmp.gt.f32.partialorder %v6082, 0.3
  %v6084 = vsel %vm6083, 1.0, 0.0
  %v6085 = vadd.f32 %v6084, 0.0
  %v6086 = vsel %vm6083, 0.0, %v6082
  %v6087 = vmul.f32 %v6086, 0.3
  %v6088 = vadd.f32 %v6087, %v6055
  %vm6089 = vcmp.gt.f32.partialorder %v6088, 0.3
  %v6090 = vsel %vm6089, 1.0, 0.0
  %v6091 = vadd.f32 %v6085, %v6090
  %v6092 = vsel %vm6089, 0.0, %v6088
  %v6093 = vmul.f32 %v6092, 0.3
  %v6094 = vadd.f32 %v6093, %v6060
  %vm6095 = vcmp.gt.f32.partialorder %v6094, 0.3
  %v6096 = vsel %vm6095, 1.0, 0.0
  %v6097 = vadd.f32 %v6091, %v6096
  %v6098 = vsel %vm6095, 0.0, %v6094
  %v6099 = vmul.f32 %v6098, 0.3
  %v6100 = vadd.f32 %v6099, %v6063
  %vm6101 = vcmp.gt.f32.partialorder %v6100, 0.3
  %v6102 = vsel %vm6101, 1.0, 0.0
  %v6103 = vadd.f32 %v6097, %v6102
  %v6104 = vsel %vm6101, 0.0, %v6100
  %v6105 = vmul.f32 %v6104, 0.3
  %v6106 = vadd.f32 %v6105, %v6068
  %vm6107 = vcmp.gt.f32.partialorder %v6106, 0.3
  %v6108 = vsel %vm6107, 1.0, 0.0
  %v6109 = vadd.f32 %v6103, %v6108
  %v6110 = vsel %vm6107, 0.0, %v6106
  %v6111 = vmul.f32 %v6110, 0.3
  %v6112 = vadd.f32 %v6111, %v6071
  %vm6113 = vcmp.gt.f32.partialorder %v6112, 0.3
  %v6114 = vsel %vm6113, 1.0, 0.0
  %v6115 = vadd.f32 %v6109, %v6114
  %v6116 = vsel %vm6113, 0.0, %v6112
  %v6117 = vmul.f32 %v6116, 0.3
  %v6118 = vadd.f32 %v6117, %v6076
  %vm6119 = vcmp.gt.f32.partialorder %v6118, 0.3
  %v6120 = vsel %vm6119, 1.0, 0.0
  %v6121 = vadd.f32 %v6115, %v6120
  %v6122 = vsel %vm6119, 0.0, %v6118
  %v6123 = vmul.f32 %v6122, 0.3
  %v6124 = vadd.f32 %v6123, %v6079
  %vm6125 = vcmp.gt.f32.partialorder %v6124, 0.3
  %v6126 = vsel %vm6125, 1.0, 0.0
  %v6127 = vadd.f32 %v6121, %v6126
  %v6128 = vmul.f32 %v6127, 0.125
  %6129 = vst [vmem:[%s5] sm:$0xff] %v6128
  // Predicated region
  $region22: #{nmnist_mlp2_forward.1} parent=0 // pred_check
    _
  $region23: #{nmnist_mlp2_forward.1} parent=0 // pred_check_branch
    %6131 = sbr.rel (0) target = $region25
  $region24: #{nmnist_mlp2_forward.1} parent=0 // pred_region
    _
  $region25: #{nmnist_mlp2_forward.1} parent=0 // pred_fallthru
    _
  // Predicated region
  $region26: #{nmnist_mlp2_forward.1} parent=0 // pred_check
    _
  $region27: #{nmnist_mlp2_forward.1} parent=0 // pred_check_branch
    %6133 = sbr.rel (0) target = $region29
  $region28: #{nmnist_mlp2_forward.1} parent=0 // pred_region
    _
  $region29: #{nmnist_mlp2_forward.1} parent=0 // pred_fallthru
    _

</llo_original>
